<compile_context>
chip_gen: v7x
topology: tpu7x:2x2x1
jax: 0.10.0
libtpu: 0.0.40
codegen_flags: <defaults>
</compile_context>

<pallas_src>
import jax
import jax.numpy as jnp
from jax import lax
from jax.experimental import pallas as pl
from jax.experimental.pallas import tpu as pltpu

# ---------------------------------------------------------------------------
# Static layout constants.
# ---------------------------------------------------------------------------
TB = 32                     # images per grid step (v7x-friendly; VMEM ~6-8 MiB)
C_PAD = 128                 # every channel-ish dim padded to one lane register
K1 = 25                     # conv1 taps (Cin=1, 5x5)
HP1, WP1 = 12, 16           # pool1 grid (valid 12x12, W padded to 16 for alignment)
ROWS1 = HP1 * WP1           # 192 rows / image after pool1 (== conv2 output grid)
GB = 272                    # rows per conv2 "tap column" buffer (192 valid + zero tail)
HP2_ROWS = (HP1 // 2) * WP1             # 96 rows / image after H-pooling of conv2
P2_ROWS = (HP1 // 2) * (WP1 // 2)       # 48 rows / image after full pool2
LANE_OFF = (0, 32, 64, 96, 16)          # lane offset of conv2 tap column j (10 lanes each)


# ---------------------------------------------------------------------------
# Fused forward kernel (one batch tile per grid step).
# ---------------------------------------------------------------------------
def _fused_net_kernel(p_ref, w1_ref, b1_ref, w2_ref, b2_ref,
                      fw1_ref, fb1_ref, fw2_ref, fb2_ref,
                      o_ref, gbuf, hp2, p2):
    f32, bf16 = jnp.float32, jnp.bfloat16
    w1 = w1_ref[...]                                       # (128,128) bf16, resident
    b1 = b1_ref[...]                                       # (1,128) f32 (bias replicated)
    b2 = b2_ref[...]                                       # (1,128) f32
    lane = lax.broadcasted_iota(jnp.int32, (1, C_PAD), 1)
    gmask = [(lane >= off) & (lane < off + 10) for off in LANE_OFF]

    # Zero the read-overrun tails of the 5 tap-column buffers (rows >=192 are
    # only consumed by conv2 outputs that get discarded; they must be finite).
    for j in range(5):
        gbuf[pl.ds(j * GB + ROWS1, GB - ROWS1), :] = jnp.zeros((GB - ROWS1, C_PAD), f32)

    @pl.loop(0, TB)
    def _per_image(b):
        row0 = pl.multiple_of(b * ROWS1, 8)

        # ---- conv1 (+bias) fused with 2x2 max-pool + ReLU.  Pool parities are
        # packed along lanes (groups 0/32/64/96), so the pool is a max over 3
        # lane-rolled copies; the result is replicated in all four lane groups.
        x = p_ref[pl.ds(row0, ROWS1), :]                              # (192,128) bf16
        y = jnp.dot(x, w1, preferred_element_type=f32)                # (192,128) f32
        pooled = jnp.maximum(jnp.maximum(y, pltpu.roll(y, 32, axis=1)),
                             jnp.maximum(pltpu.roll(y, 64, axis=1),
                                         pltpu.roll(y, 96, axis=1)))
        z = jnp.maximum(pooled + b1, 0.0)                             # ReLU, replicated

        # Scatter the pooled activations into 5 lane-disjoint tap-column buffers
        # (tap column j lives at lanes LANE_OFF[j]..+10); rows are NOT shifted,
        # conv2 below reads them at static offsets i*16 + j.
        for j in range(4):
            gbuf[pl.ds(j * GB, ROWS1), :] = jnp.where(gmask[j], z, 0.0)
        gbuf[pl.ds(4 * GB, ROWS1), :] = jnp.where(gmask[4], pltpu.roll(z, 16, axis=1), 0.0)

        # ---- conv2 (+bias): 5 kernel-row groups; each merges its 5 tap columns
        # (lane-disjoint adds) into one lane-dense operand.  Pairs are concatenated
        # to K=256 so v6e/v7x fill the 256-deep MXU.  Accumulation stays in vregs.
        # TODO(synk): nn.Dropout2d after conv2 is identity (inference mode).
        def merged(i):
            m = gbuf[pl.ds(0 * GB + i * WP1 + 0, ROWS1), :]
            for j in range(1, 5):
                m = m + gbuf[pl.ds(j * GB + i * WP1 + j, ROWS1), :]
            return m.astype(bf16)                                     # (192,128)

        acc = jnp.dot(jnp.concatenate([merged(0), merged(1)], axis=1),
                      w2_ref[pl.ds(0, 2 * C_PAD), :], preferred_element_type=f32)
        acc = acc + jnp.dot(jnp.concatenate([merged(2), merged(3)], axis=1),
                            w2_ref[pl.ds(2 * C_PAD, 2 * C_PAD), :],
                            preferred_element_type=f32)
        acc = acc + jnp.dot(merged(4), w2_ref[pl.ds(4 * C_PAD, C_PAD), :],
                            preferred_element_type=f32)
        acc = acc + b2                                                # bias once

        # ---- pool2 + ReLU.  H-pairs via layout-preserving reshape + leading-axis
        # max; W-pairs via an even/odd sublane-strided read of a small scratch.
        h = jnp.max(acc.reshape(HP1 // 2, 2, WP1, C_PAD), axis=1).reshape(HP2_ROWS, C_PAD)
        hp2[...] = h
        ev = hp2[pl.ds(0, P2_ROWS, stride=2), :]
        od = hp2[pl.ds(1, P2_ROWS, stride=2), :]
        p2[pl.ds(pl.multiple_of(b * P2_ROWS, 8), P2_ROWS), :] = \
            jnp.maximum(jnp.maximum(ev, od), 0.0)

    # ---- fc head: fc1 as 16 accumulating lane-dense matmuls over the valid 4x4
    # spatial block (flatten order folded into the packed fc1 weight), then
    # relu -> fc2 -> masked log_softmax.
    # TODO(synk): F.dropout between fc1 and fc2 is identity (inference mode).
    acc1 = jnp.zeros((TB, C_PAD), jnp.float32)
    for a in range(4):
        for c in range(4):
            blk = p2[pl.ds(a * (WP1 // 2) + c, TB, stride=P2_ROWS), :]   # (TB,128) f32
            acc1 = acc1 + jnp.dot(blk.astype(jnp.bfloat16),
                                  fw1_ref[pl.ds((a * 4 + c) * C_PAD, C_PAD), :],
                                  preferred_element_type=jnp.float32)
    h1 = jnp.maximum(acc1 + fb1_ref[...], 0.0).astype(jnp.bfloat16)      # (TB,128)
    logits = jnp.dot(h1, fw2_ref[...], preferred_element_type=jnp.float32) + fb2_ref[...]
    logits = jnp.where(lane < 10, logits, -1e30)                         # mask pad lanes
    m = jnp.max(logits, axis=1, keepdims=True)
    shifted = logits - m
    lse = jnp.log(jnp.sum(jnp.exp(shifted), axis=1, keepdims=True))
    o_ref[...] = shifted - lse                                           # log_softmax


# ---------------------------------------------------------------------------
# Host-side glue: one-time weight packing + pool-parity-packed conv1 im2col.
# ---------------------------------------------------------------------------
def _round_up(x, m):
    return (x + m - 1) // m * m


def _build_conv1_patches(x):
    """x: (N, 28, 28) f32 -> (N*192, 128) bf16 patches.

    Row (img, ho, wo) with ho in [0,12), wo in [0,16) (wo >= 12 rows come from
    zero padding and are never consumed by valid conv2 outputs).  Lane layout:
    q*25 + (i*5 + j) holds pixel x[2*ho+dh+i, 2*wo+dw+j] for pool parity
    q = dh*2 + dw; lanes 100..127 are zero.
    """
    n = x.shape[0]
    xp = jnp.pad(x, ((0, 0), (0, 0), (0, 8)))                        # (N, 28, 36)
    taps = []
    for q in range(4):
        dh, dw = q // 2, q % 2
        for i in range(5):
            for j in range(5):
                taps.append(xp[:, dh + i: dh + i + 24: 2,
                                  dw + j: dw + j + 32: 2])           # (N, 12, 16)
    pat = jnp.stack(taps, axis=-1)                                   # (N, 12, 16, 100)
    pat = jnp.pad(pat, ((0, 0), (0, 0), (0, 0), (0, C_PAD - 100)))
    return pat.reshape(n * ROWS1, C_PAD).astype(jnp.bfloat16)


def _pack_params(params):
    f32, bf16 = jnp.float32, jnp.bfloat16
    # conv1: block-diagonal over pool parities; parity q taps -> out lanes q*32+c.
    w1t = jnp.transpose(params["conv1_w"][:, 0], (1, 2, 0)).reshape(K1, 10)  # (tap, c)
    w1p = jnp.zeros((C_PAD, C_PAD), f32)
    b1r = jnp.zeros((1, C_PAD), f32)
    for q in range(4):
        w1p = w1p.at[q * K1:(q + 1) * K1, q * 32:q * 32 + 10].set(w1t)
        b1r = b1r.at[0, q * 32:q * 32 + 10].set(params["conv1_b"])
    w1p = w1p.astype(bf16)

    # conv2: one (128,128) block per kernel row i; tap column j sits at rows
    # LANE_OFF[j]..+10 (Cin), cols 0..20 (Cout).  Blocks stacked -> (640,128).
    w2 = params["conv2_w"]                                           # (20,10,5,5) OIHW
    blks = []
    for i in range(5):
        blk = jnp.zeros((C_PAD, C_PAD), f32)
        for j in range(5):
            blk = blk.at[LANE_OFF[j]:LANE_OFF[j] + 10, 0:20].set(
                jnp.transpose(w2[:, :, i, j]))                       # (cin, cout)
        blks.append(blk)
    w2p = jnp.concatenate(blks, axis=0).astype(bf16)                 # (640, 128)
    b2p = jnp.zeros((1, C_PAD), f32).at[0, :20].set(params["conv2_b"])

    # fc1: one (128,128) block per spatial position (a,c); PyTorch flatten index
    # = ch*16 + a*4 + c is folded in, so no runtime transpose is needed.
    f1 = params["fc1_w"].reshape(20, 4, 4, 50)                       # (ch, a, c, out)
    fblks = []
    for a in range(4):
        for c in range(4):
            fblks.append(jnp.zeros((C_PAD, C_PAD), f32).at[0:20, 0:50].set(f1[:, a, c, :]))
    fw1p = jnp.concatenate(fblks, axis=0).astype(bf16)               # (2048, 128)
    fb1p = jnp.zeros((1, C_PAD), f32).at[0, :50].set(params["fc1_b"])
    fw2p = jnp.zeros((C_PAD, C_PAD), f32).at[:50, :10].set(params["fc2_w"]).astype(bf16)
    fb2p = jnp.zeros((1, C_PAD), f32).at[0, :10].set(params["fc2_b"])
    return w1p, b1r, w2p, b2p, fw1p, fb1p, fw2p, fb2p


def net_forward(params, x_nchw):
    n = x_nchw.shape[0]
    x = x_nchw.reshape(n, 28, 28).astype(jnp.float32)
    n_pad = _round_up(max(n, TB), TB)
    if n_pad != n:
        x = jnp.pad(x, ((0, n_pad - n), (0, 0), (0, 0)))
    patches = _build_conv1_patches(x)                                # (n_pad*192, 128)
    w1, b1, w2, b2, fw1, fb1, fw2, fb2 = _pack_params(params)

    def resident(shape):                      # weights: DMA once, stay in VMEM
        return pl.BlockSpec(shape, lambda i: (0, 0))

    out = pl.pallas_call(
        _fused_net_kernel,
        out_shape=jax.ShapeDtypeStruct((n_pad, C_PAD), jnp.float32),
        grid_spec=pltpu.PrefetchScalarGridSpec(
            num_scalar_prefetch=0,
            grid=(n_pad // TB,),
            in_specs=[
                pl.BlockSpec((TB * ROWS1, C_PAD), lambda i: (i, 0)),   # patches stream
                resident((C_PAD, C_PAD)),              # conv1 w (parity block-diag)
                resident((1, C_PAD)),                  # conv1 b (replicated)
                resident((5 * C_PAD, C_PAD)),          # conv2 w (5 row-group blocks)
                resident((1, C_PAD)),                  # conv2 b
                resident((16 * C_PAD, C_PAD)),         # fc1 w (16 position blocks)
                resident((1, C_PAD)),                  # fc1 b
                resident((C_PAD, C_PAD)),              # fc2 w
                resident((1, C_PAD)),                  # fc2 b
            ],
            out_specs=pl.BlockSpec((TB, C_PAD), lambda i: (i, 0)),
            scratch_shapes=[
                pltpu.VMEM((5 * GB, C_PAD), jnp.float32),        # conv2 tap-column bufs
                pltpu.VMEM((HP2_ROWS, C_PAD), jnp.float32),      # per-image H-pooled conv2
                pltpu.VMEM((TB * P2_ROWS, C_PAD), jnp.float32),  # pool2 output
            ],
        ),
        compiler_params=pltpu.CompilerParams(
            dimension_semantics=("parallel",),
            vmem_limit_bytes=32 * 1024 * 1024,
        ),
    )(patches, w1, b1, w2, b2, fw1, fb1, fw2, fb2)
    return out[:n, :10]


# ---------------------------------------------------------------------------
# Parameters (PyTorch-style layouts / init) + pure-JAX reference.
# ---------------------------------------------------------------------------
def init_params(key):
    ks = jax.random.split(key, 8)

    def u(k, shape, fan_in):
        bound = float(fan_in) ** -0.5
        return jax.random.uniform(k, shape, jnp.float32, -bound, bound)

    return {
        "conv1_w": u(ks[0], (10, 1, 5, 5), 1 * 5 * 5),    # PyTorch OIHW layout
        "conv1_b": u(ks[1], (10,), 1 * 5 * 5),
        "conv2_w": u(ks[2], (20, 10, 5, 5), 10 * 5 * 5),
        "conv2_b": u(ks[3], (20,), 10 * 5 * 5),
        "fc1_w":  u(ks[4], (320, 50), 320),               # stored (in, out)
        "fc1_b":  u(ks[5], (50,), 320),
        "fc2_w":  u(ks[6], (50, 10), 50),
        "fc2_b":  u(ks[7], (10,), 50),
    }


def _reference_forward(params, x_nchw):
    hi = lax.Precision.HIGHEST
    dn = ("NCHW", "OIHW", "NCHW")
    x = x_nchw.astype(jnp.float32)
    y = lax.conv_general_dilated(x, params["conv1_w"], (1, 1), "VALID",
                                 dimension_numbers=dn, precision=hi)
    y = y + params["conv1_b"][None, :, None, None]
    n, c, h, w = y.shape
    y = jnp.maximum(jnp.max(y.reshape(n, c, h // 2, 2, w // 2, 2), axis=(3, 5)), 0.0)
    y = lax.conv_general_dilated(y, params["conv2_w"], (1, 1), "VALID",
                                 dimension_numbers=dn, precision=hi)
    y = y + params["conv2_b"][None, :, None, None]
    n, c, h, w = y.shape
    y = jnp.maximum(jnp.max(y.reshape(n, c, h // 2, 2, w // 2, 2), axis=(3, 5)), 0.0)
    y = y.reshape(n, 320)
    y = jnp.maximum(jnp.dot(y, params["fc1_w"], precision=hi) + params["fc1_b"], 0.0)
    y = jnp.dot(y, params["fc2_w"], precision=hi) + params["fc2_b"]
    return jax.nn.log_softmax(y, axis=1)


if __name__ == "__main__":
    key = jax.random.PRNGKey(0)
    pkey, xkey = jax.random.split(key)
    params = init_params(pkey)
    # MNIST-shaped input (spatial must be 28x28 so the flatten is 320): NCHW.
    x = jax.random.normal(xkey, (16, 1, 28, 28), jnp.float32)
    out = jax.jit(net_forward)(params, x)
    out = jax.block_until_ready(out)
    assert out.shape == (16, 10)
    assert bool(jnp.all(jnp.isfinite(out)))
    # rows of exp(log_softmax) must sum to 1
    assert bool(jnp.allclose(jnp.sum(jnp.exp(out), axis=1), 1.0, atol=1e-4))
    # numerical check against a pure-JAX f32 reference (bf16 matmul drift only)
    ref = _reference_forward(params, x)
    assert bool(jnp.allclose(out, ref, atol=0.1, rtol=0.1))
    print("KERNEL_OK")
</pallas_src>

<mosaic_0001>
module attributes {stable_mosaic.version = 11 : i64} {
  func.func @_fused_net_kernel(%arg0: i32, %arg1: memref<6144x128xbf16, #tpu.memory_space<vmem>>, %arg2: memref<128x128xbf16, #tpu.memory_space<vmem>>, %arg3: memref<1x128xf32, #tpu.memory_space<vmem>>, %arg4: memref<640x128xbf16, #tpu.memory_space<vmem>>, %arg5: memref<1x128xf32, #tpu.memory_space<vmem>>, %arg6: memref<2048x128xbf16, #tpu.memory_space<vmem>>, %arg7: memref<1x128xf32, #tpu.memory_space<vmem>>, %arg8: memref<128x128xbf16, #tpu.memory_space<vmem>>, %arg9: memref<1x128xf32, #tpu.memory_space<vmem>>, %arg10: memref<32x128xf32, #tpu.memory_space<vmem>>, %arg11: memref<1360x128xf32, #tpu.memory_space<vmem>>, %arg12: memref<96x128xf32, #tpu.memory_space<vmem>>, %arg13: memref<1536x128xf32, #tpu.memory_space<vmem>>) attributes {dimension_semantics = [#tpu.dimension_semantics<parallel>], iteration_bounds = array<i64: 1>, scalar_prefetch = 0 : i64, scratch_operands = 3 : i64, tpu.core_type = #tpu.core_type<tc>, window_params = [{transform_indices = @transform_0, window_bounds = array<i64: 6144, 128>}, {pipeline_mode = #tpu.pipeline_mode<synchronous>, transform_indices = @transform_1, window_bounds = array<i64: 128, 128>}, {pipeline_mode = #tpu.pipeline_mode<synchronous>, transform_indices = @transform_2, window_bounds = array<i64: 1, 128>}, {pipeline_mode = #tpu.pipeline_mode<synchronous>, transform_indices = @transform_3, window_bounds = array<i64: 640, 128>}, {pipeline_mode = #tpu.pipeline_mode<synchronous>, transform_indices = @transform_4, window_bounds = array<i64: 1, 128>}, {pipeline_mode = #tpu.pipeline_mode<synchronous>, transform_indices = @transform_5, window_bounds = array<i64: 2048, 128>}, {pipeline_mode = #tpu.pipeline_mode<synchronous>, transform_indices = @transform_6, window_bounds = array<i64: 1, 128>}, {pipeline_mode = #tpu.pipeline_mode<synchronous>, transform_indices = @transform_7, window_bounds = array<i64: 128, 128>}, {pipeline_mode = #tpu.pipeline_mode<synchronous>, transform_indices = @transform_8, window_bounds = array<i64: 1, 128>}, {transform_indices = @transform_9, window_bounds = array<i64: 32, 128>}]} {
    %c0 = arith.constant 0 : index
    %c0_0 = arith.constant 0 : index
    %0 = vector.load %arg2[%c0, %c0_0] : memref<128x128xbf16, #tpu.memory_space<vmem>>, vector<128x128xbf16>
    %c0_1 = arith.constant 0 : index
    %c0_2 = arith.constant 0 : index
    %1 = vector.load %arg3[%c0_1, %c0_2] : memref<1x128xf32, #tpu.memory_space<vmem>>, vector<1x128xf32>
    %c0_3 = arith.constant 0 : index
    %c0_4 = arith.constant 0 : index
    %2 = vector.load %arg5[%c0_3, %c0_4] : memref<1x128xf32, #tpu.memory_space<vmem>>, vector<1x128xf32>
    %3 = tpu.iota {dimensions = array<i32: 1>} : vector<1x128xi32>
    %c0_i32 = arith.constant 0 : i32
    %4 = vector.broadcast %c0_i32 : i32 to vector<1x128xi32>
    %5 = arith.cmpi sge, %3, %4 : vector<1x128xi32>
    %c10_i32 = arith.constant 10 : i32
    %6 = vector.broadcast %c10_i32 : i32 to vector<1x128xi32>
    %7 = arith.cmpi slt, %3, %6 : vector<1x128xi32>
    %8 = arith.andi %5, %7 : vector<1x128xi1>
    %c32_i32 = arith.constant 32 : i32
    %9 = vector.broadcast %c32_i32 : i32 to vector<1x128xi32>
    %10 = arith.cmpi sge, %3, %9 : vector<1x128xi32>
    %c42_i32 = arith.constant 42 : i32
    %11 = vector.broadcast %c42_i32 : i32 to vector<1x128xi32>
    %12 = arith.cmpi slt, %3, %11 : vector<1x128xi32>
    %13 = arith.andi %10, %12 : vector<1x128xi1>
    %c64_i32 = arith.constant 64 : i32
    %14 = vector.broadcast %c64_i32 : i32 to vector<1x128xi32>
    %15 = arith.cmpi sge, %3, %14 : vector<1x128xi32>
    %c74_i32 = arith.constant 74 : i32
    %16 = vector.broadcast %c74_i32 : i32 to vector<1x128xi32>
    %17 = arith.cmpi slt, %3, %16 : vector<1x128xi32>
    %18 = arith.andi %15, %17 : vector<1x128xi1>
    %c96_i32 = arith.constant 96 : i32
    %19 = vector.broadcast %c96_i32 : i32 to vector<1x128xi32>
    %20 = arith.cmpi sge, %3, %19 : vector<1x128xi32>
    %c106_i32 = arith.constant 106 : i32
    %21 = vector.broadcast %c106_i32 : i32 to vector<1x128xi32>
    %22 = arith.cmpi slt, %3, %21 : vector<1x128xi32>
    %23 = arith.andi %20, %22 : vector<1x128xi1>
    %c16_i32 = arith.constant 16 : i32
    %24 = vector.broadcast %c16_i32 : i32 to vector<1x128xi32>
    %25 = arith.cmpi sge, %3, %24 : vector<1x128xi32>
    %c26_i32 = arith.constant 26 : i32
    %26 = vector.broadcast %c26_i32 : i32 to vector<1x128xi32>
    %27 = arith.cmpi slt, %3, %26 : vector<1x128xi32>
    %28 = arith.andi %25, %27 : vector<1x128xi1>
    %cst = arith.constant 0.000000e+00 : f32
    %29 = vector.broadcast %cst : f32 to vector<80x128xf32>
    %c192 = arith.constant 192 : index
    %c0_5 = arith.constant 0 : index
    %30 = vector.load %arg11[%c192, %c0_5] : memref<1360x128xf32, #tpu.memory_space<vmem>>, vector<80x128xf32>
    tpu.vector_store %arg11[%c192, %c0_5], %29 {strides = array<i32>} : memref<1360x128xf32, #tpu.memory_space<vmem>>, vector<80x128xf32>,
    %cst_6 = arith.constant 0.000000e+00 : f32
    %31 = vector.broadcast %cst_6 : f32 to vector<80x128xf32>
    %c464 = arith.constant 464 : index
    %c0_7 = arith.constant 0 : index
    %32 = vector.load %arg11[%c464, %c0_7] : memref<1360x128xf32, #tpu.memory_space<vmem>>, vector<80x128xf32>
    tpu.vector_store %arg11[%c464, %c0_7], %31 {strides = array<i32>} : memref<1360x128xf32, #tpu.memory_space<vmem>>, vector<80x128xf32>,
    %cst_8 = arith.constant 0.000000e+00 : f32
    %33 = vector.broadcast %cst_8 : f32 to vector<80x128xf32>
    %c736 = arith.constant 736 : index
    %c0_9 = arith.constant 0 : index
    %34 = vector.load %arg11[%c736, %c0_9] : memref<1360x128xf32, #tpu.memory_space<vmem>>, vector<80x128xf32>
    tpu.vector_store %arg11[%c736, %c0_9], %33 {strides = array<i32>} : memref<1360x128xf32, #tpu.memory_space<vmem>>, vector<80x128xf32>,
    %cst_10 = arith.constant 0.000000e+00 : f32
    %35 = vector.broadcast %cst_10 : f32 to vector<80x128xf32>
    %c1008 = arith.constant 1008 : index
    %c0_11 = arith.constant 0 : index
    %36 = vector.load %arg11[%c1008, %c0_11] : memref<1360x128xf32, #tpu.memory_space<vmem>>, vector<80x128xf32>
    tpu.vector_store %arg11[%c1008, %c0_11], %35 {strides = array<i32>} : memref<1360x128xf32, #tpu.memory_space<vmem>>, vector<80x128xf32>,
    %cst_12 = arith.constant 0.000000e+00 : f32
    %37 = vector.broadcast %cst_12 : f32 to vector<80x128xf32>
    %c1280 = arith.constant 1280 : index
    %c0_13 = arith.constant 0 : index
    %38 = vector.load %arg11[%c1280, %c0_13] : memref<1360x128xf32, #tpu.memory_space<vmem>>, vector<80x128xf32>
    tpu.vector_store %arg11[%c1280, %c0_13], %37 {strides = array<i32>} : memref<1360x128xf32, #tpu.memory_space<vmem>>, vector<80x128xf32>,
    %c0_i32_14 = arith.constant 0 : i32
    %c32_i32_15 = arith.constant 32 : i32
    %39 = arith.addi %c0_i32_14, %c32_i32_15 : i32
    %c1_i32 = arith.constant 1 : i32
    scf.for %arg14 = %c0_i32_14 to %39 step %c1_i32  : i32 {
      %c1_i32_83 = arith.constant 1 : i32
      %149 = arith.muli %arg14, %c1_i32_83 : i32
      %c0_i32_84 = arith.constant 0 : i32
      %150 = arith.addi %c0_i32_84, %149 : i32
      %c192_i32 = arith.constant 192 : i32
      %151 = arith.muli %150, %c192_i32 : i32
      %152 = tpu.assume_multiple %151, 8 : i32
      %153 = arith.index_cast %152 : i32 to index
      %c0_85 = arith.constant 0 : index
      %154 = vector.load %arg1[%153, %c0_85] : memref<6144x128xbf16, #tpu.memory_space<vmem>>, vector<192x128xbf16>
      %cst_86 = arith.constant dense<0.000000e+00> : vector<192x128xf32>
      %155 = tpu.matmul %154, %0, %cst_86 {dimension_numbers = #tpu.dot_dimension_numbers<[1], [0], [0], [1], [0, 0, 1, 1], [], []>} : vector<192x128xbf16>, vector<128x128xbf16>, vector<192x128xf32> -> vector<192x128xf32>
      %c32_i32_87 = arith.constant 32 : i32
      %156 = tpu.dynamic_rotate %155 by %c32_i32_87 dim 1 : vector<192x128xf32>, i32 -> vector<192x128xf32>
      %157 = arith.maximumf %155, %156 : vector<192x128xf32>
      %c64_i32_88 = arith.constant 64 : i32
      %158 = tpu.dynamic_rotate %155 by %c64_i32_88 dim 1 : vector<192x128xf32>, i32 -> vector<192x128xf32>
      %c96_i32_89 = arith.constant 96 : i32
      %159 = tpu.dynamic_rotate %155 by %c96_i32_89 dim 1 : vector<192x128xf32>, i32 -> vector<192x128xf32>
      %160 = arith.maximumf %158, %159 : vector<192x128xf32>
      %161 = arith.maximumf %157, %160 : vector<192x128xf32>
      %162 = vector.broadcast %1 : vector<1x128xf32> to vector<192x128xf32>
      %163 = arith.addf %161, %162 : vector<192x128xf32>
      %cst_90 = arith.constant 0.000000e+00 : f32
      %164 = vector.broadcast %cst_90 : f32 to vector<192x128xf32>
      %165 = arith.maximumf %163, %164 : vector<192x128xf32>
      %cst_91 = arith.constant 0.000000e+00 : f32
      %166 = vector.shape_cast %8 : vector<1x128xi1> to vector<1x128xi1>
      %167 = vector.broadcast %166 : vector<1x128xi1> to vector<192x128xi1>
      %168 = vector.broadcast %cst_91 : f32 to vector<192x128xf32>
      %169 = arith.select %167, %165, %168 : vector<192x128xi1>, vector<192x128xf32>
      %c0_92 = arith.constant 0 : index
      %c0_93 = arith.constant 0 : index
      %170 = vector.load %arg11[%c0_92, %c0_93] : memref<1360x128xf32, #tpu.memory_space<vmem>>, vector<192x128xf32>
      tpu.vector_store %arg11[%c0_92, %c0_93], %169 {strides = array<i32>} : memref<1360x128xf32, #tpu.memory_space<vmem>>, vector<192x128xf32>,
      %cst_94 = arith.constant 0.000000e+00 : f32
      %171 = vector.shape_cast %13 : vector<1x128xi1> to vector<1x128xi1>
      %172 = vector.broadcast %171 : vector<1x128xi1> to vector<192x128xi1>
      %173 = vector.broadcast %cst_94 : f32 to vector<192x128xf32>
      %174 = arith.select %172, %165, %173 : vector<192x128xi1>, vector<192x128xf32>
      %c272 = arith.constant 272 : index
      %c0_95 = arith.constant 0 : index
      %175 = vector.load %arg11[%c272, %c0_95] : memref<1360x128xf32, #tpu.memory_space<vmem>>, vector<192x128xf32>
      tpu.vector_store %arg11[%c272, %c0_95], %174 {strides = array<i32>} : memref<1360x128xf32, #tpu.memory_space<vmem>>, vector<192x128xf32>,
      %cst_96 = arith.constant 0.000000e+00 : f32
      %176 = vector.shape_cast %18 : vector<1x128xi1> to vector<1x128xi1>
      %177 = vector.broadcast %176 : vector<1x128xi1> to vector<192x128xi1>
      %178 = vector.broadcast %cst_96 : f32 to vector<192x128xf32>
      %179 = arith.select %177, %165, %178 : vector<192x128xi1>, vector<192x128xf32>
      %c544 = arith.constant 544 : index
      %c0_97 = arith.constant 0 : index
      %180 = vector.load %arg11[%c544, %c0_97] : memref<1360x128xf32, #tpu.memory_space<vmem>>, vector<192x128xf32>
      tpu.vector_store %arg11[%c544, %c0_97], %179 {strides = array<i32>} : memref<1360x128xf32, #tpu.memory_space<vmem>>, vector<192x128xf32>,
      %cst_98 = arith.constant 0.000000e+00 : f32
      %181 = vector.shape_cast %23 : vector<1x128xi1> to vector<1x128xi1>
      %182 = vector.broadcast %181 : vector<1x128xi1> to vector<192x128xi1>
      %183 = vector.broadcast %cst_98 : f32 to vector<192x128xf32>
      %184 = arith.select %182, %165, %183 : vector<192x128xi1>, vector<192x128xf32>
      %c816 = arith.constant 816 : index
      %c0_99 = arith.constant 0 : index
      %185 = vector.load %arg11[%c816, %c0_99] : memref<1360x128xf32, #tpu.memory_space<vmem>>, vector<192x128xf32>
      tpu.vector_store %arg11[%c816, %c0_99], %184 {strides = array<i32>} : memref<1360x128xf32, #tpu.memory_space<vmem>>, vector<192x128xf32>,
      %c16_i32_100 = arith.constant 16 : i32
      %186 = tpu.dynamic_rotate %165 by %c16_i32_100 dim 1 : vector<192x128xf32>, i32 -> vector<192x128xf32>
      %cst_101 = arith.constant 0.000000e+00 : f32
      %187 = vector.shape_cast %28 : vector<1x128xi1> to vector<1x128xi1>
      %188 = vector.broadcast %187 : vector<1x128xi1> to vector<192x128xi1>
      %189 = vector.broadcast %cst_101 : f32 to vector<192x128xf32>
      %190 = arith.select %188, %186, %189 : vector<192x128xi1>, vector<192x128xf32>
      %c1088 = arith.constant 1088 : index
      %c0_102 = arith.constant 0 : index
      %191 = vector.load %arg11[%c1088, %c0_102] : memref<1360x128xf32, #tpu.memory_space<vmem>>, vector<192x128xf32>
      tpu.vector_store %arg11[%c1088, %c0_102], %190 {strides = array<i32>} : memref<1360x128xf32, #tpu.memory_space<vmem>>, vector<192x128xf32>,
      %c0_103 = arith.constant 0 : index
      %c0_104 = arith.constant 0 : index
      %192 = vector.load %arg11[%c0_103, %c0_104] : memref<1360x128xf32, #tpu.memory_space<vmem>>, vector<192x128xf32>
      %c273 = arith.constant 273 : index
      %c0_105 = arith.constant 0 : index
      %193 = vector.load %arg11[%c273, %c0_105] : memref<1360x128xf32, #tpu.memory_space<vmem>>, vector<192x128xf32>
      %194 = arith.addf %192, %193 : vector<192x128xf32>
      %c546 = arith.constant 546 : index
      %c0_106 = arith.constant 0 : index
      %195 = vector.load %arg11[%c546, %c0_106] : memref<1360x128xf32, #tpu.memory_space<vmem>>, vector<192x128xf32>
      %196 = arith.addf %194, %195 : vector<192x128xf32>
      %c819 = arith.constant 819 : index
      %c0_107 = arith.constant 0 : index
      %197 = vector.load %arg11[%c819, %c0_107] : memref<1360x128xf32, #tpu.memory_space<vmem>>, vector<192x128xf32>
      %198 = arith.addf %196, %197 : vector<192x128xf32>
      %c1092 = arith.constant 1092 : index
      %c0_108 = arith.constant 0 : index
      %199 = vector.load %arg11[%c1092, %c0_108] : memref<1360x128xf32, #tpu.memory_space<vmem>>, vector<192x128xf32>
      %200 = arith.addf %198, %199 : vector<192x128xf32>
      %201 = arith.truncf %200 : vector<192x128xf32> to vector<192x128xbf16>
      %c16_109 = arith.constant 16 : index
      %c0_110 = arith.constant 0 : index
      %202 = vector.load %arg11[%c16_109, %c0_110] : memref<1360x128xf32, #tpu.memory_space<vmem>>, vector<192x128xf32>
      %c289 = arith.constant 289 : index
      %c0_111 = arith.constant 0 : index
      %203 = vector.load %arg11[%c289, %c0_111] : memref<1360x128xf32, #tpu.memory_space<vmem>>, vector<192x128xf32>
      %204 = arith.addf %202, %203 : vector<192x128xf32>
      %c562 = arith.constant 562 : index
      %c0_112 = arith.constant 0 : index
      %205 = vector.load %arg11[%c562, %c0_112] : memref<1360x128xf32, #tpu.memory_space<vmem>>, vector<192x128xf32>
      %206 = arith.addf %204, %205 : vector<192x128xf32>
      %c835 = arith.constant 835 : index
      %c0_113 = arith.constant 0 : index
      %207 = vector.load %arg11[%c835, %c0_113] : memref<1360x128xf32, #tpu.memory_space<vmem>>, vector<192x128xf32>
      %208 = arith.addf %206, %207 : vector<192x128xf32>
      %c1108 = arith.constant 1108 : index
      %c0_114 = arith.constant 0 : index
      %209 = vector.load %arg11[%c1108, %c0_114] : memref<1360x128xf32, #tpu.memory_space<vmem>>, vector<192x128xf32>
      %210 = arith.addf %208, %209 : vector<192x128xf32>
      %211 = arith.truncf %210 : vector<192x128xf32> to vector<192x128xbf16>
      %212 = tpu.concatenate %201, %211 in 1 : vector<192x128xbf16>, vector<192x128xbf16> -> vector<192x256xbf16>
      %c0_115 = arith.constant 0 : index
      %c0_116 = arith.constant 0 : index
      %213 = vector.load %arg4[%c0_115, %c0_116] : memref<640x128xbf16, #tpu.memory_space<vmem>>, vector<256x128xbf16>
      %cst_117 = arith.constant dense<0.000000e+00> : vector<192x128xf32>
      %214 = tpu.matmul %212, %213, %cst_117 {dimension_numbers = #tpu.dot_dimension_numbers<[1], [0], [0], [1], [0, 0, 1, 1], [], []>} : vector<192x256xbf16>, vector<256x128xbf16>, vector<192x128xf32> -> vector<192x128xf32>
      %c32 = arith.constant 32 : index
      %c0_118 = arith.constant 0 : index
      %215 = vector.load %arg11[%c32, %c0_118] : memref<1360x128xf32, #tpu.memory_space<vmem>>, vector<192x128xf32>
      %c305 = arith.constant 305 : index
      %c0_119 = arith.constant 0 : index
      %216 = vector.load %arg11[%c305, %c0_119] : memref<1360x128xf32, #tpu.memory_space<vmem>>, vector<192x128xf32>
      %217 = arith.addf %215, %216 : vector<192x128xf32>
      %c578 = arith.constant 578 : index
      %c0_120 = arith.constant 0 : index
      %218 = vector.load %arg11[%c578, %c0_120] : memref<1360x128xf32, #tpu.memory_space<vmem>>, vector<192x128xf32>
      %219 = arith.addf %217, %218 : vector<192x128xf32>
      %c851 = arith.constant 851 : index
      %c0_121 = arith.constant 0 : index
      %220 = vector.load %arg11[%c851, %c0_121] : memref<1360x128xf32, #tpu.memory_space<vmem>>, vector<192x128xf32>
      %221 = arith.addf %219, %220 : vector<192x128xf32>
      %c1124 = arith.constant 1124 : index
      %c0_122 = arith.constant 0 : index
      %222 = vector.load %arg11[%c1124, %c0_122] : memref<1360x128xf32, #tpu.memory_space<vmem>>, vector<192x128xf32>
      %223 = arith.addf %221, %222 : vector<192x128xf32>
      %224 = arith.truncf %223 : vector<192x128xf32> to vector<192x128xbf16>
      %c48 = arith.constant 48 : index
      %c0_123 = arith.constant 0 : index
      %225 = vector.load %arg11[%c48, %c0_123] : memref<1360x128xf32, #tpu.memory_space<vmem>>, vector<192x128xf32>
      %c321 = arith.constant 321 : index
      %c0_124 = arith.constant 0 : index
      %226 = vector.load %arg11[%c321, %c0_124] : memref<1360x128xf32, #tpu.memory_space<vmem>>, vector<192x128xf32>
      %227 = arith.addf %225, %226 : vector<192x128xf32>
      %c594 = arith.constant 594 : index
      %c0_125 = arith.constant 0 : index
      %228 = vector.load %arg11[%c594, %c0_125] : memref<1360x128xf32, #tpu.memory_space<vmem>>, vector<192x128xf32>
      %229 = arith.addf %227, %228 : vector<192x128xf32>
      %c867 = arith.constant 867 : index
      %c0_126 = arith.constant 0 : index
      %230 = vector.load %arg11[%c867, %c0_126] : memref<1360x128xf32, #tpu.memory_space<vmem>>, vector<192x128xf32>
      %231 = arith.addf %229, %230 : vector<192x128xf32>
      %c1140 = arith.constant 1140 : index
      %c0_127 = arith.constant 0 : index
      %232 = vector.load %arg11[%c1140, %c0_127] : memref<1360x128xf32, #tpu.memory_space<vmem>>, vector<192x128xf32>
      %233 = arith.addf %231, %232 : vector<192x128xf32>
      %234 = arith.truncf %233 : vector<192x128xf32> to vector<192x128xbf16>
      %235 = tpu.concatenate %224, %234 in 1 : vector<192x128xbf16>, vector<192x128xbf16> -> vector<192x256xbf16>
      %c256_128 = arith.constant 256 : index
      %c0_129 = arith.constant 0 : index
      %236 = vector.load %arg4[%c256_128, %c0_129] : memref<640x128xbf16, #tpu.memory_space<vmem>>, vector<256x128xbf16>
      %cst_130 = arith.constant dense<0.000000e+00> : vector<192x128xf32>
      %237 = tpu.matmul %235, %236, %cst_130 {dimension_numbers = #tpu.dot_dimension_numbers<[1], [0], [0], [1], [0, 0, 1, 1], [], []>} : vector<192x256xbf16>, vector<256x128xbf16>, vector<192x128xf32> -> vector<192x128xf32>
      %238 = arith.addf %214, %237 : vector<192x128xf32>
      %c64 = arith.constant 64 : index
      %c0_131 = arith.constant 0 : index
      %239 = vector.load %arg11[%c64, %c0_131] : memref<1360x128xf32, #tpu.memory_space<vmem>>, vector<192x128xf32>
      %c337 = arith.constant 337 : index
      %c0_132 = arith.constant 0 : index
      %240 = vector.load %arg11[%c337, %c0_132] : memref<1360x128xf32, #tpu.memory_space<vmem>>, vector<192x128xf32>
      %241 = arith.addf %239, %240 : vector<192x128xf32>
      %c610 = arith.constant 610 : index
      %c0_133 = arith.constant 0 : index
      %242 = vector.load %arg11[%c610, %c0_133] : memref<1360x128xf32, #tpu.memory_space<vmem>>, vector<192x128xf32>
      %243 = arith.addf %241, %242 : vector<192x128xf32>
      %c883 = arith.constant 883 : index
      %c0_134 = arith.constant 0 : index
      %244 = vector.load %arg11[%c883, %c0_134] : memref<1360x128xf32, #tpu.memory_space<vmem>>, vector<192x128xf32>
      %245 = arith.addf %243, %244 : vector<192x128xf32>
      %c1156 = arith.constant 1156 : index
      %c0_135 = arith.constant 0 : index
      %246 = vector.load %arg11[%c1156, %c0_135] : memref<1360x128xf32, #tpu.memory_space<vmem>>, vector<192x128xf32>
      %247 = arith.addf %245, %246 : vector<192x128xf32>
      %248 = arith.truncf %247 : vector<192x128xf32> to vector<192x128xbf16>
      %c512_136 = arith.constant 512 : index
      %c0_137 = arith.constant 0 : index
      %249 = vector.load %arg4[%c512_136, %c0_137] : memref<640x128xbf16, #tpu.memory_space<vmem>>, vector<128x128xbf16>
      %cst_138 = arith.constant dense<0.000000e+00> : vector<192x128xf32>
      %250 = tpu.matmul %248, %249, %cst_138 {dimension_numbers = #tpu.dot_dimension_numbers<[1], [0], [0], [1], [0, 0, 1, 1], [], []>} : vector<192x128xbf16>, vector<128x128xbf16>, vector<192x128xf32> -> vector<192x128xf32>
      %251 = arith.addf %238, %250 : vector<192x128xf32>
      %252 = vector.broadcast %2 : vector<1x128xf32> to vector<192x128xf32>
      %253 = arith.addf %251, %252 : vector<192x128xf32>
      %254 = vector.shape_cast %253 : vector<192x128xf32> to vector<6x2x16x128xf32>
      %cst_139 = arith.constant dense<0xFF800000> : vector<6x16x128xf32>
      %255 = vector.multi_reduction <maximumf>, %254, %cst_139 [1] : vector<6x2x16x128xf32> to vector<6x16x128xf32>
      %256 = vector.shape_cast %255 : vector<6x16x128xf32> to vector<96x128xf32>
      %c0_140 = arith.constant 0 : index
      %c0_141 = arith.constant 0 : index
      %257 = vector.load %arg12[%c0_140, %c0_141] : memref<96x128xf32, #tpu.memory_space<vmem>>, vector<96x128xf32>
      tpu.vector_store %arg12[%c0_140, %c0_141], %256 {strides = array<i32>} : memref<96x128xf32, #tpu.memory_space<vmem>>, vector<96x128xf32>,
      %c0_142 = arith.constant 0 : index
      %c0_143 = arith.constant 0 : index
      %258 = tpu.strided_load %arg12[%c0_142, %c0_143] {strides = array<i32: 2, 1>} : memref<96x128xf32, #tpu.memory_space<vmem>>, vector<48x128xf32>
      %c1_144 = arith.constant 1 : index
      %c0_145 = arith.constant 0 : index
      %259 = tpu.strided_load %arg12[%c1_144, %c0_145] {strides = array<i32: 2, 1>} : memref<96x128xf32, #tpu.memory_space<vmem>>, vector<48x128xf32>
      %260 = arith.maximumf %258, %259 : vector<48x128xf32>
      %cst_146 = arith.constant 0.000000e+00 : f32
      %261 = vector.broadcast %cst_146 : f32 to vector<48x128xf32>
      %262 = arith.maximumf %260, %261 : vector<48x128xf32>
      %c48_i32 = arith.constant 48 : i32
      %263 = arith.muli %150, %c48_i32 : i32
      %264 = tpu.assume_multiple %263, 8 : i32
      %265 = arith.index_cast %264 : i32 to index
      %c0_147 = arith.constant 0 : index
      %266 = vector.load %arg13[%265, %c0_147] : memref<1536x128xf32, #tpu.memory_space<vmem>>, vector<48x128xf32>
      tpu.vector_store %arg13[%265, %c0_147], %262 {strides = array<i32>} : memref<1536x128xf32, #tpu.memory_space<vmem>>, vector<48x128xf32>,
    }
    %c32_i32_16 = arith.constant 32 : i32
    %cst_17 = arith.constant 0.000000e+00 : f32
    %40 = vector.broadcast %cst_17 : f32 to vector<32x128xf32>
    %c0_18 = arith.constant 0 : index
    %c0_19 = arith.constant 0 : index
    %41 = tpu.strided_load %arg13[%c0_18, %c0_19] {strides = array<i32: 48, 1>} : memref<1536x128xf32, #tpu.memory_space<vmem>>, vector<32x128xf32>
    %42 = arith.truncf %41 : vector<32x128xf32> to vector<32x128xbf16>
    %c0_20 = arith.constant 0 : index
    %c0_21 = arith.constant 0 : index
    %43 = vector.load %arg6[%c0_20, %c0_21] : memref<2048x128xbf16, #tpu.memory_space<vmem>>, vector<128x128xbf16>
    %cst_22 = arith.constant dense<0.000000e+00> : vector<32x128xf32>
    %44 = tpu.matmul %42, %43, %cst_22 {dimension_numbers = #tpu.dot_dimension_numbers<[1], [0], [0], [1], [0, 0, 1, 1], [], []>} : vector<32x128xbf16>, vector<128x128xbf16>, vector<32x128xf32> -> vector<32x128xf32>
    %45 = arith.addf %40, %44 : vector<32x128xf32>
    %c1 = arith.constant 1 : index
    %c0_23 = arith.constant 0 : index
    %46 = tpu.strided_load %arg13[%c1, %c0_23] {strides = array<i32: 48, 1>} : memref<1536x128xf32, #tpu.memory_space<vmem>>, vector<32x128xf32>
    %47 = arith.truncf %46 : vector<32x128xf32> to vector<32x128xbf16>
    %c128 = arith.constant 128 : index
    %c0_24 = arith.constant 0 : index
    %48 = vector.load %arg6[%c128, %c0_24] : memref<2048x128xbf16, #tpu.memory_space<vmem>>, vector<128x128xbf16>
    %cst_25 = arith.constant dense<0.000000e+00> : vector<32x128xf32>
    %49 = tpu.matmul %47, %48, %cst_25 {dimension_numbers = #tpu.dot_dimension_numbers<[1], [0], [0], [1], [0, 0, 1, 1], [], []>} : vector<32x128xbf16>, vector<128x128xbf16>, vector<32x128xf32> -> vector<32x128xf32>
    %50 = arith.addf %45, %49 : vector<32x128xf32>
    %c2 = arith.constant 2 : index
    %c0_26 = arith.constant 0 : index
    %51 = tpu.strided_load %arg13[%c2, %c0_26] {strides = array<i32: 48, 1>} : memref<1536x128xf32, #tpu.memory_space<vmem>>, vector<32x128xf32>
    %52 = arith.truncf %51 : vector<32x128xf32> to vector<32x128xbf16>
    %c256 = arith.constant 256 : index
    %c0_27 = arith.constant 0 : index
    %53 = vector.load %arg6[%c256, %c0_27] : memref<2048x128xbf16, #tpu.memory_space<vmem>>, vector<128x128xbf16>
    %cst_28 = arith.constant dense<0.000000e+00> : vector<32x128xf32>
    %54 = tpu.matmul %52, %53, %cst_28 {dimension_numbers = #tpu.dot_dimension_numbers<[1], [0], [0], [1], [0, 0, 1, 1], [], []>} : vector<32x128xbf16>, vector<128x128xbf16>, vector<32x128xf32> -> vector<32x128xf32>
    %55 = arith.addf %50, %54 : vector<32x128xf32>
    %c3 = arith.constant 3 : index
    %c0_29 = arith.constant 0 : index
    %56 = tpu.strided_load %arg13[%c3, %c0_29] {strides = array<i32: 48, 1>} : memref<1536x128xf32, #tpu.memory_space<vmem>>, vector<32x128xf32>
    %57 = arith.truncf %56 : vector<32x128xf32> to vector<32x128xbf16>
    %c384 = arith.constant 384 : index
    %c0_30 = arith.constant 0 : index
    %58 = vector.load %arg6[%c384, %c0_30] : memref<2048x128xbf16, #tpu.memory_space<vmem>>, vector<128x128xbf16>
    %cst_31 = arith.constant dense<0.000000e+00> : vector<32x128xf32>
    %59 = tpu.matmul %57, %58, %cst_31 {dimension_numbers = #tpu.dot_dimension_numbers<[1], [0], [0], [1], [0, 0, 1, 1], [], []>} : vector<32x128xbf16>, vector<128x128xbf16>, vector<32x128xf32> -> vector<32x128xf32>
    %60 = arith.addf %55, %59 : vector<32x128xf32>
    %c8 = arith.constant 8 : index
    %c0_32 = arith.constant 0 : index
    %61 = tpu.strided_load %arg13[%c8, %c0_32] {strides = array<i32: 48, 1>} : memref<1536x128xf32, #tpu.memory_space<vmem>>, vector<32x128xf32>
    %62 = arith.truncf %61 : vector<32x128xf32> to vector<32x128xbf16>
    %c512 = arith.constant 512 : index
    %c0_33 = arith.constant 0 : index
    %63 = vector.load %arg6[%c512, %c0_33] : memref<2048x128xbf16, #tpu.memory_space<vmem>>, vector<128x128xbf16>
    %cst_34 = arith.constant dense<0.000000e+00> : vector<32x128xf32>
    %64 = tpu.matmul %62, %63, %cst_34 {dimension_numbers = #tpu.dot_dimension_numbers<[1], [0], [0], [1], [0, 0, 1, 1], [], []>} : vector<32x128xbf16>, vector<128x128xbf16>, vector<32x128xf32> -> vector<32x128xf32>
    %65 = arith.addf %60, %64 : vector<32x128xf32>
    %c9 = arith.constant 9 : index
    %c0_35 = arith.constant 0 : index
    %66 = tpu.strided_load %arg13[%c9, %c0_35] {strides = array<i32: 48, 1>} : memref<1536x128xf32, #tpu.memory_space<vmem>>, vector<32x128xf32>
    %67 = arith.truncf %66 : vector<32x128xf32> to vector<32x128xbf16>
    %c640 = arith.constant 640 : index
    %c0_36 = arith.constant 0 : index
    %68 = vector.load %arg6[%c640, %c0_36] : memref<2048x128xbf16, #tpu.memory_space<vmem>>, vector<128x128xbf16>
    %cst_37 = arith.constant dense<0.000000e+00> : vector<32x128xf32>
    %69 = tpu.matmul %67, %68, %cst_37 {dimension_numbers = #tpu.dot_dimension_numbers<[1], [0], [0], [1], [0, 0, 1, 1], [], []>} : vector<32x128xbf16>, vector<128x128xbf16>, vector<32x128xf32> -> vector<32x128xf32>
    %70 = arith.addf %65, %69 : vector<32x128xf32>
    %c10 = arith.constant 10 : index
    %c0_38 = arith.constant 0 : index
    %71 = tpu.strided_load %arg13[%c10, %c0_38] {strides = array<i32: 48, 1>} : memref<1536x128xf32, #tpu.memory_space<vmem>>, vector<32x128xf32>
    %72 = arith.truncf %71 : vector<32x128xf32> to vector<32x128xbf16>
    %c768 = arith.constant 768 : index
    %c0_39 = arith.constant 0 : index
    %73 = vector.load %arg6[%c768, %c0_39] : memref<2048x128xbf16, #tpu.memory_space<vmem>>, vector<128x128xbf16>
    %cst_40 = arith.constant dense<0.000000e+00> : vector<32x128xf32>
    %74 = tpu.matmul %72, %73, %cst_40 {dimension_numbers = #tpu.dot_dimension_numbers<[1], [0], [0], [1], [0, 0, 1, 1], [], []>} : vector<32x128xbf16>, vector<128x128xbf16>, vector<32x128xf32> -> vector<32x128xf32>
    %75 = arith.addf %70, %74 : vector<32x128xf32>
    %c11 = arith.constant 11 : index
    %c0_41 = arith.constant 0 : index
    %76 = tpu.strided_load %arg13[%c11, %c0_41] {strides = array<i32: 48, 1>} : memref<1536x128xf32, #tpu.memory_space<vmem>>, vector<32x128xf32>
    %77 = arith.truncf %76 : vector<32x128xf32> to vector<32x128xbf16>
    %c896 = arith.constant 896 : index
    %c0_42 = arith.constant 0 : index
    %78 = vector.load %arg6[%c896, %c0_42] : memref<2048x128xbf16, #tpu.memory_space<vmem>>, vector<128x128xbf16>
    %cst_43 = arith.constant dense<0.000000e+00> : vector<32x128xf32>
    %79 = tpu.matmul %77, %78, %cst_43 {dimension_numbers = #tpu.dot_dimension_numbers<[1], [0], [0], [1], [0, 0, 1, 1], [], []>} : vector<32x128xbf16>, vector<128x128xbf16>, vector<32x128xf32> -> vector<32x128xf32>
    %80 = arith.addf %75, %79 : vector<32x128xf32>
    %c16 = arith.constant 16 : index
    %c0_44 = arith.constant 0 : index
    %81 = tpu.strided_load %arg13[%c16, %c0_44] {strides = array<i32: 48, 1>} : memref<1536x128xf32, #tpu.memory_space<vmem>>, vector<32x128xf32>
    %82 = arith.truncf %81 : vector<32x128xf32> to vector<32x128xbf16>
    %c1024 = arith.constant 1024 : index
    %c0_45 = arith.constant 0 : index
    %83 = vector.load %arg6[%c1024, %c0_45] : memref<2048x128xbf16, #tpu.memory_space<vmem>>, vector<128x128xbf16>
    %cst_46 = arith.constant dense<0.000000e+00> : vector<32x128xf32>
    %84 = tpu.matmul %82, %83, %cst_46 {dimension_numbers = #tpu.dot_dimension_numbers<[1], [0], [0], [1], [0, 0, 1, 1], [], []>} : vector<32x128xbf16>, vector<128x128xbf16>, vector<32x128xf32> -> vector<32x128xf32>
    %85 = arith.addf %80, %84 : vector<32x128xf32>
    %c17 = arith.constant 17 : index
    %c0_47 = arith.constant 0 : index
    %86 = tpu.strided_load %arg13[%c17, %c0_47] {strides = array<i32: 48, 1>} : memref<1536x128xf32, #tpu.memory_space<vmem>>, vector<32x128xf32>
    %87 = arith.truncf %86 : vector<32x128xf32> to vector<32x128xbf16>
    %c1152 = arith.constant 1152 : index
    %c0_48 = arith.constant 0 : index
    %88 = vector.load %arg6[%c1152, %c0_48] : memref<2048x128xbf16, #tpu.memory_space<vmem>>, vector<128x128xbf16>
    %cst_49 = arith.constant dense<0.000000e+00> : vector<32x128xf32>
    %89 = tpu.matmul %87, %88, %cst_49 {dimension_numbers = #tpu.dot_dimension_numbers<[1], [0], [0], [1], [0, 0, 1, 1], [], []>} : vector<32x128xbf16>, vector<128x128xbf16>, vector<32x128xf32> -> vector<32x128xf32>
    %90 = arith.addf %85, %89 : vector<32x128xf32>
    %c18 = arith.constant 18 : index
    %c0_50 = arith.constant 0 : index
    %91 = tpu.strided_load %arg13[%c18, %c0_50] {strides = array<i32: 48, 1>} : memref<1536x128xf32, #tpu.memory_space<vmem>>, vector<32x128xf32>
    %92 = arith.truncf %91 : vector<32x128xf32> to vector<32x128xbf16>
    %c1280_51 = arith.constant 1280 : index
    %c0_52 = arith.constant 0 : index
    %93 = vector.load %arg6[%c1280_51, %c0_52] : memref<2048x128xbf16, #tpu.memory_space<vmem>>, vector<128x128xbf16>
    %cst_53 = arith.constant dense<0.000000e+00> : vector<32x128xf32>
    %94 = tpu.matmul %92, %93, %cst_53 {dimension_numbers = #tpu.dot_dimension_numbers<[1], [0], [0], [1], [0, 0, 1, 1], [], []>} : vector<32x128xbf16>, vector<128x128xbf16>, vector<32x128xf32> -> vector<32x128xf32>
    %95 = arith.addf %90, %94 : vector<32x128xf32>
    %c19 = arith.constant 19 : index
    %c0_54 = arith.constant 0 : index
    %96 = tpu.strided_load %arg13[%c19, %c0_54] {strides = array<i32: 48, 1>} : memref<1536x128xf32, #tpu.memory_space<vmem>>, vector<32x128xf32>
    %97 = arith.truncf %96 : vector<32x128xf32> to vector<32x128xbf16>
    %c1408 = arith.constant 1408 : index
    %c0_55 = arith.constant 0 : index
    %98 = vector.load %arg6[%c1408, %c0_55] : memref<2048x128xbf16, #tpu.memory_space<vmem>>, vector<128x128xbf16>
    %cst_56 = arith.constant dense<0.000000e+00> : vector<32x128xf32>
    %99 = tpu.matmul %97, %98, %cst_56 {dimension_numbers = #tpu.dot_dimension_numbers<[1], [0], [0], [1], [0, 0, 1, 1], [], []>} : vector<32x128xbf16>, vector<128x128xbf16>, vector<32x128xf32> -> vector<32x128xf32>
    %100 = arith.addf %95, %99 : vector<32x128xf32>
    %c24 = arith.constant 24 : index
    %c0_57 = arith.constant 0 : index
    %101 = tpu.strided_load %arg13[%c24, %c0_57] {strides = array<i32: 48, 1>} : memref<1536x128xf32, #tpu.memory_space<vmem>>, vector<32x128xf32>
    %102 = arith.truncf %101 : vector<32x128xf32> to vector<32x128xbf16>
    %c1536 = arith.constant 1536 : index
    %c0_58 = arith.constant 0 : index
    %103 = vector.load %arg6[%c1536, %c0_58] : memref<2048x128xbf16, #tpu.memory_space<vmem>>, vector<128x128xbf16>
    %cst_59 = arith.constant dense<0.000000e+00> : vector<32x128xf32>
    %104 = tpu.matmul %102, %103, %cst_59 {dimension_numbers = #tpu.dot_dimension_numbers<[1], [0], [0], [1], [0, 0, 1, 1], [], []>} : vector<32x128xbf16>, vector<128x128xbf16>, vector<32x128xf32> -> vector<32x128xf32>
    %105 = arith.addf %100, %104 : vector<32x128xf32>
    %c25 = arith.constant 25 : index
    %c0_60 = arith.constant 0 : index
    %106 = tpu.strided_load %arg13[%c25, %c0_60] {strides = array<i32: 48, 1>} : memref<1536x128xf32, #tpu.memory_space<vmem>>, vector<32x128xf32>
    %107 = arith.truncf %106 : vector<32x128xf32> to vector<32x128xbf16>
    %c1664 = arith.constant 1664 : index
    %c0_61 = arith.constant 0 : index
    %108 = vector.load %arg6[%c1664, %c0_61] : memref<2048x128xbf16, #tpu.memory_space<vmem>>, vector<128x128xbf16>
    %cst_62 = arith.constant dense<0.000000e+00> : vector<32x128xf32>
    %109 = tpu.matmul %107, %108, %cst_62 {dimension_numbers = #tpu.dot_dimension_numbers<[1], [0], [0], [1], [0, 0, 1, 1], [], []>} : vector<32x128xbf16>, vector<128x128xbf16>, vector<32x128xf32> -> vector<32x128xf32>
    %110 = arith.addf %105, %109 : vector<32x128xf32>
    %c26 = arith.constant 26 : index
    %c0_63 = arith.constant 0 : index
    %111 = tpu.strided_load %arg13[%c26, %c0_63] {strides = array<i32: 48, 1>} : memref<1536x128xf32, #tpu.memory_space<vmem>>, vector<32x128xf32>
    %112 = arith.truncf %111 : vector<32x128xf32> to vector<32x128xbf16>
    %c1792 = arith.constant 1792 : index
    %c0_64 = arith.constant 0 : index
    %113 = vector.load %arg6[%c1792, %c0_64] : memref<2048x128xbf16, #tpu.memory_space<vmem>>, vector<128x128xbf16>
    %cst_65 = arith.constant dense<0.000000e+00> : vector<32x128xf32>
    %114 = tpu.matmul %112, %113, %cst_65 {dimension_numbers = #tpu.dot_dimension_numbers<[1], [0], [0], [1], [0, 0, 1, 1], [], []>} : vector<32x128xbf16>, vector<128x128xbf16>, vector<32x128xf32> -> vector<32x128xf32>
    %115 = arith.addf %110, %114 : vector<32x128xf32>
    %c27 = arith.constant 27 : index
    %c0_66 = arith.constant 0 : index
    %116 = tpu.strided_load %arg13[%c27, %c0_66] {strides = array<i32: 48, 1>} : memref<1536x128xf32, #tpu.memory_space<vmem>>, vector<32x128xf32>
    %117 = arith.truncf %116 : vector<32x128xf32> to vector<32x128xbf16>
    %c1920 = arith.constant 1920 : index
    %c0_67 = arith.constant 0 : index
    %118 = vector.load %arg6[%c1920, %c0_67] : memref<2048x128xbf16, #tpu.memory_space<vmem>>, vector<128x128xbf16>
    %cst_68 = arith.constant dense<0.000000e+00> : vector<32x128xf32>
    %119 = tpu.matmul %117, %118, %cst_68 {dimension_numbers = #tpu.dot_dimension_numbers<[1], [0], [0], [1], [0, 0, 1, 1], [], []>} : vector<32x128xbf16>, vector<128x128xbf16>, vector<32x128xf32> -> vector<32x128xf32>
    %120 = arith.addf %115, %119 : vector<32x128xf32>
    %c0_69 = arith.constant 0 : index
    %c0_70 = arith.constant 0 : index
    %121 = vector.load %arg7[%c0_69, %c0_70] : memref<1x128xf32, #tpu.memory_space<vmem>>, vector<1x128xf32>
    %122 = vector.broadcast %121 : vector<1x128xf32> to vector<32x128xf32>
    %123 = arith.addf %120, %122 : vector<32x128xf32>
    %cst_71 = arith.constant 0.000000e+00 : f32
    %124 = vector.broadcast %cst_71 : f32 to vector<32x128xf32>
    %125 = arith.maximumf %123, %124 : vector<32x128xf32>
    %126 = arith.truncf %125 : vector<32x128xf32> to vector<32x128xbf16>
    %c0_72 = arith.constant 0 : index
    %c0_73 = arith.constant 0 : index
    %127 = vector.load %arg8[%c0_72, %c0_73] : memref<128x128xbf16, #tpu.memory_space<vmem>>, vector<128x128xbf16>
    %cst_74 = arith.constant dense<0.000000e+00> : vector<32x128xf32>
    %128 = tpu.matmul %126, %127, %cst_74 {dimension_numbers = #tpu.dot_dimension_numbers<[1], [0], [0], [1], [0, 0, 1, 1], [], []>} : vector<32x128xbf16>, vector<128x128xbf16>, vector<32x128xf32> -> vector<32x128xf32>
    %c0_75 = arith.constant 0 : index
    %c0_76 = arith.constant 0 : index
    %129 = vector.load %arg9[%c0_75, %c0_76] : memref<1x128xf32, #tpu.memory_space<vmem>>, vector<1x128xf32>
    %130 = vector.broadcast %129 : vector<1x128xf32> to vector<32x128xf32>
    %131 = arith.addf %128, %130 : vector<32x128xf32>
    %c10_i32_77 = arith.constant 10 : i32
    %132 = vector.broadcast %c10_i32_77 : i32 to vector<1x128xi32>
    %133 = arith.cmpi slt, %3, %132 : vector<1x128xi32>
    %cst_78 = arith.constant -1.000000e+30 : f32
    %134 = vector.shape_cast %133 : vector<1x128xi1> to vector<1x128xi1>
    %135 = vector.broadcast %134 : vector<1x128xi1> to vector<32x128xi1>
    %136 = vector.broadcast %cst_78 : f32 to vector<32x128xf32>
    %137 = arith.select %135, %131, %136 : vector<32x128xi1>, vector<32x128xf32>
    %cst_79 = arith.constant dense<0xFF800000> : vector<32xf32>
    %138 = vector.multi_reduction <maximumf>, %137, %cst_79 [1] : vector<32x128xf32> to vector<32xf32>
    %139 = vector.shape_cast %138 : vector<32xf32> to vector<32x1xf32>
    %140 = vector.broadcast %139 : vector<32x1xf32> to vector<32x128xf32>
    %141 = arith.subf %137, %140 : vector<32x128xf32>
    %142 = math.exp %141 : vector<32x128xf32>
    %cst_80 = arith.constant dense<0.000000e+00> : vector<32xf32>
    %143 = vector.multi_reduction <add>, %142, %cst_80 [1] : vector<32x128xf32> to vector<32xf32>
    %144 = vector.shape_cast %143 : vector<32xf32> to vector<32x1xf32>
    %145 = math.log %144 : vector<32x1xf32>
    %146 = vector.broadcast %145 : vector<32x1xf32> to vector<32x128xf32>
    %147 = arith.subf %141, %146 : vector<32x128xf32>
    %c0_81 = arith.constant 0 : index
    %c0_82 = arith.constant 0 : index
    %148 = vector.load %arg10[%c0_81, %c0_82] : memref<32x128xf32, #tpu.memory_space<vmem>>, vector<32x128xf32>
    tpu.vector_store %arg10[%c0_81, %c0_82], %147 {strides = array<i32>} : memref<32x128xf32, #tpu.memory_space<vmem>>, vector<32x128xf32>,
    return
  }
  func.func @transform_0(%arg0: i32) -> (i32, i32) {
    %c0_i32 = arith.constant 0 : i32
    %c0_i32_0 = arith.constant 0 : i32
    return %arg0, %c0_i32 : i32, i32
  }
  func.func @transform_1(%arg0: i32) -> (i32, i32) {
    %c0_i32 = arith.constant 0 : i32
    %c0_i32_0 = arith.constant 0 : i32
    %c0_i32_1 = arith.constant 0 : i32
    return %c0_i32, %c0_i32_0 : i32, i32
  }
  func.func @transform_2(%arg0: i32) -> (i32, i32) {
    %c0_i32 = arith.constant 0 : i32
    %c0_i32_0 = arith.constant 0 : i32
    %c0_i32_1 = arith.constant 0 : i32
    return %c0_i32, %c0_i32_0 : i32, i32
  }
  func.func @transform_3(%arg0: i32) -> (i32, i32) {
    %c0_i32 = arith.constant 0 : i32
    %c0_i32_0 = arith.constant 0 : i32
    %c0_i32_1 = arith.constant 0 : i32
    return %c0_i32, %c0_i32_0 : i32, i32
  }
  func.func @transform_4(%arg0: i32) -> (i32, i32) {
    %c0_i32 = arith.constant 0 : i32
    %c0_i32_0 = arith.constant 0 : i32
    %c0_i32_1 = arith.constant 0 : i32
    return %c0_i32, %c0_i32_0 : i32, i32
  }
  func.func @transform_5(%arg0: i32) -> (i32, i32) {
    %c0_i32 = arith.constant 0 : i32
    %c0_i32_0 = arith.constant 0 : i32
    %c0_i32_1 = arith.constant 0 : i32
    return %c0_i32, %c0_i32_0 : i32, i32
  }
  func.func @transform_6(%arg0: i32) -> (i32, i32) {
    %c0_i32 = arith.constant 0 : i32
    %c0_i32_0 = arith.constant 0 : i32
    %c0_i32_1 = arith.constant 0 : i32
    return %c0_i32, %c0_i32_0 : i32, i32
  }
  func.func @transform_7(%arg0: i32) -> (i32, i32) {
    %c0_i32 = arith.constant 0 : i32
    %c0_i32_0 = arith.constant 0 : i32
    %c0_i32_1 = arith.constant 0 : i32
    return %c0_i32, %c0_i32_0 : i32, i32
  }
  func.func @transform_8(%arg0: i32) -> (i32, i32) {
    %c0_i32 = arith.constant 0 : i32
    %c0_i32_0 = arith.constant 0 : i32
    %c0_i32_1 = arith.constant 0 : i32
    return %c0_i32, %c0_i32_0 : i32, i32
  }
  func.func @transform_9(%arg0: i32) -> (i32, i32) {
    %c0_i32 = arith.constant 0 : i32
    %c0_i32_0 = arith.constant 0 : i32
    return %arg0, %c0_i32 : i32, i32
  }
}

</mosaic_0001>

<llo_original>
// kernel: net_forward.1
$region0: #{net_forward.1}
  #allocation0 [shape = 'u32[]', space=smem, size = 0x4, offset = 0x4, fixed_abs, tag = 'smem constant byte address 0x4 - core index']
  #allocation1 [shape = 'u32[144,128]{1,0:T(1,128)}', space=vmem, size = 0x12000, scoped, tag = 'internal scratch']
  #allocation2 [shape = 'f32[1360,128]{1,0:T(8,128)}', space=vmem, size = 0xaa000, scoped, tag = 'scratch operand']
  #allocation3 [shape = 'f32[96,128]{1,0:T(8,128)}', space=vmem, size = 0xc000, scoped, tag = 'scratch operand']
  #allocation4 [shape = 'f32[1536,128]{1,0:T(8,128)}', space=vmem, size = 0xc0000, scoped, tag = 'scratch operand']
  %s0 = inlined_call_operand.vmem [shape: bf16[6144,128], index: 0, kind: input, shape index: {}]
  %s1 = inlined_call_operand.vmem [shape: bf16[128,128], index: 1, kind: input, shape index: {}]
  %s2 = inlined_call_operand.vmem [shape: f32[1,128], index: 2, kind: input, shape index: {}]
  %s3 = inlined_call_operand.vmem [shape: bf16[640,128], index: 3, kind: input, shape index: {}]
  %s4 = inlined_call_operand.vmem [shape: f32[1,128], index: 4, kind: input, shape index: {}]
  %s5 = inlined_call_operand.vmem [shape: bf16[2048,128], index: 5, kind: input, shape index: {}]
  %s6 = inlined_call_operand.vmem [shape: f32[1,128], index: 6, kind: input, shape index: {}]
  %s7 = inlined_call_operand.vmem [shape: bf16[128,128], index: 7, kind: input, shape index: {}]
  %s8 = inlined_call_operand.vmem [shape: f32[1,128], index: 8, kind: input, shape index: {}]
  %s9 = inlined_call_operand.vmem [shape: f32[32,128], index: 9, kind: output, shape index: {}]
  %s10 = sld [smem:[#allocation0]]
  $region53: #{net_forward.1} parent=0
    _
  %s12 = ssub.s32 1, %s10
  %s13 = scalar_select 0, %s12, %s10
  // Predicated region
  $region2: #{net_forward.1} parent=0 // pred_check
    _
  $region3: #{net_forward.1} parent=0 // pred_check_branch
    %15 = sbr.rel (0) target = $region5
  $region4: #{net_forward.1} parent=0 // pred_region
    _
  $region5: #{net_forward.1} parent=0 // pred_fallthru
    _
  // Predicated region
  $region6: #{net_forward.1} parent=0 // pred_check
    _
  $region7: #{net_forward.1} parent=0 // pred_check_branch
    %17 = sbr.rel (0) target = $region9
  $region8: #{net_forward.1} parent=0 // pred_region
    _
  $region9: #{net_forward.1} parent=0 // pred_fallthru
    _
  // Predicated region
  $region10: #{net_forward.1} parent=0 // pred_check
    _
  $region11: #{net_forward.1} parent=0 // pred_check_branch
    %19 = sbr.rel (0) target = $region13
  $region12: #{net_forward.1} parent=0 // pred_region
    _
  $region13: #{net_forward.1} parent=0 // pred_fallthru
    _
  // Predicated region
  $region14: #{net_forward.1} parent=0 // pred_check
    _
  $region15: #{net_forward.1} parent=0 // pred_check_branch
    %21 = sbr.rel (0) target = $region17
  $region16: #{net_forward.1} parent=0 // pred_region
    _
  $region17: #{net_forward.1} parent=0 // pred_fallthru
    _
  // Predicated region
  $region18: #{net_forward.1} parent=0 // pred_check
    _
  $region19: #{net_forward.1} parent=0 // pred_check_branch
    %23 = sbr.rel (0) target = $region21
  $region20: #{net_forward.1} parent=0 // pred_region
    _
  $region21: #{net_forward.1} parent=0 // pred_fallthru
    _
  // Predicated region
  $region22: #{net_forward.1} parent=0 // pred_check
    _
  $region23: #{net_forward.1} parent=0 // pred_check_branch
    %25 = sbr.rel (0) target = $region25
  $region24: #{net_forward.1} parent=0 // pred_region
    _
  $region25: #{net_forward.1} parent=0 // pred_fallthru
    _
  // Predicated region
  $region26: #{net_forward.1} parent=0 // pred_check
    _
  $region27: #{net_forward.1} parent=0 // pred_check_branch
    %27 = sbr.rel (0) target = $region29
  $region28: #{net_forward.1} parent=0 // pred_region
    _
  $region29: #{net_forward.1} parent=0 // pred_fallthru
    _
  // Predicated region
  $region30: #{net_forward.1} parent=0 // pred_check
    _
  $region31: #{net_forward.1} parent=0 // pred_check_branch
    %29 = sbr.rel (0) target = $region33
  $region32: #{net_forward.1} parent=0 // pred_region
    _
  $region33: #{net_forward.1} parent=0 // pred_fallthru
    _
  // Predicated region
  $region34: #{net_forward.1} parent=0 // pred_check
    _
  $region35: #{net_forward.1} parent=0 // pred_check_branch
    %31 = sbr.rel (0) target = $region37
  $region36: #{net_forward.1} parent=0 // pred_region
    _
  $region37: #{net_forward.1} parent=0 // pred_fallthru
    _
  %v33 = vld [vmem:[%s1] sm:$0xf]
  %v34 = vld [vmem:[%s1 + $0x4] sm:$0xf]
  %v35 = vld [vmem:[%s1 + $0x8] sm:$0xf]
  %v36 = vld [vmem:[%s1 + $0xc] sm:$0xf]
  %v37 = vld [vmem:[%s1 + $0x10] sm:$0xf]
  %v38 = vld [vmem:[%s1 + $0x14] sm:$0xf]
  %v39 = vld [vmem:[%s1 + $0x18] sm:$0xf]
  %v40 = vld [vmem:[%s1 + $0x1c] sm:$0xf]
  %v41 = vld [vmem:[%s1 + $0x20] sm:$0xf]
  %v42 = vld [vmem:[%s1 + $0x24] sm:$0xf]
  %v43 = vld [vmem:[%s1 + $0x28] sm:$0xf]
  %v44 = vld [vmem:[%s1 + $0x2c] sm:$0xf]
  %v45 = vld [vmem:[%s1 + $0x30] sm:$0xf]
  %v46 = vld [vmem:[%s1 + $0x34] sm:$0xf]
  %v47 = vld [vmem:[%s1 + $0x38] sm:$0xf]
  %v48 = vld [vmem:[%s1 + $0x3c] sm:$0xf]
  %v49 = vld [vmem:[%s2] sm:$0x1]
  %v50 = vld [vmem:[%s4] sm:$0x1]
  %v51 = vlaneseq
  %v52 = vand.u32 %v51, 127
  %vm53 = vcmp.ge.s32.totalorder %v52, 0
  %vm54 = vcmp.lt.s32.totalorder %v52, 10
  %vm55 = vmand %vm53, %vm54
  %vm56 = vcmp.ge.s32.totalorder %v52, 32
  %vm57 = vcmp.lt.s32.totalorder %v52, 42
  %vm58 = vmand %vm56, %vm57
  %vm59 = vcmp.ge.s32.totalorder %v52, 64
  %vm60 = vcmp.lt.s32.totalorder %v52, 74
  %vm61 = vmand %vm59, %vm60
  %vm62 = vcmp.ge.s32.totalorder %v52, 96
  %vm63 = vcmp.lt.s32.totalorder %v52, 106
  %vm64 = vmand %vm62, %vm63
  %vm65 = vcmp.ge.s32.totalorder %v52, 16
  %vm66 = vcmp.lt.s32.totalorder %v52, 26
  %vm67 = vmand %vm65, %vm66
  %68 = vst [vmem:[#allocation2 + $0xc0] sm:$0xff] 0.0
  %69 = vst [vmem:[#allocation2 + $0xc8] sm:$0xff] 0.0
  %70 = vst [vmem:[#allocation2 + $0xd0] sm:$0xff] 0.0
  %71 = vst [vmem:[#allocation2 + $0xd8] sm:$0xff] 0.0
  %72 = vst [vmem:[#allocation2 + $0xe0] sm:$0xff] 0.0
  %73 = vst [vmem:[#allocation2 + $0xe8] sm:$0xff] 0.0
  %74 = vst [vmem:[#allocation2 + $0xf0] sm:$0xff] 0.0
  %75 = vst [vmem:[#allocation2 + $0xf8] sm:$0xff] 0.0
  %76 = vst [vmem:[#allocation2 + $0x100] sm:$0xff] 0.0
  %77 = vst [vmem:[#allocation2 + $0x108] sm:$0xff] 0.0
  %78 = vst [vmem:[#allocation2 + $0x1d0] sm:$0xff] 0.0
  %79 = vst [vmem:[#allocation2 + $0x1d8] sm:$0xff] 0.0
  %80 = vst [vmem:[#allocation2 + $0x1e0] sm:$0xff] 0.0
  %81 = vst [vmem:[#allocation2 + $0x1e8] sm:$0xff] 0.0
  %82 = vst [vmem:[#allocation2 + $0x1f0] sm:$0xff] 0.0
  %83 = vst [vmem:[#allocation2 + $0x1f8] sm:$0xff] 0.0
  %84 = vst [vmem:[#allocation2 + $0x200] sm:$0xff] 0.0
  %85 = vst [vmem:[#allocation2 + $0x208] sm:$0xff] 0.0
  %86 = vst [vmem:[#allocation2 + $0x210] sm:$0xff] 0.0
  %87 = vst [vmem:[#allocation2 + $0x218] sm:$0xff] 0.0
  %88 = vst [vmem:[#allocation2 + $0x2e0] sm:$0xff] 0.0
  %89 = vst [vmem:[#allocation2 + $0x2e8] sm:$0xff] 0.0
  %90 = vst [vmem:[#allocation2 + $0x2f0] sm:$0xff] 0.0
  %91 = vst [vmem:[#allocation2 + $0x2f8] sm:$0xff] 0.0
  %92 = vst [vmem:[#allocation2 + $0x300] sm:$0xff] 0.0
  %93 = vst [vmem:[#allocation2 + $0x308] sm:$0xff] 0.0
  %94 = vst [vmem:[#allocation2 + $0x310] sm:$0xff] 0.0
  %95 = vst [vmem:[#allocation2 + $0x318] sm:$0xff] 0.0
  %96 = vst [vmem:[#allocation2 + $0x320] sm:$0xff] 0.0
  %97 = vst [vmem:[#allocation2 + $0x328] sm:$0xff] 0.0
  %98 = vst [vmem:[#allocation2 + $0x3f0] sm:$0xff] 0.0
  %99 = vst [vmem:[#allocation2 + $0x3f8] sm:$0xff] 0.0
  %100 = vst [vmem:[#allocation2 + $0x400] sm:$0xff] 0.0
  %101 = vst [vmem:[#allocation2 + $0x408] sm:$0xff] 0.0
  %102 = vst [vmem:[#allocation2 + $0x410] sm:$0xff] 0.0
  %103 = vst [vmem:[#allocation2 + $0x418] sm:$0xff] 0.0
  %104 = vst [vmem:[#allocation2 + $0x420] sm:$0xff] 0.0
  %105 = vst [vmem:[#allocation2 + $0x428] sm:$0xff] 0.0
  %106 = vst [vmem:[#allocation2 + $0x430] sm:$0xff] 0.0
  %107 = vst [vmem:[#allocation2 + $0x438] sm:$0xff] 0.0
  %108 = vst [vmem:[#allocation2 + $0x500] sm:$0xff] 0.0
  %109 = vst [vmem:[#allocation2 + $0x508] sm:$0xff] 0.0
  %110 = vst [vmem:[#allocation2 + $0x510] sm:$0xff] 0.0
  %111 = vst [vmem:[#allocation2 + $0x518] sm:$0xff] 0.0
  %112 = vst [vmem:[#allocation2 + $0x520] sm:$0xff] 0.0
  %113 = vst [vmem:[#allocation2 + $0x528] sm:$0xff] 0.0
  %114 = vst [vmem:[#allocation2 + $0x530] sm:$0xff] 0.0
  %115 = vst [vmem:[#allocation2 + $0x538] sm:$0xff] 0.0
  %116 = vst [vmem:[#allocation2 + $0x540] sm:$0xff] 0.0
  %117 = vst [vmem:[#allocation2 + $0x548] sm:$0xff] 0.0
  loop: start=0, step=1, limit=32
  $region38: #{net_forward.1} parent=0 // loop_pre_header
    _
  $region39: #{net_forward.1} parent=0 // loop_header
    %s119 = sphi 0, %s123
    %p120 = scmp.ge.s32.totalorder %s119, 32
  $region40: #{net_forward.1} parent=0 // loop_header_branch
    %122 = sbr.rel (%p120) target = $region44
  $region41: #{net_forward.1} parent=0 // loop_body
    %s124 = smul.u32 %s119, 192
    %s125 = sshra.s32 %s124, 3
    %s126 = sand.u32 %s124, 7
    %s127 = smul.addr %s125, 4
    %s128 = scalar_lea.vmem %s0, %s127
    %v129 = vld [vmem:[%s128] sm:$0xf]
    %v130 = vld [vmem:[%s128 + $0x4] sm:$0xf]
    %v131 = vld [vmem:[%s128 + $0x8] sm:$0xf]
    %v132 = vld [vmem:[%s128 + $0xc] sm:$0xf]
    %v133 = vld [vmem:[%s128 + $0x10] sm:$0xf]
    %v134 = vld [vmem:[%s128 + $0x14] sm:$0xf]
    %v135 = vld [vmem:[%s128 + $0x18] sm:$0xf]
    %v136 = vld [vmem:[%s128 + $0x1c] sm:$0xf]
    %v137 = vld [vmem:[%s128 + $0x20] sm:$0xf]
    %v138 = vld [vmem:[%s128 + $0x24] sm:$0xf]
    %v139 = vld [vmem:[%s128 + $0x28] sm:$0xf]
    %v140 = vld [vmem:[%s128 + $0x2c] sm:$0xf]
    %v141 = vld [vmem:[%s128 + $0x30] sm:$0xf]
    %v142 = vld [vmem:[%s128 + $0x34] sm:$0xf]
    %v143 = vld [vmem:[%s128 + $0x38] sm:$0xf]
    %v144 = vld [vmem:[%s128 + $0x3c] sm:$0xf]
    %v145 = vld [vmem:[%s128 + $0x40] sm:$0xf]
    %v146 = vld [vmem:[%s128 + $0x44] sm:$0xf]
    %v147 = vld [vmem:[%s128 + $0x48] sm:$0xf]
    %v148 = vld [vmem:[%s128 + $0x4c] sm:$0xf]
    %v149 = vld [vmem:[%s128 + $0x50] sm:$0xf]
    %v150 = vld [vmem:[%s128 + $0x54] sm:$0xf]
    %v151 = vld [vmem:[%s128 + $0x58] sm:$0xf]
    %v152 = vld [vmem:[%s128 + $0x5c] sm:$0xf]
    %v177 = vunpack.c.l.b16 %v129
    %v178 = vunpack.c.l.b16 %v130
    %v179 = vunpack.c.l.b16 %v131
    %v180 = vunpack.c.l.b16 %v132
    %v181 = vunpack.c.l.b16 %v133
    %v182 = vunpack.c.l.b16 %v134
    %v183 = vunpack.c.l.b16 %v135
    %v184 = vunpack.c.l.b16 %v136
    %v185 = vunpack.c.l.b16 %v137
    %v186 = vunpack.c.l.b16 %v138
    %v187 = vunpack.c.l.b16 %v139
    %v188 = vunpack.c.l.b16 %v140
    %v189 = vunpack.c.l.b16 %v141
    %v190 = vunpack.c.l.b16 %v142
    %v191 = vunpack.c.l.b16 %v143
    %v192 = vunpack.c.l.b16 %v144
    %v193 = vunpack.c.l.b16 %v145
    %v194 = vunpack.c.l.b16 %v146
    %v195 = vunpack.c.l.b16 %v147
    %v196 = vunpack.c.l.b16 %v148
    %v197 = vunpack.c.l.b16 %v149
    %v198 = vunpack.c.l.b16 %v150
    %v199 = vunpack.c.l.b16 %v151
    %v200 = vunpack.c.l.b16 %v152
    %v201 = vpack.c.b16 %v178, %v177
    %v202 = vpack.c.b16 %v180, %v179
    %v203 = vpack.c.b16 %v182, %v181
    %v204 = vpack.c.b16 %v184, %v183
    %v205 = vpack.c.b16 %v186, %v185
    %v206 = vpack.c.b16 %v188, %v187
    %v207 = vpack.c.b16 %v190, %v189
    %v208 = vpack.c.b16 %v192, %v191
    %v209 = vpack.c.b16 %v194, %v193
    %v210 = vpack.c.b16 %v196, %v195
    %v211 = vpack.c.b16 %v198, %v197
    %v212 = vpack.c.b16 %v200, %v199
    %v241 = vunpack.c.l.b16 %v33
    %v242 = vunpack.c.l.b16 %v34
    %v243 = vunpack.c.l.b16 %v35
    %v244 = vunpack.c.l.b16 %v36
    %v245 = vunpack.c.l.b16 %v37
    %v246 = vunpack.c.l.b16 %v38
    %v247 = vunpack.c.l.b16 %v39
    %v248 = vunpack.c.l.b16 %v40
    %v249 = vunpack.c.l.b16 %v41
    %v250 = vunpack.c.l.b16 %v42
    %v251 = vunpack.c.l.b16 %v43
    %v252 = vunpack.c.l.b16 %v44
    %v253 = vunpack.c.l.b16 %v45
    %v254 = vunpack.c.l.b16 %v46
    %v255 = vunpack.c.l.b16 %v47
    %v256 = vunpack.c.l.b16 %v48
    %v257 = vpack.c.b16 %v242, %v241
    %v258 = vpack.c.b16 %v244, %v243
    %v259 = vpack.c.b16 %v246, %v245
    %v260 = vpack.c.b16 %v248, %v247
    %v261 = vpack.c.b16 %v250, %v249
    %v262 = vpack.c.b16 %v252, %v251
    %v263 = vpack.c.b16 %v254, %v253
    %v264 = vpack.c.b16 %v256, %v255
    %273 = vmatprep.subr.bf16.mxu0 0
    %274 = vmatpush1.bf16.msra.mxu0 %v257
    %275 = vmatprep.subr.bf16.mxu0 0
    %276 = vmatpush1.bf16.msra.mxu0 %v258
    %277 = vmatprep.subr.bf16.mxu0 0
    %278 = vmatpush1.bf16.msra.mxu0 %v259
    %279 = vmatprep.subr.bf16.mxu0 0
    %280 = vmatpush1.bf16.msra.mxu0 %v260
    %281 = vmatprep.subr.bf16.mxu0 0
    %282 = vmatpush1.bf16.msra.mxu0 %v261
    %283 = vmatprep.subr.bf16.mxu0 0
    %284 = vmatpush1.bf16.msra.mxu0 %v262
    %285 = vmatprep.subr.bf16.mxu0 0
    %286 = vmatpush1.bf16.msra.mxu0 %v263
    %287 = vmatprep.subr.bf16.mxu0 0
    %288 = vmatpush1.bf16.msra.mxu0 %v264
    %289 = vmatprep.subr.bf16.mxu0 0
    %290 = vmatpush1.bf16.msra.mxu0 0
    %291 = vmatprep.subr.bf16.mxu0 0
    %292 = vmatpush1.bf16.msra.mxu0 0
    %293 = vmatprep.subr.bf16.mxu0 0
    %294 = vmatpush1.bf16.msra.mxu0 0
    %295 = vmatprep.subr.bf16.mxu0 0
    %296 = vmatpush1.bf16.msra.mxu0 0
    %297 = vmatprep.subr.bf16.mxu0 0
    %298 = vmatpush1.bf16.msra.mxu0 0
    %299 = vmatprep.subr.bf16.mxu0 0
    %300 = vmatpush1.bf16.msra.mxu0 0
    %301 = vmatprep.subr.bf16.mxu0 0
    %302 = vmatpush1.bf16.msra.mxu0 0
    %303 = vmatprep.subr.bf16.mxu0 0
    %304 = vmatpush1.bf16.msra.mxu0 0
    %305 = vmatprep.mubr.bf16.mxu0 0
    %306 = vmatmul.mubr.bf16.gmra.mrb[0].mxu0 %v201
    %v307 = vpop.f32.mrb[0].mxu0
    %v308 = vadd.f32 0.0, %v307
    %v309 = vpop.f32.mrb[0].mxu0
    %v310 = vpop.f32.mrb[0].mxu0
    %v311 = vadd.f32 0.0, %v310
    %v312 = vpop.f32.mrb[0].mxu0
    %313 = vmatprep.mubr.bf16.mxu0 0
    %314 = vmatmul.mubr.bf16.gmra.mrb[0].mxu0 %v202
    %v315 = vpop.f32.mrb[0].mxu0
    %v316 = vadd.f32 0.0, %v315
    %v317 = vpop.f32.mrb[0].mxu0
    %v318 = vpop.f32.mrb[0].mxu0
    %v319 = vadd.f32 0.0, %v318
    %v320 = vpop.f32.mrb[0].mxu0
    %321 = vmatprep.mubr.bf16.mxu0 0
    %322 = vmatmul.mubr.bf16.gmra.mrb[0].mxu0 %v203
    %v323 = vpop.f32.mrb[0].mxu0
    %v324 = vadd.f32 0.0, %v323
    %v325 = vpop.f32.mrb[0].mxu0
    %v326 = vpop.f32.mrb[0].mxu0
    %v327 = vadd.f32 0.0, %v326
    %v328 = vpop.f32.mrb[0].mxu0
    %329 = vmatprep.mubr.bf16.mxu0 0
    %330 = vmatmul.mubr.bf16.gmra.mrb[0].mxu0 %v204
    %v331 = vpop.f32.mrb[0].mxu0
    %v332 = vadd.f32 0.0, %v331
    %v333 = vpop.f32.mrb[0].mxu0
    %v334 = vpop.f32.mrb[0].mxu0
    %v335 = vadd.f32 0.0, %v334
    %v336 = vpop.f32.mrb[0].mxu0
    %337 = vmatprep.mubr.bf16.mxu0 0
    %338 = vmatmul.mubr.bf16.gmra.mrb[0].mxu0 %v205
    %v339 = vpop.f32.mrb[0].mxu0
    %v340 = vadd.f32 0.0, %v339
    %v341 = vpop.f32.mrb[0].mxu0
    %v342 = vpop.f32.mrb[0].mxu0
    %v343 = vadd.f32 0.0, %v342
    %v344 = vpop.f32.mrb[0].mxu0
    %345 = vmatprep.mubr.bf16.mxu0 0
    %346 = vmatmul.mubr.bf16.gmra.mrb[0].mxu0 %v206
    %v347 = vpop.f32.mrb[0].mxu0
    %v348 = vadd.f32 0.0, %v347
    %v349 = vpop.f32.mrb[0].mxu0
    %v350 = vpop.f32.mrb[0].mxu0
    %v351 = vadd.f32 0.0, %v350
    %v352 = vpop.f32.mrb[0].mxu0
    %353 = vmatprep.mubr.bf16.mxu0 0
    %354 = vmatmul.mubr.bf16.gmra.mrb[0].mxu0 %v207
    %v355 = vpop.f32.mrb[0].mxu0
    %v356 = vadd.f32 0.0, %v355
    %v357 = vpop.f32.mrb[0].mxu0
    %v358 = vpop.f32.mrb[0].mxu0
    %v359 = vadd.f32 0.0, %v358
    %v360 = vpop.f32.mrb[0].mxu0
    %361 = vmatprep.mubr.bf16.mxu0 0
    %362 = vmatmul.mubr.bf16.gmra.mrb[0].mxu0 %v208
    %v363 = vpop.f32.mrb[0].mxu0
    %v364 = vadd.f32 0.0, %v363
    %v365 = vpop.f32.mrb[0].mxu0
    %v366 = vpop.f32.mrb[0].mxu0
    %v367 = vadd.f32 0.0, %v366
    %v368 = vpop.f32.mrb[0].mxu0
    %369 = vmatprep.mubr.bf16.mxu0 0
    %370 = vmatmul.mubr.bf16.gmra.mrb[0].mxu0 %v209
    %v371 = vpop.f32.mrb[0].mxu0
    %v372 = vadd.f32 0.0, %v371
    %v373 = vpop.f32.mrb[0].mxu0
    %v374 = vpop.f32.mrb[0].mxu0
    %v375 = vadd.f32 0.0, %v374
    %v376 = vpop.f32.mrb[0].mxu0
    %377 = vmatprep.mubr.bf16.mxu0 0
    %378 = vmatmul.mubr.bf16.gmra.mrb[0].mxu0 %v210
    %v379 = vpop.f32.mrb[0].mxu0
    %v380 = vadd.f32 0.0, %v379
    %v381 = vpop.f32.mrb[0].mxu0
    %v382 = vpop.f32.mrb[0].mxu0
    %v383 = vadd.f32 0.0, %v382
    %v384 = vpop.f32.mrb[0].mxu0
    %385 = vmatprep.mubr.bf16.mxu0 0
    %386 = vmatmul.mubr.bf16.gmra.mrb[0].mxu0 %v211
    %v387 = vpop.f32.mrb[0].mxu0
    %v388 = vadd.f32 0.0, %v387
    %v389 = vpop.f32.mrb[0].mxu0
    %v390 = vpop.f32.mrb[0].mxu0
    %v391 = vadd.f32 0.0, %v390
    %v392 = vpop.f32.mrb[0].mxu0
    %393 = vmatprep.mubr.bf16.mxu0 0
    %394 = vmatmul.mubr.bf16.gmra.mrb[0].mxu0 %v212
    %v395 = vpop.f32.mrb[0].mxu0
    %v396 = vadd.f32 0.0, %v395
    %v397 = vpop.f32.mrb[0].mxu0
    %v398 = vpop.f32.mrb[0].mxu0
    %v399 = vadd.f32 0.0, %v398
    %v400 = vpop.f32.mrb[0].mxu0
    %401 = vdwg.mxu0
    %402 = vrot.lane.b32.xlu0 %v308, 32
    %v403 = vpop.permute.xlu0 %402
    %404 = vrot.lane.b32.xlu0 %v311, 32
    %v405 = vpop.permute.xlu0 %404
    %406 = vrot.lane.b32.xlu0 %v316, 32
    %v407 = vpop.permute.xlu0 %406
    %408 = vrot.lane.b32.xlu0 %v319, 32
    %v409 = vpop.permute.xlu0 %408
    %410 = vrot.lane.b32.xlu0 %v324, 32
    %v411 = vpop.permute.xlu0 %410
    %412 = vrot.lane.b32.xlu0 %v327, 32
    %v413 = vpop.permute.xlu0 %412
    %414 = vrot.lane.b32.xlu0 %v332, 32
    %v415 = vpop.permute.xlu0 %414
    %416 = vrot.lane.b32.xlu0 %v335, 32
    %v417 = vpop.permute.xlu0 %416
    %418 = vrot.lane.b32.xlu0 %v340, 32
    %v419 = vpop.permute.xlu0 %418
    %420 = vrot.lane.b32.xlu0 %v343, 32
    %v421 = vpop.permute.xlu0 %420
    %422 = vrot.lane.b32.xlu0 %v348, 32
    %v423 = vpop.permute.xlu0 %422
    %424 = vrot.lane.b32.xlu0 %v351, 32
    %v425 = vpop.permute.xlu0 %424
    %426 = vrot.lane.b32.xlu0 %v356, 32
    %v427 = vpop.permute.xlu0 %426
    %428 = vrot.lane.b32.xlu0 %v359, 32
    %v429 = vpop.permute.xlu0 %428
    %430 = vrot.lane.b32.xlu0 %v364, 32
    %v431 = vpop.permute.xlu0 %430
    %432 = vrot.lane.b32.xlu0 %v367, 32
    %v433 = vpop.permute.xlu0 %432
    %434 = vrot.lane.b32.xlu0 %v372, 32
    %v435 = vpop.permute.xlu0 %434
    %436 = vrot.lane.b32.xlu0 %v375, 32
    %v437 = vpop.permute.xlu0 %436
    %438 = vrot.lane.b32.xlu0 %v380, 32
    %v439 = vpop.permute.xlu0 %438
    %440 = vrot.lane.b32.xlu0 %v383, 32
    %v441 = vpop.permute.xlu0 %440
    %442 = vrot.lane.b32.xlu0 %v388, 32
    %v443 = vpop.permute.xlu0 %442
    %444 = vrot.lane.b32.xlu0 %v391, 32
    %v445 = vpop.permute.xlu0 %444
    %446 = vrot.lane.b32.xlu0 %v396, 32
    %v447 = vpop.permute.xlu0 %446
    %448 = vrot.lane.b32.xlu0 %v399, 32
    %v449 = vpop.permute.xlu0 %448
    %v450 = vmax.f32 %v308, %v403
    %v451 = vmax.f32 %v311, %v405
    %v452 = vmax.f32 %v316, %v407
    %v453 = vmax.f32 %v319, %v409
    %v454 = vmax.f32 %v324, %v411
    %v455 = vmax.f32 %v327, %v413
    %v456 = vmax.f32 %v332, %v415
    %v457 = vmax.f32 %v335, %v417
    %v458 = vmax.f32 %v340, %v419
    %v459 = vmax.f32 %v343, %v421
    %v460 = vmax.f32 %v348, %v423
    %v461 = vmax.f32 %v351, %v425
    %v462 = vmax.f32 %v356, %v427
    %v463 = vmax.f32 %v359, %v429
    %v464 = vmax.f32 %v364, %v431
    %v465 = vmax.f32 %v367, %v433
    %v466 = vmax.f32 %v372, %v435
    %v467 = vmax.f32 %v375, %v437
    %v468 = vmax.f32 %v380, %v439
    %v469 = vmax.f32 %v383, %v441
    %v470 = vmax.f32 %v388, %v443
    %v471 = vmax.f32 %v391, %v445
    %v472 = vmax.f32 %v396, %v447
    %v473 = vmax.f32 %v399, %v449
    %474 = vrot.lane.b32.xlu0 %v308, 64
    %v475 = vpop.permute.xlu0 %474
    %476 = vrot.lane.b32.xlu0 %v311, 64
    %v477 = vpop.permute.xlu0 %476
    %478 = vrot.lane.b32.xlu0 %v316, 64
    %v479 = vpop.permute.xlu0 %478
    %480 = vrot.lane.b32.xlu0 %v319, 64
    %v481 = vpop.permute.xlu0 %480
    %482 = vrot.lane.b32.xlu0 %v324, 64
    %v483 = vpop.permute.xlu0 %482
    %484 = vrot.lane.b32.xlu0 %v327, 64
    %v485 = vpop.permute.xlu0 %484
    %486 = vrot.lane.b32.xlu0 %v332, 64
    %v487 = vpop.permute.xlu0 %486
    %488 = vrot.lane.b32.xlu0 %v335, 64
    %v489 = vpop.permute.xlu0 %488
    %490 = vrot.lane.b32.xlu0 %v340, 64
    %v491 = vpop.permute.xlu0 %490
    %492 = vrot.lane.b32.xlu0 %v343, 64
    %v493 = vpop.permute.xlu0 %492
    %494 = vrot.lane.b32.xlu0 %v348, 64
    %v495 = vpop.permute.xlu0 %494
    %496 = vrot.lane.b32.xlu0 %v351, 64
    %v497 = vpop.permute.xlu0 %496
    %498 = vrot.lane.b32.xlu0 %v356, 64
    %v499 = vpop.permute.xlu0 %498
    %500 = vrot.lane.b32.xlu0 %v359, 64
    %v501 = vpop.permute.xlu0 %500
    %502 = vrot.lane.b32.xlu0 %v364, 64
    %v503 = vpop.permute.xlu0 %502
    %504 = vrot.lane.b32.xlu0 %v367, 64
    %v505 = vpop.permute.xlu0 %504
    %506 = vrot.lane.b32.xlu0 %v372, 64
    %v507 = vpop.permute.xlu0 %506
    %508 = vrot.lane.b32.xlu0 %v375, 64
    %v509 = vpop.permute.xlu0 %508
    %510 = vrot.lane.b32.xlu0 %v380, 64
    %v511 = vpop.permute.xlu0 %510
    %512 = vrot.lane.b32.xlu0 %v383, 64
    %v513 = vpop.permute.xlu0 %512
    %514 = vrot.lane.b32.xlu0 %v388, 64
    %v515 = vpop.permute.xlu0 %514
    %516 = vrot.lane.b32.xlu0 %v391, 64
    %v517 = vpop.permute.xlu0 %516
    %518 = vrot.lane.b32.xlu0 %v396, 64
    %v519 = vpop.permute.xlu0 %518
    %520 = vrot.lane.b32.xlu0 %v399, 64
    %v521 = vpop.permute.xlu0 %520
    %522 = vrot.lane.b32.xlu0 %v308, 96
    %v523 = vpop.permute.xlu0 %522
    %524 = vrot.lane.b32.xlu0 %v311, 96
    %v525 = vpop.permute.xlu0 %524
    %526 = vrot.lane.b32.xlu0 %v316, 96
    %v527 = vpop.permute.xlu0 %526
    %528 = vrot.lane.b32.xlu0 %v319, 96
    %v529 = vpop.permute.xlu0 %528
    %530 = vrot.lane.b32.xlu0 %v324, 96
    %v531 = vpop.permute.xlu0 %530
    %532 = vrot.lane.b32.xlu0 %v327, 96
    %v533 = vpop.permute.xlu0 %532
    %534 = vrot.lane.b32.xlu0 %v332, 96
    %v535 = vpop.permute.xlu0 %534
    %536 = vrot.lane.b32.xlu0 %v335, 96
    %v537 = vpop.permute.xlu0 %536
    %538 = vrot.lane.b32.xlu0 %v340, 96
    %v539 = vpop.permute.xlu0 %538
    %540 = vrot.lane.b32.xlu0 %v343, 96
    %v541 = vpop.permute.xlu0 %540
    %542 = vrot.lane.b32.xlu0 %v348, 96
    %v543 = vpop.permute.xlu0 %542
    %544 = vrot.lane.b32.xlu0 %v351, 96
    %v545 = vpop.permute.xlu0 %544
    %546 = vrot.lane.b32.xlu0 %v356, 96
    %v547 = vpop.permute.xlu0 %546
    %548 = vrot.lane.b32.xlu0 %v359, 96
    %v549 = vpop.permute.xlu0 %548
    %550 = vrot.lane.b32.xlu0 %v364, 96
    %v551 = vpop.permute.xlu0 %550
    %552 = vrot.lane.b32.xlu0 %v367, 96
    %v553 = vpop.permute.xlu0 %552
    %554 = vrot.lane.b32.xlu0 %v372, 96
    %v555 = vpop.permute.xlu0 %554
    %556 = vrot.lane.b32.xlu0 %v375, 96
    %v557 = vpop.permute.xlu0 %556
    %558 = vrot.lane.b32.xlu0 %v380, 96
    %v559 = vpop.permute.xlu0 %558
    %560 = vrot.lane.b32.xlu0 %v383, 96
    %v561 = vpop.permute.xlu0 %560
    %562 = vrot.lane.b32.xlu0 %v388, 96
    %v563 = vpop.permute.xlu0 %562
    %564 = vrot.lane.b32.xlu0 %v391, 96
    %v565 = vpop.permute.xlu0 %564
    %566 = vrot.lane.b32.xlu0 %v396, 96
    %v567 = vpop.permute.xlu0 %566
    %568 = vrot.lane.b32.xlu0 %v399, 96
    %v569 = vpop.permute.xlu0 %568
    %v570 = vmax.f32 %v475, %v523
    %v571 = vmax.f32 %v477, %v525
    %v572 = vmax.f32 %v479, %v527
    %v573 = vmax.f32 %v481, %v529
    %v574 = vmax.f32 %v483, %v531
    %v575 = vmax.f32 %v485, %v533
    %v576 = vmax.f32 %v487, %v535
    %v577 = vmax.f32 %v489, %v537
    %v578 = vmax.f32 %v491, %v539
    %v579 = vmax.f32 %v493, %v541
    %v580 = vmax.f32 %v495, %v543
    %v581 = vmax.f32 %v497, %v545
    %v582 = vmax.f32 %v499, %v547
    %v583 = vmax.f32 %v501, %v549
    %v584 = vmax.f32 %v503, %v551
    %v585 = vmax.f32 %v505, %v553
    %v586 = vmax.f32 %v507, %v555
    %v587 = vmax.f32 %v509, %v557
    %v588 = vmax.f32 %v511, %v559
    %v589 = vmax.f32 %v513, %v561
    %v590 = vmax.f32 %v515, %v563
    %v591 = vmax.f32 %v517, %v565
    %v592 = vmax.f32 %v519, %v567
    %v593 = vmax.f32 %v521, %v569
    %v594 = vmax.f32 %v450, %v570
    %v595 = vmax.f32 %v451, %v571
    %v596 = vmax.f32 %v452, %v572
    %v597 = vmax.f32 %v453, %v573
    %v598 = vmax.f32 %v454, %v574
    %v599 = vmax.f32 %v455, %v575
    %v600 = vmax.f32 %v456, %v576
    %v601 = vmax.f32 %v457, %v577
    %v602 = vmax.f32 %v458, %v578
    %v603 = vmax.f32 %v459, %v579
    %v604 = vmax.f32 %v460, %v580
    %v605 = vmax.f32 %v461, %v581
    %v606 = vmax.f32 %v462, %v582
    %v607 = vmax.f32 %v463, %v583
    %v608 = vmax.f32 %v464, %v584
    %v609 = vmax.f32 %v465, %v585
    %v610 = vmax.f32 %v466, %v586
    %v611 = vmax.f32 %v467, %v587
    %v612 = vmax.f32 %v468, %v588
    %v613 = vmax.f32 %v469, %v589
    %v614 = vmax.f32 %v470, %v590
    %v615 = vmax.f32 %v471, %v591
    %v616 = vmax.f32 %v472, %v592
    %v617 = vmax.f32 %v473, %v593
    %v619 = vlaneseq
    %v620 = vshrl.u32 %v619, 7
    %v621 = vsub.s32 0, %v620
    %v622 = vrot.slane %v49, %v621
    %v624 = vadd.f32 %v594, %v622
    %v625 = vadd.f32 %v595, %v622
    %v626 = vadd.f32 %v596, %v622
    %v627 = vadd.f32 %v597, %v622
    %v628 = vadd.f32 %v598, %v622
    %v629 = vadd.f32 %v599, %v622
    %v630 = vadd.f32 %v600, %v622
    %v631 = vadd.f32 %v601, %v622
    %v632 = vadd.f32 %v602, %v622
    %v633 = vadd.f32 %v603, %v622
    %v634 = vadd.f32 %v604, %v622
    %v635 = vadd.f32 %v605, %v622
    %v636 = vadd.f32 %v606, %v622
    %v637 = vadd.f32 %v607, %v622
    %v638 = vadd.f32 %v608, %v622
    %v639 = vadd.f32 %v609, %v622
    %v640 = vadd.f32 %v610, %v622
    %v641 = vadd.f32 %v611, %v622
    %v642 = vadd.f32 %v612, %v622
    %v643 = vadd.f32 %v613, %v622
    %v644 = vadd.f32 %v614, %v622
    %v645 = vadd.f32 %v615, %v622
    %v646 = vadd.f32 %v616, %v622
    %v647 = vadd.f32 %v617, %v622
    %v648 = vmax.f32 %v624, 0.0
    %v649 = vmax.f32 %v625, 0.0
    %v650 = vmax.f32 %v626, 0.0
    %v651 = vmax.f32 %v627, 0.0
    %v652 = vmax.f32 %v628, 0.0
    %v653 = vmax.f32 %v629, 0.0
    %v654 = vmax.f32 %v630, 0.0
    %v655 = vmax.f32 %v631, 0.0
    %v656 = vmax.f32 %v632, 0.0
    %v657 = vmax.f32 %v633, 0.0
    %v658 = vmax.f32 %v634, 0.0
    %v659 = vmax.f32 %v635, 0.0
    %v660 = vmax.f32 %v636, 0.0
    %v661 = vmax.f32 %v637, 0.0
    %v662 = vmax.f32 %v638, 0.0
    %v663 = vmax.f32 %v639, 0.0
    %v664 = vmax.f32 %v640, 0.0
    %v665 = vmax.f32 %v641, 0.0
    %v666 = vmax.f32 %v642, 0.0
    %v667 = vmax.f32 %v643, 0.0
    %v668 = vmax.f32 %v644, 0.0
    %v669 = vmax.f32 %v645, 0.0
    %v670 = vmax.f32 %v646, 0.0
    %v671 = vmax.f32 %v647, 0.0
    %v672 = vsel %vm55, 1, 0
    %vm673 = vcmp.eq.s32.totalorder %v672, 1
    %v674 = vsel %vm673, %v648, 0.0
    %v675 = vsel %vm673, %v649, 0.0
    %v676 = vsel %vm673, %v650, 0.0
    %v677 = vsel %vm673, %v651, 0.0
    %v678 = vsel %vm673, %v652, 0.0
    %v679 = vsel %vm673, %v653, 0.0
    %v680 = vsel %vm673, %v654, 0.0
    %v681 = vsel %vm673, %v655, 0.0
    %v682 = vsel %vm673, %v656, 0.0
    %v683 = vsel %vm673, %v657, 0.0
    %v684 = vsel %vm673, %v658, 0.0
    %v685 = vsel %vm673, %v659, 0.0
    %v686 = vsel %vm673, %v660, 0.0
    %v687 = vsel %vm673, %v661, 0.0
    %v688 = vsel %vm673, %v662, 0.0
    %v689 = vsel %vm673, %v663, 0.0
    %v690 = vsel %vm673, %v664, 0.0
    %v691 = vsel %vm673, %v665, 0.0
    %v692 = vsel %vm673, %v666, 0.0
    %v693 = vsel %vm673, %v667, 0.0
    %v694 = vsel %vm673, %v668, 0.0
    %v695 = vsel %vm673, %v669, 0.0
    %v696 = vsel %vm673, %v670, 0.0
    %v697 = vsel %vm673, %v671, 0.0
    %698 = vst [vmem:[#allocation2] sm:$0xff] %v674
    %699 = vst [vmem:[#allocation2 + $0x8] sm:$0xff] %v675
    %700 = vst [vmem:[#allocation2 + $0x10] sm:$0xff] %v676
    %701 = vst [vmem:[#allocation2 + $0x18] sm:$0xff] %v677
    %702 = vst [vmem:[#allocation2 + $0x20] sm:$0xff] %v678
    %703 = vst [vmem:[#allocation2 + $0x28] sm:$0xff] %v679
    %704 = vst [vmem:[#allocation2 + $0x30] sm:$0xff] %v680
    %705 = vst [vmem:[#allocation2 + $0x38] sm:$0xff] %v681
    %706 = vst [vmem:[#allocation2 + $0x40] sm:$0xff] %v682
    %707 = vst [vmem:[#allocation2 + $0x48] sm:$0xff] %v683
    %708 = vst [vmem:[#allocation2 + $0x50] sm:$0xff] %v684
    %709 = vst [vmem:[#allocation2 + $0x58] sm:$0xff] %v685
    %710 = vst [vmem:[#allocation2 + $0x60] sm:$0xff] %v686
    %711 = vst [vmem:[#allocation2 + $0x68] sm:$0xff] %v687
    %712 = vst [vmem:[#allocation2 + $0x70] sm:$0xff] %v688
    %713 = vst [vmem:[#allocation2 + $0x78] sm:$0xff] %v689
    %714 = vst [vmem:[#allocation2 + $0x80] sm:$0xff] %v690
    %715 = vst [vmem:[#allocation2 + $0x88] sm:$0xff] %v691
    %716 = vst [vmem:[#allocation2 + $0x90] sm:$0xff] %v692
    %717 = vst [vmem:[#allocation2 + $0x98] sm:$0xff] %v693
    %718 = vst [vmem:[#allocation2 + $0xa0] sm:$0xff] %v694
    %719 = vst [vmem:[#allocation2 + $0xa8] sm:$0xff] %v695
    %720 = vst [vmem:[#allocation2 + $0xb0] sm:$0xff] %v696
    %721 = vst [vmem:[#allocation2 + $0xb8] sm:$0xff] %v697
    %v722 = vsel %vm58, 1, 0
    %vm723 = vcmp.eq.s32.totalorder %v722, 1
    %v724 = vsel %vm723, %v648, 0.0
    %v725 = vsel %vm723, %v649, 0.0
    %v726 = vsel %vm723, %v650, 0.0
    %v727 = vsel %vm723, %v651, 0.0
    %v728 = vsel %vm723, %v652, 0.0
    %v729 = vsel %vm723, %v653, 0.0
    %v730 = vsel %vm723, %v654, 0.0
    %v731 = vsel %vm723, %v655, 0.0
    %v732 = vsel %vm723, %v656, 0.0
    %v733 = vsel %vm723, %v657, 0.0
    %v734 = vsel %vm723, %v658, 0.0
    %v735 = vsel %vm723, %v659, 0.0
    %v736 = vsel %vm723, %v660, 0.0
    %v737 = vsel %vm723, %v661, 0.0
    %v738 = vsel %vm723, %v662, 0.0
    %v739 = vsel %vm723, %v663, 0.0
    %v740 = vsel %vm723, %v664, 0.0
    %v741 = vsel %vm723, %v665, 0.0
    %v742 = vsel %vm723, %v666, 0.0
    %v743 = vsel %vm723, %v667, 0.0
    %v744 = vsel %vm723, %v668, 0.0
    %v745 = vsel %vm723, %v669, 0.0
    %v746 = vsel %vm723, %v670, 0.0
    %v747 = vsel %vm723, %v671, 0.0
    %748 = vst [vmem:[#allocation2 + $0x110] sm:$0xff] %v724
    %749 = vst [vmem:[#allocation2 + $0x118] sm:$0xff] %v725
    %750 = vst [vmem:[#allocation2 + $0x120] sm:$0xff] %v726
    %751 = vst [vmem:[#allocation2 + $0x128] sm:$0xff] %v727
    %752 = vst [vmem:[#allocation2 + $0x130] sm:$0xff] %v728
    %753 = vst [vmem:[#allocation2 + $0x138] sm:$0xff] %v729
    %754 = vst [vmem:[#allocation2 + $0x140] sm:$0xff] %v730
    %755 = vst [vmem:[#allocation2 + $0x148] sm:$0xff] %v731
    %756 = vst [vmem:[#allocation2 + $0x150] sm:$0xff] %v732
    %757 = vst [vmem:[#allocation2 + $0x158] sm:$0xff] %v733
    %758 = vst [vmem:[#allocation2 + $0x160] sm:$0xff] %v734
    %759 = vst [vmem:[#allocation2 + $0x168] sm:$0xff] %v735
    %760 = vst [vmem:[#allocation2 + $0x170] sm:$0xff] %v736
    %761 = vst [vmem:[#allocation2 + $0x178] sm:$0xff] %v737
    %762 = vst [vmem:[#allocation2 + $0x180] sm:$0xff] %v738
    %763 = vst [vmem:[#allocation2 + $0x188] sm:$0xff] %v739
    %764 = vst [vmem:[#allocation2 + $0x190] sm:$0xff] %v740
    %765 = vst [vmem:[#allocation2 + $0x198] sm:$0xff] %v741
    %766 = vst [vmem:[#allocation2 + $0x1a0] sm:$0xff] %v742
    %767 = vst [vmem:[#allocation2 + $0x1a8] sm:$0xff] %v743
    %768 = vst [vmem:[#allocation2 + $0x1b0] sm:$0xff] %v744
    %769 = vst [vmem:[#allocation2 + $0x1b8] sm:$0xff] %v745
    %770 = vst [vmem:[#allocation2 + $0x1c0] sm:$0xff] %v746
    %771 = vst [vmem:[#allocation2 + $0x1c8] sm:$0xff] %v747
    %v772 = vsel %vm61, 1, 0
    %vm773 = vcmp.eq.s32.totalorder %v772, 1
    %v774 = vsel %vm773, %v648, 0.0
    %v775 = vsel %vm773, %v649, 0.0
    %v776 = vsel %vm773, %v650, 0.0
    %v777 = vsel %vm773, %v651, 0.0
    %v778 = vsel %vm773, %v652, 0.0
    %v779 = vsel %vm773, %v653, 0.0
    %v780 = vsel %vm773, %v654, 0.0
    %v781 = vsel %vm773, %v655, 0.0
    %v782 = vsel %vm773, %v656, 0.0
    %v783 = vsel %vm773, %v657, 0.0
    %v784 = vsel %vm773, %v658, 0.0
    %v785 = vsel %vm773, %v659, 0.0
    %v786 = vsel %vm773, %v660, 0.0
    %v787 = vsel %vm773, %v661, 0.0
    %v788 = vsel %vm773, %v662, 0.0
    %v789 = vsel %vm773, %v663, 0.0
    %v790 = vsel %vm773, %v664, 0.0
    %v791 = vsel %vm773, %v665, 0.0
    %v792 = vsel %vm773, %v666, 0.0
    %v793 = vsel %vm773, %v667, 0.0
    %v794 = vsel %vm773, %v668, 0.0
    %v795 = vsel %vm773, %v669, 0.0
    %v796 = vsel %vm773, %v670, 0.0
    %v797 = vsel %vm773, %v671, 0.0
    %798 = vst [vmem:[#allocation2 + $0x220] sm:$0xff] %v774
    %799 = vst [vmem:[#allocation2 + $0x228] sm:$0xff] %v775
    %800 = vst [vmem:[#allocation2 + $0x230] sm:$0xff] %v776
    %801 = vst [vmem:[#allocation2 + $0x238] sm:$0xff] %v777
    %802 = vst [vmem:[#allocation2 + $0x240] sm:$0xff] %v778
    %803 = vst [vmem:[#allocation2 + $0x248] sm:$0xff] %v779
    %804 = vst [vmem:[#allocation2 + $0x250] sm:$0xff] %v780
    %805 = vst [vmem:[#allocation2 + $0x258] sm:$0xff] %v781
    %806 = vst [vmem:[#allocation2 + $0x260] sm:$0xff] %v782
    %807 = vst [vmem:[#allocation2 + $0x268] sm:$0xff] %v783
    %808 = vst [vmem:[#allocation2 + $0x270] sm:$0xff] %v784
    %809 = vst [vmem:[#allocation2 + $0x278] sm:$0xff] %v785
    %810 = vst [vmem:[#allocation2 + $0x280] sm:$0xff] %v786
    %811 = vst [vmem:[#allocation2 + $0x288] sm:$0xff] %v787
    %812 = vst [vmem:[#allocation2 + $0x290] sm:$0xff] %v788
    %813 = vst [vmem:[#allocation2 + $0x298] sm:$0xff] %v789
    %814 = vst [vmem:[#allocation2 + $0x2a0] sm:$0xff] %v790
    %815 = vst [vmem:[#allocation2 + $0x2a8] sm:$0xff] %v791
    %816 = vst [vmem:[#allocation2 + $0x2b0] sm:$0xff] %v792
    %817 = vst [vmem:[#allocation2 + $0x2b8] sm:$0xff] %v793
    %818 = vst [vmem:[#allocation2 + $0x2c0] sm:$0xff] %v794
    %819 = vst [vmem:[#allocation2 + $0x2c8] sm:$0xff] %v795
    %820 = vst [vmem:[#allocation2 + $0x2d0] sm:$0xff] %v796
    %821 = vst [vmem:[#allocation2 + $0x2d8] sm:$0xff] %v797
    %v822 = vsel %vm64, 1, 0
    %vm823 = vcmp.eq.s32.totalorder %v822, 1
    %v824 = vsel %vm823, %v648, 0.0
    %v825 = vsel %vm823, %v649, 0.0
    %v826 = vsel %vm823, %v650, 0.0
    %v827 = vsel %vm823, %v651, 0.0
    %v828 = vsel %vm823, %v652, 0.0
    %v829 = vsel %vm823, %v653, 0.0
    %v830 = vsel %vm823, %v654, 0.0
    %v831 = vsel %vm823, %v655, 0.0
    %v832 = vsel %vm823, %v656, 0.0
    %v833 = vsel %vm823, %v657, 0.0
    %v834 = vsel %vm823, %v658, 0.0
    %v835 = vsel %vm823, %v659, 0.0
    %v836 = vsel %vm823, %v660, 0.0
    %v837 = vsel %vm823, %v661, 0.0
    %v838 = vsel %vm823, %v662, 0.0
    %v839 = vsel %vm823, %v663, 0.0
    %v840 = vsel %vm823, %v664, 0.0
    %v841 = vsel %vm823, %v665, 0.0
    %v842 = vsel %vm823, %v666, 0.0
    %v843 = vsel %vm823, %v667, 0.0
    %v844 = vsel %vm823, %v668, 0.0
    %v845 = vsel %vm823, %v669, 0.0
    %v846 = vsel %vm823, %v670, 0.0
    %v847 = vsel %vm823, %v671, 0.0
    %848 = vst [vmem:[#allocation2 + $0x330] sm:$0xff] %v824
    %849 = vst [vmem:[#allocation2 + $0x338] sm:$0xff] %v825
    %850 = vst [vmem:[#allocation2 + $0x340] sm:$0xff] %v826
    %851 = vst [vmem:[#allocation2 + $0x348] sm:$0xff] %v827
    %852 = vst [vmem:[#allocation2 + $0x350] sm:$0xff] %v828
    %853 = vst [vmem:[#allocation2 + $0x358] sm:$0xff] %v829
    %854 = vst [vmem:[#allocation2 + $0x360] sm:$0xff] %v830
    %855 = vst [vmem:[#allocation2 + $0x368] sm:$0xff] %v831
    %856 = vst [vmem:[#allocation2 + $0x370] sm:$0xff] %v832
    %857 = vst [vmem:[#allocation2 + $0x378] sm:$0xff] %v833
    %858 = vst [vmem:[#allocation2 + $0x380] sm:$0xff] %v834
    %859 = vst [vmem:[#allocation2 + $0x388] sm:$0xff] %v835
    %860 = vst [vmem:[#allocation2 + $0x390] sm:$0xff] %v836
    %861 = vst [vmem:[#allocation2 + $0x398] sm:$0xff] %v837
    %862 = vst [vmem:[#allocation2 + $0x3a0] sm:$0xff] %v838
    %863 = vst [vmem:[#allocation2 + $0x3a8] sm:$0xff] %v839
    %864 = vst [vmem:[#allocation2 + $0x3b0] sm:$0xff] %v840
    %865 = vst [vmem:[#allocation2 + $0x3b8] sm:$0xff] %v841
    %866 = vst [vmem:[#allocation2 + $0x3c0] sm:$0xff] %v842
    %867 = vst [vmem:[#allocation2 + $0x3c8] sm:$0xff] %v843
    %868 = vst [vmem:[#allocation2 + $0x3d0] sm:$0xff] %v844
    %869 = vst [vmem:[#allocation2 + $0x3d8] sm:$0xff] %v845
    %870 = vst [vmem:[#allocation2 + $0x3e0] sm:$0xff] %v846
    %871 = vst [vmem:[#allocation2 + $0x3e8] sm:$0xff] %v847
    %872 = vrot.lane.b32.xlu0 %v648, 16
    %v873 = vpop.permute.xlu0 %872
    %874 = vrot.lane.b32.xlu0 %v649, 16
    %v875 = vpop.permute.xlu0 %874
    %876 = vrot.lane.b32.xlu0 %v650, 16
    %v877 = vpop.permute.xlu0 %876
    %878 = vrot.lane.b32.xlu0 %v651, 16
    %v879 = vpop.permute.xlu0 %878
    %880 = vrot.lane.b32.xlu0 %v652, 16
    %v881 = vpop.permute.xlu0 %880
    %882 = vrot.lane.b32.xlu0 %v653, 16
    %v883 = vpop.permute.xlu0 %882
    %884 = vrot.lane.b32.xlu0 %v654, 16
    %v885 = vpop.permute.xlu0 %884
    %886 = vrot.lane.b32.xlu0 %v655, 16
    %v887 = vpop.permute.xlu0 %886
    %888 = vrot.lane.b32.xlu0 %v656, 16
    %v889 = vpop.permute.xlu0 %888
    %890 = vrot.lane.b32.xlu0 %v657, 16
    %v891 = vpop.permute.xlu0 %890
    %892 = vrot.lane.b32.xlu0 %v658, 16
    %v893 = vpop.permute.xlu0 %892
    %894 = vrot.lane.b32.xlu0 %v659, 16
    %v895 = vpop.permute.xlu0 %894
    %896 = vrot.lane.b32.xlu0 %v660, 16
    %v897 = vpop.permute.xlu0 %896
    %898 = vrot.lane.b32.xlu0 %v661, 16
    %v899 = vpop.permute.xlu0 %898
    %900 = vrot.lane.b32.xlu0 %v662, 16
    %v901 = vpop.permute.xlu0 %900
    %902 = vrot.lane.b32.xlu0 %v663, 16
    %v903 = vpop.permute.xlu0 %902
    %904 = vrot.lane.b32.xlu0 %v664, 16
    %v905 = vpop.permute.xlu0 %904
    %906 = vrot.lane.b32.xlu0 %v665, 16
    %v907 = vpop.permute.xlu0 %906
    %908 = vrot.lane.b32.xlu0 %v666, 16
    %v909 = vpop.permute.xlu0 %908
    %910 = vrot.lane.b32.xlu0 %v667, 16
    %v911 = vpop.permute.xlu0 %910
    %912 = vrot.lane.b32.xlu0 %v668, 16
    %v913 = vpop.permute.xlu0 %912
    %914 = vrot.lane.b32.xlu0 %v669, 16
    %v915 = vpop.permute.xlu0 %914
    %916 = vrot.lane.b32.xlu0 %v670, 16
    %v917 = vpop.permute.xlu0 %916
    %918 = vrot.lane.b32.xlu0 %v671, 16
    %v919 = vpop.permute.xlu0 %918
    %v920 = vsel %vm67, 1, 0
    %vm921 = vcmp.eq.s32.totalorder %v920, 1
    %v922 = vsel %vm921, %v873, 0.0
    %v923 = vsel %vm921, %v875, 0.0
    %v924 = vsel %vm921, %v877, 0.0
    %v925 = vsel %vm921, %v879, 0.0
    %v926 = vsel %vm921, %v881, 0.0
    %v927 = vsel %vm921, %v883, 0.0
    %v928 = vsel %vm921, %v885, 0.0
    %v929 = vsel %vm921, %v887, 0.0
    %v930 = vsel %vm921, %v889, 0.0
    %v931 = vsel %vm921, %v891, 0.0
    %v932 = vsel %vm921, %v893, 0.0
    %v933 = vsel %vm921, %v895, 0.0
    %v934 = vsel %vm921, %v897, 0.0
    %v935 = vsel %vm921, %v899, 0.0
    %v936 = vsel %vm921, %v901, 0.0
    %v937 = vsel %vm921, %v903, 0.0
    %v938 = vsel %vm921, %v905, 0.0
    %v939 = vsel %vm921, %v907, 0.0
    %v940 = vsel %vm921, %v909, 0.0
    %v941 = vsel %vm921, %v911, 0.0
    %v942 = vsel %vm921, %v913, 0.0
    %v943 = vsel %vm921, %v915, 0.0
    %v944 = vsel %vm921, %v917, 0.0
    %v945 = vsel %vm921, %v919, 0.0
    %946 = vst [vmem:[#allocation2 + $0x440] sm:$0xff] %v922
    %947 = vst [vmem:[#allocation2 + $0x448] sm:$0xff] %v923
    %948 = vst [vmem:[#allocation2 + $0x450] sm:$0xff] %v924
    %949 = vst [vmem:[#allocation2 + $0x458] sm:$0xff] %v925
    %950 = vst [vmem:[#allocation2 + $0x460] sm:$0xff] %v926
    %951 = vst [vmem:[#allocation2 + $0x468] sm:$0xff] %v927
    %952 = vst [vmem:[#allocation2 + $0x470] sm:$0xff] %v928
    %953 = vst [vmem:[#allocation2 + $0x478] sm:$0xff] %v929
    %954 = vst [vmem:[#allocation2 + $0x480] sm:$0xff] %v930
    %955 = vst [vmem:[#allocation2 + $0x488] sm:$0xff] %v931
    %956 = vst [vmem:[#allocation2 + $0x490] sm:$0xff] %v932
    %957 = vst [vmem:[#allocation2 + $0x498] sm:$0xff] %v933
    %958 = vst [vmem:[#allocation2 + $0x4a0] sm:$0xff] %v934
    %959 = vst [vmem:[#allocation2 + $0x4a8] sm:$0xff] %v935
    %960 = vst [vmem:[#allocation2 + $0x4b0] sm:$0xff] %v936
    %961 = vst [vmem:[#allocation2 + $0x4b8] sm:$0xff] %v937
    %962 = vst [vmem:[#allocation2 + $0x4c0] sm:$0xff] %v938
    %963 = vst [vmem:[#allocation2 + $0x4c8] sm:$0xff] %v939
    %964 = vst [vmem:[#allocation2 + $0x4d0] sm:$0xff] %v940
    %965 = vst [vmem:[#allocation2 + $0x4d8] sm:$0xff] %v941
    %966 = vst [vmem:[#allocation2 + $0x4e0] sm:$0xff] %v942
    %967 = vst [vmem:[#allocation2 + $0x4e8] sm:$0xff] %v943
    %968 = vst [vmem:[#allocation2 + $0x4f0] sm:$0xff] %v944
    %969 = vst [vmem:[#allocation2 + $0x4f8] sm:$0xff] %v945
    %v970 = vld [vmem:[#allocation2] sm:$0xff]
    %v971 = vld [vmem:[#allocation2 + $0x8] sm:$0xff]
    %v972 = vld [vmem:[#allocation2 + $0x10] sm:$0xff]
    %v973 = vld [vmem:[#allocation2 + $0x18] sm:$0xff]
    %v974 = vld [vmem:[#allocation2 + $0x20] sm:$0xff]
    %v975 = vld [vmem:[#allocation2 + $0x28] sm:$0xff]
    %v976 = vld [vmem:[#allocation2 + $0x30] sm:$0xff]
    %v977 = vld [vmem:[#allocation2 + $0x38] sm:$0xff]
    %v978 = vld [vmem:[#allocation2 + $0x40] sm:$0xff]
    %v979 = vld [vmem:[#allocation2 + $0x48] sm:$0xff]
    %v980 = vld [vmem:[#allocation2 + $0x50] sm:$0xff]
    %v981 = vld [vmem:[#allocation2 + $0x58] sm:$0xff]
    %v982 = vld [vmem:[#allocation2 + $0x60] sm:$0xff]
    %v983 = vld [vmem:[#allocation2 + $0x68] sm:$0xff]
    %v984 = vld [vmem:[#allocation2 + $0x70] sm:$0xff]
    %v985 = vld [vmem:[#allocation2 + $0x78] sm:$0xff]
    %v986 = vld [vmem:[#allocation2 + $0x80] sm:$0xff]
    %v987 = vld [vmem:[#allocation2 + $0x88] sm:$0xff]
    %v988 = vld [vmem:[#allocation2 + $0x90] sm:$0xff]
    %v989 = vld [vmem:[#allocation2 + $0x98] sm:$0xff]
    %v990 = vld [vmem:[#allocation2 + $0xa0] sm:$0xff]
    %v991 = vld [vmem:[#allocation2 + $0xa8] sm:$0xff]
    %v992 = vld [vmem:[#allocation2 + $0xb0] sm:$0xff]
    %v993 = vld [vmem:[#allocation2 + $0xb8] sm:$0xff]
    %v994 = vld [vmem:[#allocation2 + $0x111] sm:$0xff]
    %v995 = vld [vmem:[#allocation2 + $0x119] sm:$0xff]
    %v996 = vld [vmem:[#allocation2 + $0x121] sm:$0xff]
    %v997 = vld [vmem:[#allocation2 + $0x129] sm:$0xff]
    %v998 = vld [vmem:[#allocation2 + $0x131] sm:$0xff]
    %v999 = vld [vmem:[#allocation2 + $0x139] sm:$0xff]
    %v1000 = vld [vmem:[#allocation2 + $0x141] sm:$0xff]
    %v1001 = vld [vmem:[#allocation2 + $0x149] sm:$0xff]
    %v1002 = vld [vmem:[#allocation2 + $0x151] sm:$0xff]
    %v1003 = vld [vmem:[#allocation2 + $0x159] sm:$0xff]
    %v1004 = vld [vmem:[#allocation2 + $0x161] sm:$0xff]
    %v1005 = vld [vmem:[#allocation2 + $0x169] sm:$0xff]
    %v1006 = vld [vmem:[#allocation2 + $0x171] sm:$0xff]
    %v1007 = vld [vmem:[#allocation2 + $0x179] sm:$0xff]
    %v1008 = vld [vmem:[#allocation2 + $0x181] sm:$0xff]
    %v1009 = vld [vmem:[#allocation2 + $0x189] sm:$0xff]
    %v1010 = vld [vmem:[#allocation2 + $0x191] sm:$0xff]
    %v1011 = vld [vmem:[#allocation2 + $0x199] sm:$0xff]
    %v1012 = vld [vmem:[#allocation2 + $0x1a1] sm:$0xff]
    %v1013 = vld [vmem:[#allocation2 + $0x1a9] sm:$0xff]
    %v1014 = vld [vmem:[#allocation2 + $0x1b1] sm:$0xff]
    %v1015 = vld [vmem:[#allocation2 + $0x1b9] sm:$0xff]
    %v1016 = vld [vmem:[#allocation2 + $0x1c1] sm:$0xff]
    %v1017 = vld [vmem:[#allocation2 + $0x1c9] sm:$0xff]
    %v1018 = vadd.f32 %v970, %v994
    %v1019 = vadd.f32 %v971, %v995
    %v1020 = vadd.f32 %v972, %v996
    %v1021 = vadd.f32 %v973, %v997
    %v1022 = vadd.f32 %v974, %v998
    %v1023 = vadd.f32 %v975, %v999
    %v1024 = vadd.f32 %v976, %v1000
    %v1025 = vadd.f32 %v977, %v1001
    %v1026 = vadd.f32 %v978, %v1002
    %v1027 = vadd.f32 %v979, %v1003
    %v1028 = vadd.f32 %v980, %v1004
    %v1029 = vadd.f32 %v981, %v1005
    %v1030 = vadd.f32 %v982, %v1006
    %v1031 = vadd.f32 %v983, %v1007
    %v1032 = vadd.f32 %v984, %v1008
    %v1033 = vadd.f32 %v985, %v1009
    %v1034 = vadd.f32 %v986, %v1010
    %v1035 = vadd.f32 %v987, %v1011
    %v1036 = vadd.f32 %v988, %v1012
    %v1037 = vadd.f32 %v989, %v1013
    %v1038 = vadd.f32 %v990, %v1014
    %v1039 = vadd.f32 %v991, %v1015
    %v1040 = vadd.f32 %v992, %v1016
    %v1041 = vadd.f32 %v993, %v1017
    %v1042 = vld [vmem:[#allocation2 + $0x222] sm:$0xff]
    %v1043 = vld [vmem:[#allocation2 + $0x22a] sm:$0xff]
    %v1044 = vld [vmem:[#allocation2 + $0x232] sm:$0xff]
    %v1045 = vld [vmem:[#allocation2 + $0x23a] sm:$0xff]
    %v1046 = vld [vmem:[#allocation2 + $0x242] sm:$0xff]
    %v1047 = vld [vmem:[#allocation2 + $0x24a] sm:$0xff]
    %v1048 = vld [vmem:[#allocation2 + $0x252] sm:$0xff]
    %v1049 = vld [vmem:[#allocation2 + $0x25a] sm:$0xff]
    %v1050 = vld [vmem:[#allocation2 + $0x262] sm:$0xff]
    %v1051 = vld [vmem:[#allocation2 + $0x26a] sm:$0xff]
    %v1052 = vld [vmem:[#allocation2 + $0x272] sm:$0xff]
    %v1053 = vld [vmem:[#allocation2 + $0x27a] sm:$0xff]
    %v1054 = vld [vmem:[#allocation2 + $0x282] sm:$0xff]
    %v1055 = vld [vmem:[#allocation2 + $0x28a] sm:$0xff]
    %v1056 = vld [vmem:[#allocation2 + $0x292] sm:$0xff]
    %v1057 = vld [vmem:[#allocation2 + $0x29a] sm:$0xff]
    %v1058 = vld [vmem:[#allocation2 + $0x2a2] sm:$0xff]
    %v1059 = vld [vmem:[#allocation2 + $0x2aa] sm:$0xff]
    %v1060 = vld [vmem:[#allocation2 + $0x2b2] sm:$0xff]
    %v1061 = vld [vmem:[#allocation2 + $0x2ba] sm:$0xff]
    %v1062 = vld [vmem:[#allocation2 + $0x2c2] sm:$0xff]
    %v1063 = vld [vmem:[#allocation2 + $0x2ca] sm:$0xff]
    %v1064 = vld [vmem:[#allocation2 + $0x2d2] sm:$0xff]
    %v1065 = vld [vmem:[#allocation2 + $0x2da] sm:$0xff]
    %v1066 = vadd.f32 %v1018, %v1042
    %v1067 = vadd.f32 %v1019, %v1043
    %v1068 = vadd.f32 %v1020, %v1044
    %v1069 = vadd.f32 %v1021, %v1045
    %v1070 = vadd.f32 %v1022, %v1046
    %v1071 = vadd.f32 %v1023, %v1047
    %v1072 = vadd.f32 %v1024, %v1048
    %v1073 = vadd.f32 %v1025, %v1049
    %v1074 = vadd.f32 %v1026, %v1050
    %v1075 = vadd.f32 %v1027, %v1051
    %v1076 = vadd.f32 %v1028, %v1052
    %v1077 = vadd.f32 %v1029, %v1053
    %v1078 = vadd.f32 %v1030, %v1054
    %v1079 = vadd.f32 %v1031, %v1055
    %v1080 = vadd.f32 %v1032, %v1056
    %v1081 = vadd.f32 %v1033, %v1057
    %v1082 = vadd.f32 %v1034, %v1058
    %v1083 = vadd.f32 %v1035, %v1059
    %v1084 = vadd.f32 %v1036, %v1060
    %v1085 = vadd.f32 %v1037, %v1061
    %v1086 = vadd.f32 %v1038, %v1062
    %v1087 = vadd.f32 %v1039, %v1063
    %v1088 = vadd.f32 %v1040, %v1064
    %v1089 = vadd.f32 %v1041, %v1065
    %v1090 = vld [vmem:[#allocation2 + $0x333] sm:$0xff]
    %v1091 = vld [vmem:[#allocation2 + $0x33b] sm:$0xff]
    %v1092 = vld [vmem:[#allocation2 + $0x343] sm:$0xff]
    %v1093 = vld [vmem:[#allocation2 + $0x34b] sm:$0xff]
    %v1094 = vld [vmem:[#allocation2 + $0x353] sm:$0xff]
    %v1095 = vld [vmem:[#allocation2 + $0x35b] sm:$0xff]
    %v1096 = vld [vmem:[#allocation2 + $0x363] sm:$0xff]
    %v1097 = vld [vmem:[#allocation2 + $0x36b] sm:$0xff]
    %v1098 = vld [vmem:[#allocation2 + $0x373] sm:$0xff]
    %v1099 = vld [vmem:[#allocation2 + $0x37b] sm:$0xff]
    %v1100 = vld [vmem:[#allocation2 + $0x383] sm:$0xff]
    %v1101 = vld [vmem:[#allocation2 + $0x38b] sm:$0xff]
    %v1102 = vld [vmem:[#allocation2 + $0x393] sm:$0xff]
    %v1103 = vld [vmem:[#allocation2 + $0x39b] sm:$0xff]
    %v1104 = vld [vmem:[#allocation2 + $0x3a3] sm:$0xff]
    %v1105 = vld [vmem:[#allocation2 + $0x3ab] sm:$0xff]
    %v1106 = vld [vmem:[#allocation2 + $0x3b3] sm:$0xff]
    %v1107 = vld [vmem:[#allocation2 + $0x3bb] sm:$0xff]
    %v1108 = vld [vmem:[#allocation2 + $0x3c3] sm:$0xff]
    %v1109 = vld [vmem:[#allocation2 + $0x3cb] sm:$0xff]
    %v1110 = vld [vmem:[#allocation2 + $0x3d3] sm:$0xff]
    %v1111 = vld [vmem:[#allocation2 + $0x3db] sm:$0xff]
    %v1112 = vld [vmem:[#allocation2 + $0x3e3] sm:$0xff]
    %v1113 = vld [vmem:[#allocation2 + $0x3eb] sm:$0xff]
    %v1114 = vadd.f32 %v1066, %v1090
    %v1115 = vadd.f32 %v1067, %v1091
    %v1116 = vadd.f32 %v1068, %v1092
    %v1117 = vadd.f32 %v1069, %v1093
    %v1118 = vadd.f32 %v1070, %v1094
    %v1119 = vadd.f32 %v1071, %v1095
    %v1120 = vadd.f32 %v1072, %v1096
    %v1121 = vadd.f32 %v1073, %v1097
    %v1122 = vadd.f32 %v1074, %v1098
    %v1123 = vadd.f32 %v1075, %v1099
    %v1124 = vadd.f32 %v1076, %v1100
    %v1125 = vadd.f32 %v1077, %v1101
    %v1126 = vadd.f32 %v1078, %v1102
    %v1127 = vadd.f32 %v1079, %v1103
    %v1128 = vadd.f32 %v1080, %v1104
    %v1129 = vadd.f32 %v1081, %v1105
    %v1130 = vadd.f32 %v1082, %v1106
    %v1131 = vadd.f32 %v1083, %v1107
    %v1132 = vadd.f32 %v1084, %v1108
    %v1133 = vadd.f32 %v1085, %v1109
    %v1134 = vadd.f32 %v1086, %v1110
    %v1135 = vadd.f32 %v1087, %v1111
    %v1136 = vadd.f32 %v1088, %v1112
    %v1137 = vadd.f32 %v1089, %v1113
    %v1138 = vld [vmem:[#allocation2 + $0x444] sm:$0xff]
    %v1139 = vld [vmem:[#allocation2 + $0x44c] sm:$0xff]
    %v1140 = vld [vmem:[#allocation2 + $0x454] sm:$0xff]
    %v1141 = vld [vmem:[#allocation2 + $0x45c] sm:$0xff]
    %v1142 = vld [vmem:[#allocation2 + $0x464] sm:$0xff]
    %v1143 = vld [vmem:[#allocation2 + $0x46c] sm:$0xff]
    %v1144 = vld [vmem:[#allocation2 + $0x474] sm:$0xff]
    %v1145 = vld [vmem:[#allocation2 + $0x47c] sm:$0xff]
    %v1146 = vld [vmem:[#allocation2 + $0x484] sm:$0xff]
    %v1147 = vld [vmem:[#allocation2 + $0x48c] sm:$0xff]
    %v1148 = vld [vmem:[#allocation2 + $0x494] sm:$0xff]
    %v1149 = vld [vmem:[#allocation2 + $0x49c] sm:$0xff]
    %v1150 = vld [vmem:[#allocation2 + $0x4a4] sm:$0xff]
    %v1151 = vld [vmem:[#allocation2 + $0x4ac] sm:$0xff]
    %v1152 = vld [vmem:[#allocation2 + $0x4b4] sm:$0xff]
    %v1153 = vld [vmem:[#allocation2 + $0x4bc] sm:$0xff]
    %v1154 = vld [vmem:[#allocation2 + $0x4c4] sm:$0xff]
    %v1155 = vld [vmem:[#allocation2 + $0x4cc] sm:$0xff]
    %v1156 = vld [vmem:[#allocation2 + $0x4d4] sm:$0xff]
    %v1157 = vld [vmem:[#allocation2 + $0x4dc] sm:$0xff]
    %v1158 = vld [vmem:[#allocation2 + $0x4e4] sm:$0xff]
    %v1159 = vld [vmem:[#allocation2 + $0x4ec] sm:$0xff]
    %v1160 = vld [vmem:[#allocation2 + $0x4f4] sm:$0xff]
    %v1161 = vld [vmem:[#allocation2 + $0x4fc] sm:$0xff]
    %v1162 = vadd.f32 %v1114, %v1138
    %v1163 = vadd.f32 %v1115, %v1139
    %v1164 = vadd.f32 %v1116, %v1140
    %v1165 = vadd.f32 %v1117, %v1141
    %v1166 = vadd.f32 %v1118, %v1142
    %v1167 = vadd.f32 %v1119, %v1143
    %v1168 = vadd.f32 %v1120, %v1144
    %v1169 = vadd.f32 %v1121, %v1145
    %v1170 = vadd.f32 %v1122, %v1146
    %v1171 = vadd.f32 %v1123, %v1147
    %v1172 = vadd.f32 %v1124, %v1148
    %v1173 = vadd.f32 %v1125, %v1149
    %v1174 = vadd.f32 %v1126, %v1150
    %v1175 = vadd.f32 %v1127, %v1151
    %v1176 = vadd.f32 %v1128, %v1152
    %v1177 = vadd.f32 %v1129, %v1153
    %v1178 = vadd.f32 %v1130, %v1154
    %v1179 = vadd.f32 %v1131, %v1155
    %v1180 = vadd.f32 %v1132, %v1156
    %v1181 = vadd.f32 %v1133, %v1157
    %v1182 = vadd.f32 %v1134, %v1158
    %v1183 = vadd.f32 %v1135, %v1159
    %v1184 = vadd.f32 %v1136, %v1160
    %v1185 = vadd.f32 %v1137, %v1161
    %v1186 = vpack.c.bf16 %v1163, %v1162
    %v1187 = vpack.c.bf16 %v1165, %v1164
    %v1188 = vpack.c.bf16 %v1167, %v1166
    %v1189 = vpack.c.bf16 %v1169, %v1168
    %v1190 = vpack.c.bf16 %v1171, %v1170
    %v1191 = vpack.c.bf16 %v1173, %v1172
    %v1192 = vpack.c.bf16 %v1175, %v1174
    %v1193 = vpack.c.bf16 %v1177, %v1176
    %v1194 = vpack.c.bf16 %v1179, %v1178
    %v1195 = vpack.c.bf16 %v1181, %v1180
    %v1196 = vpack.c.bf16 %v1183, %v1182
    %v1197 = vpack.c.bf16 %v1185, %v1184
    %v1198 = vld [vmem:[#allocation2 + $0xc0] sm:$0xff]
    %v1199 = vld [vmem:[#allocation2 + $0xc8] sm:$0xff]
    %v1200 = vld [vmem:[#allocation2 + $0x1d1] sm:$0xff]
    %v1201 = vld [vmem:[#allocation2 + $0x1d9] sm:$0xff]
    %v1202 = vadd.f32 %v1198, %v1200
    %v1203 = vadd.f32 %v1199, %v1201
    %v1204 = vld [vmem:[#allocation2 + $0x2e2] sm:$0xff]
    %v1205 = vld [vmem:[#allocation2 + $0x2ea] sm:$0xff]
    %v1206 = vadd.f32 %v1202, %v1204
    %v1207 = vadd.f32 %v1203, %v1205
    %v1208 = vld [vmem:[#allocation2 + $0x3f3] sm:$0xff]
    %v1209 = vld [vmem:[#allocation2 + $0x3fb] sm:$0xff]
    %v1210 = vadd.f32 %v1206, %v1208
    %v1211 = vadd.f32 %v1207, %v1209
    %v1212 = vld [vmem:[#allocation2 + $0x504] sm:$0xff]
    %v1213 = vld [vmem:[#allocation2 + $0x50c] sm:$0xff]
    %v1214 = vadd.f32 %v1210, %v1212
    %v1215 = vadd.f32 %v1211, %v1213
    %v1216 = vpack.c.bf16 %v1215, %v1214
    %v1217 = vld [vmem:[%s3] sm:$0xf]
    %v1218 = vld [vmem:[%s3 + $0x4] sm:$0xf]
    %v1219 = vld [vmem:[%s3 + $0x8] sm:$0xf]
    %v1220 = vld [vmem:[%s3 + $0xc] sm:$0xf]
    %v1221 = vld [vmem:[%s3 + $0x10] sm:$0xf]
    %v1222 = vld [vmem:[%s3 + $0x14] sm:$0xf]
    %v1223 = vld [vmem:[%s3 + $0x18] sm:$0xf]
    %v1224 = vld [vmem:[%s3 + $0x1c] sm:$0xf]
    %v1225 = vld [vmem:[%s3 + $0x20] sm:$0xf]
    %v1226 = vld [vmem:[%s3 + $0x24] sm:$0xf]
    %v1227 = vld [vmem:[%s3 + $0x28] sm:$0xf]
    %v1228 = vld [vmem:[%s3 + $0x2c] sm:$0xf]
    %v1229 = vld [vmem:[%s3 + $0x30] sm:$0xf]
    %v1230 = vld [vmem:[%s3 + $0x34] sm:$0xf]
    %v1231 = vld [vmem:[%s3 + $0x38] sm:$0xf]
    %v1232 = vld [vmem:[%s3 + $0x3c] sm:$0xf]
    %v1233 = vld [vmem:[%s3 + $0x40] sm:$0xf]
    %v1234 = vld [vmem:[%s3 + $0x44] sm:$0xf]
    %v1235 = vld [vmem:[%s3 + $0x48] sm:$0xf]
    %v1236 = vld [vmem:[%s3 + $0x4c] sm:$0xf]
    %v1237 = vld [vmem:[%s3 + $0x50] sm:$0xf]
    %v1238 = vld [vmem:[%s3 + $0x54] sm:$0xf]
    %v1239 = vld [vmem:[%s3 + $0x58] sm:$0xf]
    %v1240 = vld [vmem:[%s3 + $0x5c] sm:$0xf]
    %v1241 = vld [vmem:[%s3 + $0x60] sm:$0xf]
    %v1242 = vld [vmem:[%s3 + $0x64] sm:$0xf]
    %v1243 = vld [vmem:[%s3 + $0x68] sm:$0xf]
    %v1244 = vld [vmem:[%s3 + $0x6c] sm:$0xf]
    %v1245 = vld [vmem:[%s3 + $0x70] sm:$0xf]
    %v1246 = vld [vmem:[%s3 + $0x74] sm:$0xf]
    %v1247 = vld [vmem:[%s3 + $0x78] sm:$0xf]
    %v1248 = vld [vmem:[%s3 + $0x7c] sm:$0xf]
    %v1249 = vld [vmem:[#allocation2 + $0xd0] sm:$0xff]
    %v1250 = vld [vmem:[#allocation2 + $0xd8] sm:$0xff]
    %v1251 = vld [vmem:[#allocation2 + $0x1e1] sm:$0xff]
    %v1252 = vld [vmem:[#allocation2 + $0x1e9] sm:$0xff]
    %v1253 = vadd.f32 %v1249, %v1251
    %v1254 = vadd.f32 %v1250, %v1252
    %v1255 = vld [vmem:[#allocation2 + $0x2f2] sm:$0xff]
    %v1256 = vld [vmem:[#allocation2 + $0x2fa] sm:$0xff]
    %v1257 = vadd.f32 %v1253, %v1255
    %v1258 = vadd.f32 %v1254, %v1256
    %v1259 = vld [vmem:[#allocation2 + $0x403] sm:$0xff]
    %v1260 = vld [vmem:[#allocation2 + $0x40b] sm:$0xff]
    %v1261 = vadd.f32 %v1257, %v1259
    %v1262 = vadd.f32 %v1258, %v1260
    %v1263 = vld [vmem:[#allocation2 + $0x514] sm:$0xff]
    %v1264 = vld [vmem:[#allocation2 + $0x51c] sm:$0xff]
    %v1265 = vadd.f32 %v1261, %v1263
    %v1266 = vadd.f32 %v1262, %v1264
    %v1267 = vpack.c.bf16 %v1266, %v1265
    %v1268 = vld [vmem:[#allocation2 + $0xe0] sm:$0xff]
    %v1269 = vld [vmem:[#allocation2 + $0xe8] sm:$0xff]
    %v1270 = vld [vmem:[#allocation2 + $0x1f1] sm:$0xff]
    %v1271 = vld [vmem:[#allocation2 + $0x1f9] sm:$0xff]
    %v1272 = vadd.f32 %v1268, %v1270
    %v1273 = vadd.f32 %v1269, %v1271
    %v1274 = vld [vmem:[#allocation2 + $0x302] sm:$0xff]
    %v1275 = vld [vmem:[#allocation2 + $0x30a] sm:$0xff]
    %v1276 = vadd.f32 %v1272, %v1274
    %v1277 = vadd.f32 %v1273, %v1275
    %v1278 = vld [vmem:[#allocation2 + $0x413] sm:$0xff]
    %v1279 = vld [vmem:[#allocation2 + $0x41b] sm:$0xff]
    %v1280 = vadd.f32 %v1276, %v1278
    %v1281 = vadd.f32 %v1277, %v1279
    %v1282 = vld [vmem:[#allocation2 + $0x524] sm:$0xff]
    %v1283 = vld [vmem:[#allocation2 + $0x52c] sm:$0xff]
    %v1284 = vadd.f32 %v1280, %v1282
    %v1285 = vadd.f32 %v1281, %v1283
    %v1286 = vpack.c.bf16 %v1285, %v1284
    %v1287 = vld [vmem:[%s3 + $0x80] sm:$0xf]
    %v1288 = vld [vmem:[%s3 + $0x84] sm:$0xf]
    %v1289 = vld [vmem:[%s3 + $0x88] sm:$0xf]
    %v1290 = vld [vmem:[%s3 + $0x8c] sm:$0xf]
    %v1291 = vld [vmem:[%s3 + $0x90] sm:$0xf]
    %v1292 = vld [vmem:[%s3 + $0x94] sm:$0xf]
    %v1293 = vld [vmem:[%s3 + $0x98] sm:$0xf]
    %v1294 = vld [vmem:[%s3 + $0x9c] sm:$0xf]
    %v1295 = vld [vmem:[%s3 + $0xa0] sm:$0xf]
    %v1296 = vld [vmem:[%s3 + $0xa4] sm:$0xf]
    %v1297 = vld [vmem:[%s3 + $0xa8] sm:$0xf]
    %v1298 = vld [vmem:[%s3 + $0xac] sm:$0xf]
    %v1299 = vld [vmem:[%s3 + $0xb0] sm:$0xf]
    %v1300 = vld [vmem:[%s3 + $0xb4] sm:$0xf]
    %v1301 = vld [vmem:[%s3 + $0xb8] sm:$0xf]
    %v1302 = vld [vmem:[%s3 + $0xbc] sm:$0xf]
    %v1303 = vld [vmem:[%s3 + $0xc0] sm:$0xf]
    %v1304 = vld [vmem:[%s3 + $0xc4] sm:$0xf]
    %v1305 = vld [vmem:[%s3 + $0xc8] sm:$0xf]
    %v1306 = vld [vmem:[%s3 + $0xcc] sm:$0xf]
    %v1307 = vld [vmem:[%s3 + $0xd0] sm:$0xf]
    %v1308 = vld [vmem:[%s3 + $0xd4] sm:$0xf]
    %v1309 = vld [vmem:[%s3 + $0xd8] sm:$0xf]
    %v1310 = vld [vmem:[%s3 + $0xdc] sm:$0xf]
    %v1311 = vld [vmem:[%s3 + $0xe0] sm:$0xf]
    %v1312 = vld [vmem:[%s3 + $0xe4] sm:$0xf]
    %v1313 = vld [vmem:[%s3 + $0xe8] sm:$0xf]
    %v1314 = vld [vmem:[%s3 + $0xec] sm:$0xf]
    %v1315 = vld [vmem:[%s3 + $0xf0] sm:$0xf]
    %v1316 = vld [vmem:[%s3 + $0xf4] sm:$0xf]
    %v1317 = vld [vmem:[%s3 + $0xf8] sm:$0xf]
    %v1318 = vld [vmem:[%s3 + $0xfc] sm:$0xf]
    %v1351 = vunpack.c.l.b16 %v1287
    %v1352 = vunpack.c.l.b16 %v1288
    %v1353 = vunpack.c.l.b16 %v1289
    %v1354 = vunpack.c.l.b16 %v1290
    %v1355 = vunpack.c.l.b16 %v1291
    %v1356 = vunpack.c.l.b16 %v1292
    %v1357 = vunpack.c.l.b16 %v1293
    %v1358 = vunpack.c.l.b16 %v1294
    %v1359 = vunpack.c.l.b16 %v1295
    %v1360 = vunpack.c.l.b16 %v1296
    %v1361 = vunpack.c.l.b16 %v1297
    %v1362 = vunpack.c.l.b16 %v1298
    %v1363 = vunpack.c.l.b16 %v1299
    %v1364 = vunpack.c.l.b16 %v1300
    %v1365 = vunpack.c.l.b16 %v1301
    %v1366 = vunpack.c.l.b16 %v1302
    %v1367 = vunpack.c.l.b16 %v1303
    %v1368 = vunpack.c.l.b16 %v1304
    %v1369 = vunpack.c.l.b16 %v1305
    %v1370 = vunpack.c.l.b16 %v1306
    %v1371 = vunpack.c.l.b16 %v1307
    %v1372 = vunpack.c.l.b16 %v1308
    %v1373 = vunpack.c.l.b16 %v1309
    %v1374 = vunpack.c.l.b16 %v1310
    %v1375 = vunpack.c.l.b16 %v1311
    %v1376 = vunpack.c.l.b16 %v1312
    %v1377 = vunpack.c.l.b16 %v1313
    %v1378 = vunpack.c.l.b16 %v1314
    %v1379 = vunpack.c.l.b16 %v1315
    %v1380 = vunpack.c.l.b16 %v1316
    %v1381 = vunpack.c.l.b16 %v1317
    %v1382 = vunpack.c.l.b16 %v1318
    %v1383 = vpack.c.b16 %v1352, %v1351
    %v1384 = vpack.c.b16 %v1354, %v1353
    %v1385 = vpack.c.b16 %v1356, %v1355
    %v1386 = vpack.c.b16 %v1358, %v1357
    %v1387 = vpack.c.b16 %v1360, %v1359
    %v1388 = vpack.c.b16 %v1362, %v1361
    %v1389 = vpack.c.b16 %v1364, %v1363
    %v1390 = vpack.c.b16 %v1366, %v1365
    %v1391 = vpack.c.b16 %v1368, %v1367
    %v1392 = vpack.c.b16 %v1370, %v1369
    %v1393 = vpack.c.b16 %v1372, %v1371
    %v1394 = vpack.c.b16 %v1374, %v1373
    %v1395 = vpack.c.b16 %v1376, %v1375
    %v1396 = vpack.c.b16 %v1378, %v1377
    %v1397 = vpack.c.b16 %v1380, %v1379
    %v1398 = vpack.c.b16 %v1382, %v1381
    %1415 = vmatprep.subr.bf16.mxu0 0
    %1416 = vmatpush1.bf16.msra.mxu0 %v1383
    %1417 = vmatprep.subr.bf16.mxu0 0
    %1418 = vmatpush1.bf16.msra.mxu0 %v1384
    %1419 = vmatprep.subr.bf16.mxu0 0
    %1420 = vmatpush1.bf16.msra.mxu0 %v1385
    %1421 = vmatprep.subr.bf16.mxu0 0
    %1422 = vmatpush1.bf16.msra.mxu0 %v1386
    %1423 = vmatprep.subr.bf16.mxu0 0
    %1424 = vmatpush1.bf16.msra.mxu0 %v1387
    %1425 = vmatprep.subr.bf16.mxu0 0
    %1426 = vmatpush1.bf16.msra.mxu0 %v1388
    %1427 = vmatprep.subr.bf16.mxu0 0
    %1428 = vmatpush1.bf16.msra.mxu0 %v1389
    %1429 = vmatprep.subr.bf16.mxu0 0
    %1430 = vmatpush1.bf16.msra.mxu0 %v1390
    %1431 = vmatprep.subr.bf16.mxu0 0
    %1432 = vmatpush1.bf16.msra.mxu0 %v1391
    %1433 = vmatprep.subr.bf16.mxu0 0
    %1434 = vmatpush1.bf16.msra.mxu0 %v1392
    %1435 = vmatprep.subr.bf16.mxu0 0
    %1436 = vmatpush1.bf16.msra.mxu0 %v1393
    %1437 = vmatprep.subr.bf16.mxu0 0
    %1438 = vmatpush1.bf16.msra.mxu0 %v1394
    %1439 = vmatprep.subr.bf16.mxu0 0
    %1440 = vmatpush1.bf16.msra.mxu0 %v1395
    %1441 = vmatprep.subr.bf16.mxu0 0
    %1442 = vmatpush1.bf16.msra.mxu0 %v1396
    %1443 = vmatprep.subr.bf16.mxu0 0
    %1444 = vmatpush1.bf16.msra.mxu0 %v1397
    %1445 = vmatprep.subr.bf16.mxu0 0
    %1446 = vmatpush1.bf16.msra.mxu0 %v1398
    %1447 = vmatprep.mubr.bf16.mxu0 %v1189
    %1448 = vmatmul.mubr.bf16.gmra.mrb[0].mxu0 %v1188
    %v1449 = vpop.f32.mrb[0].mxu0
    %v1450 = vadd.f32 0.0, %v1449
    %v1451 = vpop.f32.mrb[0].mxu0
    %v1452 = vpop.f32.mrb[0].mxu0
    %v1453 = vadd.f32 0.0, %v1452
    %v1454 = vpop.f32.mrb[0].mxu0
    %1455 = vmatprep.mubr.bf16.mxu0 %v1190
    %1456 = vmatmul.mubr.bf16.gmra.mrb[0].mxu0 %v1189
    %v1457 = vpop.f32.mrb[0].mxu0
    %v1458 = vadd.f32 0.0, %v1457
    %v1459 = vpop.f32.mrb[0].mxu0
    %v1460 = vpop.f32.mrb[0].mxu0
    %v1461 = vadd.f32 0.0, %v1460
    %v1462 = vpop.f32.mrb[0].mxu0
    %1463 = vmatprep.mubr.bf16.mxu0 %v1191
    %1464 = vmatmul.mubr.bf16.gmra.mrb[0].mxu0 %v1190
    %v1465 = vpop.f32.mrb[0].mxu0
    %v1466 = vadd.f32 0.0, %v1465
    %v1467 = vpop.f32.mrb[0].mxu0
    %v1468 = vpop.f32.mrb[0].mxu0
    %v1469 = vadd.f32 0.0, %v1468
    %v1470 = vpop.f32.mrb[0].mxu0
    %1471 = vmatprep.mubr.bf16.mxu0 %v1192
    %1472 = vmatmul.mubr.bf16.gmra.mrb[0].mxu0 %v1191
    %v1473 = vpop.f32.mrb[0].mxu0
    %v1474 = vadd.f32 0.0, %v1473
    %v1475 = vpop.f32.mrb[0].mxu0
    %v1476 = vpop.f32.mrb[0].mxu0
    %v1477 = vadd.f32 0.0, %v1476
    %v1478 = vpop.f32.mrb[0].mxu0
    %1479 = vmatprep.mubr.bf16.mxu0 %v1193
    %1480 = vmatmul.mubr.bf16.gmra.mrb[0].mxu0 %v1192
    %v1481 = vpop.f32.mrb[0].mxu0
    %v1482 = vadd.f32 0.0, %v1481
    %v1483 = vpop.f32.mrb[0].mxu0
    %v1484 = vpop.f32.mrb[0].mxu0
    %v1485 = vadd.f32 0.0, %v1484
    %v1486 = vpop.f32.mrb[0].mxu0
    %1487 = vmatprep.mubr.bf16.mxu0 %v1194
    %1488 = vmatmul.mubr.bf16.gmra.mrb[0].mxu0 %v1193
    %v1489 = vpop.f32.mrb[0].mxu0
    %v1490 = vadd.f32 0.0, %v1489
    %v1491 = vpop.f32.mrb[0].mxu0
    %v1492 = vpop.f32.mrb[0].mxu0
    %v1493 = vadd.f32 0.0, %v1492
    %v1494 = vpop.f32.mrb[0].mxu0
    %1495 = vmatprep.mubr.bf16.mxu0 %v1195
    %1496 = vmatmul.mubr.bf16.gmra.mrb[0].mxu0 %v1194
    %v1497 = vpop.f32.mrb[0].mxu0
    %v1498 = vadd.f32 0.0, %v1497
    %v1499 = vpop.f32.mrb[0].mxu0
    %v1500 = vpop.f32.mrb[0].mxu0
    %v1501 = vadd.f32 0.0, %v1500
    %v1502 = vpop.f32.mrb[0].mxu0
    %1503 = vmatprep.mubr.bf16.mxu0 %v1196
    %1504 = vmatmul.mubr.bf16.gmra.mrb[0].mxu0 %v1195
    %v1505 = vpop.f32.mrb[0].mxu0
    %v1506 = vadd.f32 0.0, %v1505
    %v1507 = vpop.f32.mrb[0].mxu0
    %v1508 = vpop.f32.mrb[0].mxu0
    %v1509 = vadd.f32 0.0, %v1508
    %v1510 = vpop.f32.mrb[0].mxu0
    %1511 = vmatprep.mubr.bf16.mxu0 %v1197
    %1512 = vmatmul.mubr.bf16.gmra.mrb[0].mxu0 %v1196
    %v1513 = vpop.f32.mrb[0].mxu0
    %v1514 = vadd.f32 0.0, %v1513
    %v1515 = vpop.f32.mrb[0].mxu0
    %v1516 = vpop.f32.mrb[0].mxu0
    %v1517 = vadd.f32 0.0, %v1516
    %v1518 = vpop.f32.mrb[0].mxu0
    %1519 = vmatprep.mubr.bf16.mxu0 %v1216
    %1520 = vmatmul.mubr.bf16.gmra.mrb[0].mxu0 %v1197
    %v1521 = vpop.f32.mrb[0].mxu0
    %v1522 = vadd.f32 0.0, %v1521
    %v1523 = vpop.f32.mrb[0].mxu0
    %v1524 = vpop.f32.mrb[0].mxu0
    %v1525 = vadd.f32 0.0, %v1524
    %v1526 = vpop.f32.mrb[0].mxu0
    %1527 = vmatprep.mubr.bf16.mxu0 %v1267
    %1528 = vmatmul.mubr.bf16.gmra.mrb[0].mxu0 %v1216
    %v1529 = vpop.f32.mrb[0].mxu0
    %v1530 = vadd.f32 0.0, %v1529
    %v1531 = vpop.f32.mrb[0].mxu0
    %v1532 = vpop.f32.mrb[0].mxu0
    %v1533 = vadd.f32 0.0, %v1532
    %v1534 = vpop.f32.mrb[0].mxu0
    %1535 = vmatprep.mubr.bf16.mxu0 %v1286
    %1536 = vmatmul.mubr.bf16.gmra.mrb[0].mxu0 %v1267
    %v1537 = vpop.f32.mrb[0].mxu0
    %v1538 = vadd.f32 0.0, %v1537
    %v1539 = vpop.f32.mrb[0].mxu0
    %v1540 = vpop.f32.mrb[0].mxu0
    %v1541 = vadd.f32 0.0, %v1540
    %v1542 = vpop.f32.mrb[0].mxu0
    %1543 = vdwg.mxu0
    %v1576 = vunpack.c.l.b16 %v1217
    %v1577 = vunpack.c.l.b16 %v1218
    %v1578 = vunpack.c.l.b16 %v1219
    %v1579 = vunpack.c.l.b16 %v1220
    %v1580 = vunpack.c.l.b16 %v1221
    %v1581 = vunpack.c.l.b16 %v1222
    %v1582 = vunpack.c.l.b16 %v1223
    %v1583 = vunpack.c.l.b16 %v1224
    %v1584 = vunpack.c.l.b16 %v1225
    %v1585 = vunpack.c.l.b16 %v1226
    %v1586 = vunpack.c.l.b16 %v1227
    %v1587 = vunpack.c.l.b16 %v1228
    %v1588 = vunpack.c.l.b16 %v1229
    %v1589 = vunpack.c.l.b16 %v1230
    %v1590 = vunpack.c.l.b16 %v1231
    %v1591 = vunpack.c.l.b16 %v1232
    %v1592 = vunpack.c.l.b16 %v1233
    %v1593 = vunpack.c.l.b16 %v1234
    %v1594 = vunpack.c.l.b16 %v1235
    %v1595 = vunpack.c.l.b16 %v1236
    %v1596 = vunpack.c.l.b16 %v1237
    %v1597 = vunpack.c.l.b16 %v1238
    %v1598 = vunpack.c.l.b16 %v1239
    %v1599 = vunpack.c.l.b16 %v1240
    %v1600 = vunpack.c.l.b16 %v1241
    %v1601 = vunpack.c.l.b16 %v1242
    %v1602 = vunpack.c.l.b16 %v1243
    %v1603 = vunpack.c.l.b16 %v1244
    %v1604 = vunpack.c.l.b16 %v1245
    %v1605 = vunpack.c.l.b16 %v1246
    %v1606 = vunpack.c.l.b16 %v1247
    %v1607 = vunpack.c.l.b16 %v1248
    %v1608 = vpack.c.b16 %v1577, %v1576
    %v1609 = vpack.c.b16 %v1579, %v1578
    %v1610 = vpack.c.b16 %v1581, %v1580
    %v1611 = vpack.c.b16 %v1583, %v1582
    %v1612 = vpack.c.b16 %v1585, %v1584
    %v1613 = vpack.c.b16 %v1587, %v1586
    %v1614 = vpack.c.b16 %v1589, %v1588
    %v1615 = vpack.c.b16 %v1591, %v1590
    %v1616 = vpack.c.b16 %v1593, %v1592
    %v1617 = vpack.c.b16 %v1595, %v1594
    %v1618 = vpack.c.b16 %v1597, %v1596
    %v1619 = vpack.c.b16 %v1599, %v1598
    %v1620 = vpack.c.b16 %v1601, %v1600
    %v1621 = vpack.c.b16 %v1603, %v1602
    %v1622 = vpack.c.b16 %v1605, %v1604
    %v1623 = vpack.c.b16 %v1607, %v1606
    %1640 = vmatprep.subr.bf16.mxu0 0
    %1641 = vmatpush1.bf16.msra.mxu0 %v1608
    %1642 = vmatprep.subr.bf16.mxu0 0
    %1643 = vmatpush1.bf16.msra.mxu0 %v1609
    %1644 = vmatprep.subr.bf16.mxu0 0
    %1645 = vmatpush1.bf16.msra.mxu0 %v1610
    %1646 = vmatprep.subr.bf16.mxu0 0
    %1647 = vmatpush1.bf16.msra.mxu0 %v1611
    %1648 = vmatprep.subr.bf16.mxu0 0
    %1649 = vmatpush1.bf16.msra.mxu0 %v1612
    %1650 = vmatprep.subr.bf16.mxu0 0
    %1651 = vmatpush1.bf16.msra.mxu0 %v1613
    %1652 = vmatprep.subr.bf16.mxu0 0
    %1653 = vmatpush1.bf16.msra.mxu0 %v1614
    %1654 = vmatprep.subr.bf16.mxu0 0
    %1655 = vmatpush1.bf16.msra.mxu0 %v1615
    %1656 = vmatprep.subr.bf16.mxu0 0
    %1657 = vmatpush1.bf16.msra.mxu0 %v1616
    %1658 = vmatprep.subr.bf16.mxu0 0
    %1659 = vmatpush1.bf16.msra.mxu0 %v1617
    %1660 = vmatprep.subr.bf16.mxu0 0
    %1661 = vmatpush1.bf16.msra.mxu0 %v1618
    %1662 = vmatprep.subr.bf16.mxu0 0
    %1663 = vmatpush1.bf16.msra.mxu0 %v1619
    %1664 = vmatprep.subr.bf16.mxu0 0
    %1665 = vmatpush1.bf16.msra.mxu0 %v1620
    %1666 = vmatprep.subr.bf16.mxu0 0
    %1667 = vmatpush1.bf16.msra.mxu0 %v1621
    %1668 = vmatprep.subr.bf16.mxu0 0
    %1669 = vmatpush1.bf16.msra.mxu0 %v1622
    %1670 = vmatprep.subr.bf16.mxu0 0
    %1671 = vmatpush1.bf16.msra.mxu0 %v1623
    %1672 = vmatprep.mubr.bf16.mxu0 %v1187
    %1673 = vmatmul.mubr.bf16.gmra.mrb[0].mxu0 %v1186
    %v1674 = vpop.f32.mrb[0].mxu0
    %v1675 = vadd.f32 %v1450, %v1674
    %v1676 = vpop.f32.mrb[0].mxu0
    %v1677 = vpop.f32.mrb[0].mxu0
    %v1678 = vadd.f32 %v1453, %v1677
    %v1679 = vpop.f32.mrb[0].mxu0
    %1680 = vmatprep.mubr.bf16.mxu0 %v1188
    %1681 = vmatmul.mubr.bf16.gmra.mrb[0].mxu0 %v1187
    %v1682 = vpop.f32.mrb[0].mxu0
    %v1683 = vadd.f32 %v1458, %v1682
    %v1684 = vpop.f32.mrb[0].mxu0
    %v1685 = vpop.f32.mrb[0].mxu0
    %v1686 = vadd.f32 %v1461, %v1685
    %v1687 = vpop.f32.mrb[0].mxu0
    %1688 = vmatprep.mubr.bf16.mxu0 %v1189
    %1689 = vmatmul.mubr.bf16.gmra.mrb[0].mxu0 %v1188
    %v1690 = vpop.f32.mrb[0].mxu0
    %v1691 = vadd.f32 %v1466, %v1690
    %v1692 = vpop.f32.mrb[0].mxu0
    %v1693 = vpop.f32.mrb[0].mxu0
    %v1694 = vadd.f32 %v1469, %v1693
    %v1695 = vpop.f32.mrb[0].mxu0
    %1696 = vmatprep.mubr.bf16.mxu0 %v1190
    %1697 = vmatmul.mubr.bf16.gmra.mrb[0].mxu0 %v1189
    %v1698 = vpop.f32.mrb[0].mxu0
    %v1699 = vadd.f32 %v1474, %v1698
    %v1700 = vpop.f32.mrb[0].mxu0
    %v1701 = vpop.f32.mrb[0].mxu0
    %v1702 = vadd.f32 %v1477, %v1701
    %v1703 = vpop.f32.mrb[0].mxu0
    %1704 = vmatprep.mubr.bf16.mxu0 %v1191
    %1705 = vmatmul.mubr.bf16.gmra.mrb[0].mxu0 %v1190
    %v1706 = vpop.f32.mrb[0].mxu0
    %v1707 = vadd.f32 %v1482, %v1706
    %v1708 = vpop.f32.mrb[0].mxu0
    %v1709 = vpop.f32.mrb[0].mxu0
    %v1710 = vadd.f32 %v1485, %v1709
    %v1711 = vpop.f32.mrb[0].mxu0
    %1712 = vmatprep.mubr.bf16.mxu0 %v1192
    %1713 = vmatmul.mubr.bf16.gmra.mrb[0].mxu0 %v1191
    %v1714 = vpop.f32.mrb[0].mxu0
    %v1715 = vadd.f32 %v1490, %v1714
    %v1716 = vpop.f32.mrb[0].mxu0
    %v1717 = vpop.f32.mrb[0].mxu0
    %v1718 = vadd.f32 %v1493, %v1717
    %v1719 = vpop.f32.mrb[0].mxu0
    %1720 = vmatprep.mubr.bf16.mxu0 %v1193
    %1721 = vmatmul.mubr.bf16.gmra.mrb[0].mxu0 %v1192
    %v1722 = vpop.f32.mrb[0].mxu0
    %v1723 = vadd.f32 %v1498, %v1722
    %v1724 = vpop.f32.mrb[0].mxu0
    %v1725 = vpop.f32.mrb[0].mxu0
    %v1726 = vadd.f32 %v1501, %v1725
    %v1727 = vpop.f32.mrb[0].mxu0
    %1728 = vmatprep.mubr.bf16.mxu0 %v1194
    %1729 = vmatmul.mubr.bf16.gmra.mrb[0].mxu0 %v1193
    %v1730 = vpop.f32.mrb[0].mxu0
    %v1731 = vadd.f32 %v1506, %v1730
    %v1732 = vpop.f32.mrb[0].mxu0
    %v1733 = vpop.f32.mrb[0].mxu0
    %v1734 = vadd.f32 %v1509, %v1733
    %v1735 = vpop.f32.mrb[0].mxu0
    %1736 = vmatprep.mubr.bf16.mxu0 %v1195
    %1737 = vmatmul.mubr.bf16.gmra.mrb[0].mxu0 %v1194
    %v1738 = vpop.f32.mrb[0].mxu0
    %v1739 = vadd.f32 %v1514, %v1738
    %v1740 = vpop.f32.mrb[0].mxu0
    %v1741 = vpop.f32.mrb[0].mxu0
    %v1742 = vadd.f32 %v1517, %v1741
    %v1743 = vpop.f32.mrb[0].mxu0
    %1744 = vmatprep.mubr.bf16.mxu0 %v1196
    %1745 = vmatmul.mubr.bf16.gmra.mrb[0].mxu0 %v1195
    %v1746 = vpop.f32.mrb[0].mxu0
    %v1747 = vadd.f32 %v1522, %v1746
    %v1748 = vpop.f32.mrb[0].mxu0
    %v1749 = vpop.f32.mrb[0].mxu0
    %v1750 = vadd.f32 %v1525, %v1749
    %v1751 = vpop.f32.mrb[0].mxu0
    %1752 = vmatprep.mubr.bf16.mxu0 %v1197
    %1753 = vmatmul.mubr.bf16.gmra.mrb[0].mxu0 %v1196
    %v1754 = vpop.f32.mrb[0].mxu0
    %v1755 = vadd.f32 %v1530, %v1754
    %v1756 = vpop.f32.mrb[0].mxu0
    %v1757 = vpop.f32.mrb[0].mxu0
    %v1758 = vadd.f32 %v1533, %v1757
    %v1759 = vpop.f32.mrb[0].mxu0
    %1760 = vmatprep.mubr.bf16.mxu0 %v1216
    %1761 = vmatmul.mubr.bf16.gmra.mrb[0].mxu0 %v1197
    %v1762 = vpop.f32.mrb[0].mxu0
    %v1763 = vadd.f32 %v1538, %v1762
    %v1764 = vpop.f32.mrb[0].mxu0
    %v1765 = vpop.f32.mrb[0].mxu0
    %v1766 = vadd.f32 %v1541, %v1765
    %v1767 = vpop.f32.mrb[0].mxu0
    %1768 = vdwg.mxu0
    %v1769 = vld [vmem:[#allocation2 + $0x40] sm:$0xff]
    %v1770 = vld [vmem:[#allocation2 + $0x48] sm:$0xff]
    %v1771 = vld [vmem:[#allocation2 + $0x50] sm:$0xff]
    %v1772 = vld [vmem:[#allocation2 + $0x58] sm:$0xff]
    %v1773 = vld [vmem:[#allocation2 + $0x60] sm:$0xff]
    %v1774 = vld [vmem:[#allocation2 + $0x68] sm:$0xff]
    %v1775 = vld [vmem:[#allocation2 + $0x70] sm:$0xff]
    %v1776 = vld [vmem:[#allocation2 + $0x78] sm:$0xff]
    %v1777 = vld [vmem:[#allocation2 + $0x80] sm:$0xff]
    %v1778 = vld [vmem:[#allocation2 + $0x88] sm:$0xff]
    %v1779 = vld [vmem:[#allocation2 + $0x90] sm:$0xff]
    %v1780 = vld [vmem:[#allocation2 + $0x98] sm:$0xff]
    %v1781 = vld [vmem:[#allocation2 + $0xa0] sm:$0xff]
    %v1782 = vld [vmem:[#allocation2 + $0xa8] sm:$0xff]
    %v1783 = vld [vmem:[#allocation2 + $0xb0] sm:$0xff]
    %v1784 = vld [vmem:[#allocation2 + $0xb8] sm:$0xff]
    %v1785 = vld [vmem:[#allocation2 + $0xc0] sm:$0xff]
    %v1786 = vld [vmem:[#allocation2 + $0xc8] sm:$0xff]
    %v1787 = vld [vmem:[#allocation2 + $0xd0] sm:$0xff]
    %v1788 = vld [vmem:[#allocation2 + $0xd8] sm:$0xff]
    %v1789 = vld [vmem:[#allocation2 + $0xe0] sm:$0xff]
    %v1790 = vld [vmem:[#allocation2 + $0xe8] sm:$0xff]
    %v1791 = vld [vmem:[#allocation2 + $0xf0] sm:$0xff]
    %v1792 = vld [vmem:[#allocation2 + $0xf8] sm:$0xff]
    %v1793 = vld [vmem:[#allocation2 + $0x151] sm:$0xff]
    %v1794 = vld [vmem:[#allocation2 + $0x159] sm:$0xff]
    %v1795 = vld [vmem:[#allocation2 + $0x161] sm:$0xff]
    %v1796 = vld [vmem:[#allocation2 + $0x169] sm:$0xff]
    %v1797 = vld [vmem:[#allocation2 + $0x171] sm:$0xff]
    %v1798 = vld [vmem:[#allocation2 + $0x179] sm:$0xff]
    %v1799 = vld [vmem:[#allocation2 + $0x181] sm:$0xff]
    %v1800 = vld [vmem:[#allocation2 + $0x189] sm:$0xff]
    %v1801 = vld [vmem:[#allocation2 + $0x191] sm:$0xff]
    %v1802 = vld [vmem:[#allocation2 + $0x199] sm:$0xff]
    %v1803 = vld [vmem:[#allocation2 + $0x1a1] sm:$0xff]
    %v1804 = vld [vmem:[#allocation2 + $0x1a9] sm:$0xff]
    %v1805 = vld [vmem:[#allocation2 + $0x1b1] sm:$0xff]
    %v1806 = vld [vmem:[#allocation2 + $0x1b9] sm:$0xff]
    %v1807 = vld [vmem:[#allocation2 + $0x1c1] sm:$0xff]
    %v1808 = vld [vmem:[#allocation2 + $0x1c9] sm:$0xff]
    %v1809 = vld [vmem:[#allocation2 + $0x1d1] sm:$0xff]
    %v1810 = vld [vmem:[#allocation2 + $0x1d9] sm:$0xff]
    %v1811 = vld [vmem:[#allocation2 + $0x1e1] sm:$0xff]
    %v1812 = vld [vmem:[#allocation2 + $0x1e9] sm:$0xff]
    %v1813 = vld [vmem:[#allocation2 + $0x1f1] sm:$0xff]
    %v1814 = vld [vmem:[#allocation2 + $0x1f9] sm:$0xff]
    %v1815 = vld [vmem:[#allocation2 + $0x201] sm:$0xff]
    %v1816 = vld [vmem:[#allocation2 + $0x209] sm:$0xff]
    %v1817 = vadd.f32 %v1769, %v1793
    %v1818 = vadd.f32 %v1770, %v1794
    %v1819 = vadd.f32 %v1771, %v1795
    %v1820 = vadd.f32 %v1772, %v1796
    %v1821 = vadd.f32 %v1773, %v1797
    %v1822 = vadd.f32 %v1774, %v1798
    %v1823 = vadd.f32 %v1775, %v1799
    %v1824 = vadd.f32 %v1776, %v1800
    %v1825 = vadd.f32 %v1777, %v1801
    %v1826 = vadd.f32 %v1778, %v1802
    %v1827 = vadd.f32 %v1779, %v1803
    %v1828 = vadd.f32 %v1780, %v1804
    %v1829 = vadd.f32 %v1781, %v1805
    %v1830 = vadd.f32 %v1782, %v1806
    %v1831 = vadd.f32 %v1783, %v1807
    %v1832 = vadd.f32 %v1784, %v1808
    %v1833 = vadd.f32 %v1785, %v1809
    %v1834 = vadd.f32 %v1786, %v1810
    %v1835 = vadd.f32 %v1787, %v1811
    %v1836 = vadd.f32 %v1788, %v1812
    %v1837 = vadd.f32 %v1789, %v1813
    %v1838 = vadd.f32 %v1790, %v1814
    %v1839 = vadd.f32 %v1791, %v1815
    %v1840 = vadd.f32 %v1792, %v1816
    %v1841 = vld [vmem:[#allocation2 + $0x262] sm:$0xff]
    %v1842 = vld [vmem:[#allocation2 + $0x26a] sm:$0xff]
    %v1843 = vld [vmem:[#allocation2 + $0x272] sm:$0xff]
    %v1844 = vld [vmem:[#allocation2 + $0x27a] sm:$0xff]
    %v1845 = vld [vmem:[#allocation2 + $0x282] sm:$0xff]
    %v1846 = vld [vmem:[#allocation2 + $0x28a] sm:$0xff]
    %v1847 = vld [vmem:[#allocation2 + $0x292] sm:$0xff]
    %v1848 = vld [vmem:[#allocation2 + $0x29a] sm:$0xff]
    %v1849 = vld [vmem:[#allocation2 + $0x2a2] sm:$0xff]
    %v1850 = vld [vmem:[#allocation2 + $0x2aa] sm:$0xff]
    %v1851 = vld [vmem:[#allocation2 + $0x2b2] sm:$0xff]
    %v1852 = vld [vmem:[#allocation2 + $0x2ba] sm:$0xff]
    %v1853 = vld [vmem:[#allocation2 + $0x2c2] sm:$0xff]
    %v1854 = vld [vmem:[#allocation2 + $0x2ca] sm:$0xff]
    %v1855 = vld [vmem:[#allocation2 + $0x2d2] sm:$0xff]
    %v1856 = vld [vmem:[#allocation2 + $0x2da] sm:$0xff]
    %v1857 = vld [vmem:[#allocation2 + $0x2e2] sm:$0xff]
    %v1858 = vld [vmem:[#allocation2 + $0x2ea] sm:$0xff]
    %v1859 = vld [vmem:[#allocation2 + $0x2f2] sm:$0xff]
    %v1860 = vld [vmem:[#allocation2 + $0x2fa] sm:$0xff]
    %v1861 = vld [vmem:[#allocation2 + $0x302] sm:$0xff]
    %v1862 = vld [vmem:[#allocation2 + $0x30a] sm:$0xff]
    %v1863 = vld [vmem:[#allocation2 + $0x312] sm:$0xff]
    %v1864 = vld [vmem:[#allocation2 + $0x31a] sm:$0xff]
    %v1865 = vadd.f32 %v1817, %v1841
    %v1866 = vadd.f32 %v1818, %v1842
    %v1867 = vadd.f32 %v1819, %v1843
    %v1868 = vadd.f32 %v1820, %v1844
    %v1869 = vadd.f32 %v1821, %v1845
    %v1870 = vadd.f32 %v1822, %v1846
    %v1871 = vadd.f32 %v1823, %v1847
    %v1872 = vadd.f32 %v1824, %v1848
    %v1873 = vadd.f32 %v1825, %v1849
    %v1874 = vadd.f32 %v1826, %v1850
    %v1875 = vadd.f32 %v1827, %v1851
    %v1876 = vadd.f32 %v1828, %v1852
    %v1877 = vadd.f32 %v1829, %v1853
    %v1878 = vadd.f32 %v1830, %v1854
    %v1879 = vadd.f32 %v1831, %v1855
    %v1880 = vadd.f32 %v1832, %v1856
    %v1881 = vadd.f32 %v1833, %v1857
    %v1882 = vadd.f32 %v1834, %v1858
    %v1883 = vadd.f32 %v1835, %v1859
    %v1884 = vadd.f32 %v1836, %v1860
    %v1885 = vadd.f32 %v1837, %v1861
    %v1886 = vadd.f32 %v1838, %v1862
    %v1887 = vadd.f32 %v1839, %v1863
    %v1888 = vadd.f32 %v1840, %v1864
    %v1889 = vld [vmem:[#allocation2 + $0x373] sm:$0xff]
    %v1890 = vld [vmem:[#allocation2 + $0x37b] sm:$0xff]
    %v1891 = vld [vmem:[#allocation2 + $0x383] sm:$0xff]
    %v1892 = vld [vmem:[#allocation2 + $0x38b] sm:$0xff]
    %v1893 = vld [vmem:[#allocation2 + $0x393] sm:$0xff]
    %v1894 = vld [vmem:[#allocation2 + $0x39b] sm:$0xff]
    %v1895 = vld [vmem:[#allocation2 + $0x3a3] sm:$0xff]
    %v1896 = vld [vmem:[#allocation2 + $0x3ab] sm:$0xff]
    %v1897 = vld [vmem:[#allocation2 + $0x3b3] sm:$0xff]
    %v1898 = vld [vmem:[#allocation2 + $0x3bb] sm:$0xff]
    %v1899 = vld [vmem:[#allocation2 + $0x3c3] sm:$0xff]
    %v1900 = vld [vmem:[#allocation2 + $0x3cb] sm:$0xff]
    %v1901 = vld [vmem:[#allocation2 + $0x3d3] sm:$0xff]
    %v1902 = vld [vmem:[#allocation2 + $0x3db] sm:$0xff]
    %v1903 = vld [vmem:[#allocation2 + $0x3e3] sm:$0xff]
    %v1904 = vld [vmem:[#allocation2 + $0x3eb] sm:$0xff]
    %v1905 = vld [vmem:[#allocation2 + $0x3f3] sm:$0xff]
    %v1906 = vld [vmem:[#allocation2 + $0x3fb] sm:$0xff]
    %v1907 = vld [vmem:[#allocation2 + $0x403] sm:$0xff]
    %v1908 = vld [vmem:[#allocation2 + $0x40b] sm:$0xff]
    %v1909 = vld [vmem:[#allocation2 + $0x413] sm:$0xff]
    %v1910 = vld [vmem:[#allocation2 + $0x41b] sm:$0xff]
    %v1911 = vld [vmem:[#allocation2 + $0x423] sm:$0xff]
    %v1912 = vld [vmem:[#allocation2 + $0x42b] sm:$0xff]
    %v1913 = vadd.f32 %v1865, %v1889
    %v1914 = vadd.f32 %v1866, %v1890
    %v1915 = vadd.f32 %v1867, %v1891
    %v1916 = vadd.f32 %v1868, %v1892
    %v1917 = vadd.f32 %v1869, %v1893
    %v1918 = vadd.f32 %v1870, %v1894
    %v1919 = vadd.f32 %v1871, %v1895
    %v1920 = vadd.f32 %v1872, %v1896
    %v1921 = vadd.f32 %v1873, %v1897
    %v1922 = vadd.f32 %v1874, %v1898
    %v1923 = vadd.f32 %v1875, %v1899
    %v1924 = vadd.f32 %v1876, %v1900
    %v1925 = vadd.f32 %v1877, %v1901
    %v1926 = vadd.f32 %v1878, %v1902
    %v1927 = vadd.f32 %v1879, %v1903
    %v1928 = vadd.f32 %v1880, %v1904
    %v1929 = vadd.f32 %v1881, %v1905
    %v1930 = vadd.f32 %v1882, %v1906
    %v1931 = vadd.f32 %v1883, %v1907
    %v1932 = vadd.f32 %v1884, %v1908
    %v1933 = vadd.f32 %v1885, %v1909
    %v1934 = vadd.f32 %v1886, %v1910
    %v1935 = vadd.f32 %v1887, %v1911
    %v1936 = vadd.f32 %v1888, %v1912
    %v1937 = vld [vmem:[#allocation2 + $0x484] sm:$0xff]
    %v1938 = vld [vmem:[#allocation2 + $0x48c] sm:$0xff]
    %v1939 = vld [vmem:[#allocation2 + $0x494] sm:$0xff]
    %v1940 = vld [vmem:[#allocation2 + $0x49c] sm:$0xff]
    %v1941 = vld [vmem:[#allocation2 + $0x4a4] sm:$0xff]
    %v1942 = vld [vmem:[#allocation2 + $0x4ac] sm:$0xff]
    %v1943 = vld [vmem:[#allocation2 + $0x4b4] sm:$0xff]
    %v1944 = vld [vmem:[#allocation2 + $0x4bc] sm:$0xff]
    %v1945 = vld [vmem:[#allocation2 + $0x4c4] sm:$0xff]
    %v1946 = vld [vmem:[#allocation2 + $0x4cc] sm:$0xff]
    %v1947 = vld [vmem:[#allocation2 + $0x4d4] sm:$0xff]
    %v1948 = vld [vmem:[#allocation2 + $0x4dc] sm:$0xff]
    %v1949 = vld [vmem:[#allocation2 + $0x4e4] sm:$0xff]
    %v1950 = vld [vmem:[#allocation2 + $0x4ec] sm:$0xff]
    %v1951 = vld [vmem:[#allocation2 + $0x4f4] sm:$0xff]
    %v1952 = vld [vmem:[#allocation2 + $0x4fc] sm:$0xff]
    %v1953 = vld [vmem:[#allocation2 + $0x504] sm:$0xff]
    %v1954 = vld [vmem:[#allocation2 + $0x50c] sm:$0xff]
    %v1955 = vld [vmem:[#allocation2 + $0x514] sm:$0xff]
    %v1956 = vld [vmem:[#allocation2 + $0x51c] sm:$0xff]
    %v1957 = vld [vmem:[#allocation2 + $0x524] sm:$0xff]
    %v1958 = vld [vmem:[#allocation2 + $0x52c] sm:$0xff]
    %v1959 = vld [vmem:[#allocation2 + $0x534] sm:$0xff]
    %v1960 = vld [vmem:[#allocation2 + $0x53c] sm:$0xff]
    %v1961 = vadd.f32 %v1913, %v1937
    %v1962 = vadd.f32 %v1914, %v1938
    %v1963 = vadd.f32 %v1915, %v1939
    %v1964 = vadd.f32 %v1916, %v1940
    %v1965 = vadd.f32 %v1917, %v1941
    %v1966 = vadd.f32 %v1918, %v1942
    %v1967 = vadd.f32 %v1919, %v1943
    %v1968 = vadd.f32 %v1920, %v1944
    %v1969 = vadd.f32 %v1921, %v1945
    %v1970 = vadd.f32 %v1922, %v1946
    %v1971 = vadd.f32 %v1923, %v1947
    %v1972 = vadd.f32 %v1924, %v1948
    %v1973 = vadd.f32 %v1925, %v1949
    %v1974 = vadd.f32 %v1926, %v1950
    %v1975 = vadd.f32 %v1927, %v1951
    %v1976 = vadd.f32 %v1928, %v1952
    %v1977 = vadd.f32 %v1929, %v1953
    %v1978 = vadd.f32 %v1930, %v1954
    %v1979 = vadd.f32 %v1931, %v1955
    %v1980 = vadd.f32 %v1932, %v1956
    %v1981 = vadd.f32 %v1933, %v1957
    %v1982 = vadd.f32 %v1934, %v1958
    %v1983 = vadd.f32 %v1935, %v1959
    %v1984 = vadd.f32 %v1936, %v1960
    %v1985 = vpack.c.bf16 %v1962, %v1961
    %v1986 = vpack.c.bf16 %v1964, %v1963
    %v1987 = vpack.c.bf16 %v1966, %v1965
    %v1988 = vpack.c.bf16 %v1968, %v1967
    %v1989 = vpack.c.bf16 %v1970, %v1969
    %v1990 = vpack.c.bf16 %v1972, %v1971
    %v1991 = vpack.c.bf16 %v1974, %v1973
    %v1992 = vpack.c.bf16 %v1976, %v1975
    %v1993 = vpack.c.bf16 %v1978, %v1977
    %v1994 = vpack.c.bf16 %v1980, %v1979
    %v1995 = vpack.c.bf16 %v1982, %v1981
    %v1996 = vpack.c.bf16 %v1984, %v1983
    %v1997 = vld [vmem:[%s3 + $0x100] sm:$0xf]
    %v1998 = vld [vmem:[%s3 + $0x104] sm:$0xf]
    %v1999 = vld [vmem:[%s3 + $0x108] sm:$0xf]
    %v2000 = vld [vmem:[%s3 + $0x10c] sm:$0xf]
    %v2001 = vld [vmem:[%s3 + $0x110] sm:$0xf]
    %v2002 = vld [vmem:[%s3 + $0x114] sm:$0xf]
    %v2003 = vld [vmem:[%s3 + $0x118] sm:$0xf]
    %v2004 = vld [vmem:[%s3 + $0x11c] sm:$0xf]
    %v2005 = vld [vmem:[%s3 + $0x120] sm:$0xf]
    %v2006 = vld [vmem:[%s3 + $0x124] sm:$0xf]
    %v2007 = vld [vmem:[%s3 + $0x128] sm:$0xf]
    %v2008 = vld [vmem:[%s3 + $0x12c] sm:$0xf]
    %v2009 = vld [vmem:[%s3 + $0x130] sm:$0xf]
    %v2010 = vld [vmem:[%s3 + $0x134] sm:$0xf]
    %v2011 = vld [vmem:[%s3 + $0x138] sm:$0xf]
    %v2012 = vld [vmem:[%s3 + $0x13c] sm:$0xf]
    %v2029 = vunpack.c.l.b16 %v1997
    %v2030 = vunpack.c.l.b16 %v1998
    %v2031 = vunpack.c.l.b16 %v1999
    %v2032 = vunpack.c.l.b16 %v2000
    %v2033 = vunpack.c.l.b16 %v2001
    %v2034 = vunpack.c.l.b16 %v2002
    %v2035 = vunpack.c.l.b16 %v2003
    %v2036 = vunpack.c.l.b16 %v2004
    %v2037 = vunpack.c.l.b16 %v2005
    %v2038 = vunpack.c.l.b16 %v2006
    %v2039 = vunpack.c.l.b16 %v2007
    %v2040 = vunpack.c.l.b16 %v2008
    %v2041 = vunpack.c.l.b16 %v2009
    %v2042 = vunpack.c.l.b16 %v2010
    %v2043 = vunpack.c.l.b16 %v2011
    %v2044 = vunpack.c.l.b16 %v2012
    %v2045 = vpack.c.b16 %v2030, %v2029
    %v2046 = vpack.c.b16 %v2032, %v2031
    %v2047 = vpack.c.b16 %v2034, %v2033
    %v2048 = vpack.c.b16 %v2036, %v2035
    %v2049 = vpack.c.b16 %v2038, %v2037
    %v2050 = vpack.c.b16 %v2040, %v2039
    %v2051 = vpack.c.b16 %v2042, %v2041
    %v2052 = vpack.c.b16 %v2044, %v2043
    %2061 = vmatprep.subr.bf16.mxu0 0
    %2062 = vmatpush1.bf16.msra.mxu0 %v2045
    %2063 = vmatprep.subr.bf16.mxu0 0
    %2064 = vmatpush1.bf16.msra.mxu0 %v2046
    %2065 = vmatprep.subr.bf16.mxu0 0
    %2066 = vmatpush1.bf16.msra.mxu0 %v2047
    %2067 = vmatprep.subr.bf16.mxu0 0
    %2068 = vmatpush1.bf16.msra.mxu0 %v2048
    %2069 = vmatprep.subr.bf16.mxu0 0
    %2070 = vmatpush1.bf16.msra.mxu0 %v2049
    %2071 = vmatprep.subr.bf16.mxu0 0
    %2072 = vmatpush1.bf16.msra.mxu0 %v2050
    %2073 = vmatprep.subr.bf16.mxu0 0
    %2074 = vmatpush1.bf16.msra.mxu0 %v2051
    %2075 = vmatprep.subr.bf16.mxu0 0
    %2076 = vmatpush1.bf16.msra.mxu0 %v2052
    %2077 = vmatprep.subr.bf16.mxu0 0
    %2078 = vmatpush1.bf16.msra.mxu0 0
    %2079 = vmatprep.subr.bf16.mxu0 0
    %2080 = vmatpush1.bf16.msra.mxu0 0
    %2081 = vmatprep.subr.bf16.mxu0 0
    %2082 = vmatpush1.bf16.msra.mxu0 0
    %2083 = vmatprep.subr.bf16.mxu0 0
    %2084 = vmatpush1.bf16.msra.mxu0 0
    %2085 = vmatprep.subr.bf16.mxu0 0
    %2086 = vmatpush1.bf16.msra.mxu0 0
    %2087 = vmatprep.subr.bf16.mxu0 0
    %2088 = vmatpush1.bf16.msra.mxu0 0
    %2089 = vmatprep.subr.bf16.mxu0 0
    %2090 = vmatpush1.bf16.msra.mxu0 0
    %2091 = vmatprep.subr.bf16.mxu0 0
    %2092 = vmatpush1.bf16.msra.mxu0 0
    %2093 = vmatprep.mubr.bf16.mxu0 0
    %2094 = vmatmul.mubr.bf16.gmra.mrb[0].mxu0 %v1985
    %v2095 = vpop.f32.mrb[0].mxu0
    %v2096 = vadd.f32 0.0, %v2095
    %v2097 = vpop.f32.mrb[0].mxu0
    %v2098 = vpop.f32.mrb[0].mxu0
    %v2099 = vadd.f32 0.0, %v2098
    %v2100 = vpop.f32.mrb[0].mxu0
    %2101 = vmatprep.mubr.bf16.mxu0 0
    %2102 = vmatmul.mubr.bf16.gmra.mrb[0].mxu0 %v1986
    %v2103 = vpop.f32.mrb[0].mxu0
    %v2104 = vadd.f32 0.0, %v2103
    %v2105 = vpop.f32.mrb[0].mxu0
    %v2106 = vpop.f32.mrb[0].mxu0
    %v2107 = vadd.f32 0.0, %v2106
    %v2108 = vpop.f32.mrb[0].mxu0
    %2109 = vmatprep.mubr.bf16.mxu0 0
    %2110 = vmatmul.mubr.bf16.gmra.mrb[0].mxu0 %v1987
    %v2111 = vpop.f32.mrb[0].mxu0
    %v2112 = vadd.f32 0.0, %v2111
    %v2113 = vpop.f32.mrb[0].mxu0
    %v2114 = vpop.f32.mrb[0].mxu0
    %v2115 = vadd.f32 0.0, %v2114
    %v2116 = vpop.f32.mrb[0].mxu0
    %2117 = vmatprep.mubr.bf16.mxu0 0
    %2118 = vmatmul.mubr.bf16.gmra.mrb[0].mxu0 %v1988
    %v2119 = vpop.f32.mrb[0].mxu0
    %v2120 = vadd.f32 0.0, %v2119
    %v2121 = vpop.f32.mrb[0].mxu0
    %v2122 = vpop.f32.mrb[0].mxu0
    %v2123 = vadd.f32 0.0, %v2122
    %v2124 = vpop.f32.mrb[0].mxu0
    %2125 = vmatprep.mubr.bf16.mxu0 0
    %2126 = vmatmul.mubr.bf16.gmra.mrb[0].mxu0 %v1989
    %v2127 = vpop.f32.mrb[0].mxu0
    %v2128 = vadd.f32 0.0, %v2127
    %v2129 = vpop.f32.mrb[0].mxu0
    %v2130 = vpop.f32.mrb[0].mxu0
    %v2131 = vadd.f32 0.0, %v2130
    %v2132 = vpop.f32.mrb[0].mxu0
    %2133 = vmatprep.mubr.bf16.mxu0 0
    %2134 = vmatmul.mubr.bf16.gmra.mrb[0].mxu0 %v1990
    %v2135 = vpop.f32.mrb[0].mxu0
    %v2136 = vadd.f32 0.0, %v2135
    %v2137 = vpop.f32.mrb[0].mxu0
    %v2138 = vpop.f32.mrb[0].mxu0
    %v2139 = vadd.f32 0.0, %v2138
    %v2140 = vpop.f32.mrb[0].mxu0
    %2141 = vmatprep.mubr.bf16.mxu0 0
    %2142 = vmatmul.mubr.bf16.gmra.mrb[0].mxu0 %v1991
    %v2143 = vpop.f32.mrb[0].mxu0
    %v2144 = vadd.f32 0.0, %v2143
    %v2145 = vpop.f32.mrb[0].mxu0
    %v2146 = vpop.f32.mrb[0].mxu0
    %v2147 = vadd.f32 0.0, %v2146
    %v2148 = vpop.f32.mrb[0].mxu0
    %2149 = vmatprep.mubr.bf16.mxu0 0
    %2150 = vmatmul.mubr.bf16.gmra.mrb[0].mxu0 %v1992
    %v2151 = vpop.f32.mrb[0].mxu0
    %v2152 = vadd.f32 0.0, %v2151
    %v2153 = vpop.f32.mrb[0].mxu0
    %v2154 = vpop.f32.mrb[0].mxu0
    %v2155 = vadd.f32 0.0, %v2154
    %v2156 = vpop.f32.mrb[0].mxu0
    %2157 = vmatprep.mubr.bf16.mxu0 0
    %2158 = vmatmul.mubr.bf16.gmra.mrb[0].mxu0 %v1993
    %v2159 = vpop.f32.mrb[0].mxu0
    %v2160 = vadd.f32 0.0, %v2159
    %v2161 = vpop.f32.mrb[0].mxu0
    %v2162 = vpop.f32.mrb[0].mxu0
    %v2163 = vadd.f32 0.0, %v2162
    %v2164 = vpop.f32.mrb[0].mxu0
    %2165 = vmatprep.mubr.bf16.mxu0 0
    %2166 = vmatmul.mubr.bf16.gmra.mrb[0].mxu0 %v1994
    %v2167 = vpop.f32.mrb[0].mxu0
    %v2168 = vadd.f32 0.0, %v2167
    %v2169 = vpop.f32.mrb[0].mxu0
    %v2170 = vpop.f32.mrb[0].mxu0
    %v2171 = vadd.f32 0.0, %v2170
    %v2172 = vpop.f32.mrb[0].mxu0
    %2173 = vmatprep.mubr.bf16.mxu0 0
    %2174 = vmatmul.mubr.bf16.gmra.mrb[0].mxu0 %v1995
    %v2175 = vpop.f32.mrb[0].mxu0
    %v2176 = vadd.f32 0.0, %v2175
    %v2177 = vpop.f32.mrb[0].mxu0
    %v2178 = vpop.f32.mrb[0].mxu0
    %v2179 = vadd.f32 0.0, %v2178
    %v2180 = vpop.f32.mrb[0].mxu0
    %2181 = vmatprep.mubr.bf16.mxu0 0
    %2182 = vmatmul.mubr.bf16.gmra.mrb[0].mxu0 %v1996
    %v2183 = vpop.f32.mrb[0].mxu0
    %v2184 = vadd.f32 0.0, %v2183
    %v2185 = vpop.f32.mrb[0].mxu0
    %v2186 = vpop.f32.mrb[0].mxu0
    %v2187 = vadd.f32 0.0, %v2186
    %v2188 = vpop.f32.mrb[0].mxu0
    %2189 = vdwg.mxu0
    %v2190 = vadd.f32 %v1675, %v2096
    %v2191 = vadd.f32 %v1678, %v2099
    %v2192 = vadd.f32 %v1683, %v2104
    %v2193 = vadd.f32 %v1686, %v2107
    %v2194 = vadd.f32 %v1691, %v2112
    %v2195 = vadd.f32 %v1694, %v2115
    %v2196 = vadd.f32 %v1699, %v2120
    %v2197 = vadd.f32 %v1702, %v2123
    %v2198 = vadd.f32 %v1707, %v2128
    %v2199 = vadd.f32 %v1710, %v2131
    %v2200 = vadd.f32 %v1715, %v2136
    %v2201 = vadd.f32 %v1718, %v2139
    %v2202 = vadd.f32 %v1723, %v2144
    %v2203 = vadd.f32 %v1726, %v2147
    %v2204 = vadd.f32 %v1731, %v2152
    %v2205 = vadd.f32 %v1734, %v2155
    %v2206 = vadd.f32 %v1739, %v2160
    %v2207 = vadd.f32 %v1742, %v2163
    %v2208 = vadd.f32 %v1747, %v2168
    %v2209 = vadd.f32 %v1750, %v2171
    %v2210 = vadd.f32 %v1755, %v2176
    %v2211 = vadd.f32 %v1758, %v2179
    %v2212 = vadd.f32 %v1763, %v2184
    %v2213 = vadd.f32 %v1766, %v2187
    %v2215 = vlaneseq
    %v2216 = vshrl.u32 %v2215, 7
    %v2217 = vsub.s32 0, %v2216
    %v2218 = vrot.slane %v50, %v2217
    %v2220 = vadd.f32 %v2190, %v2218
    %v2221 = vadd.f32 %v2191, %v2218
    %v2222 = vadd.f32 %v2192, %v2218
    %v2223 = vadd.f32 %v2193, %v2218
    %v2224 = vadd.f32 %v2194, %v2218
    %v2225 = vadd.f32 %v2195, %v2218
    %v2226 = vadd.f32 %v2196, %v2218
    %v2227 = vadd.f32 %v2197, %v2218
    %v2228 = vadd.f32 %v2198, %v2218
    %v2229 = vadd.f32 %v2199, %v2218
    %v2230 = vadd.f32 %v2200, %v2218
    %v2231 = vadd.f32 %v2201, %v2218
    %v2232 = vadd.f32 %v2202, %v2218
    %v2233 = vadd.f32 %v2203, %v2218
    %v2234 = vadd.f32 %v2204, %v2218
    %v2235 = vadd.f32 %v2205, %v2218
    %v2236 = vadd.f32 %v2206, %v2218
    %v2237 = vadd.f32 %v2207, %v2218
    %v2238 = vadd.f32 %v2208, %v2218
    %v2239 = vadd.f32 %v2209, %v2218
    %v2240 = vadd.f32 %v2210, %v2218
    %v2241 = vadd.f32 %v2211, %v2218
    %v2242 = vadd.f32 %v2212, %v2218
    %v2243 = vadd.f32 %v2213, %v2218
    %v2244 = vmax.f32 %v2220, %v2222
    %v2245 = vmax.f32 %v2221, %v2223
    %v2246 = vmax.f32 %v2224, %v2226
    %v2247 = vmax.f32 %v2225, %v2227
    %v2248 = vmax.f32 %v2228, %v2230
    %v2249 = vmax.f32 %v2229, %v2231
    %v2250 = vmax.f32 %v2232, %v2234
    %v2251 = vmax.f32 %v2233, %v2235
    %v2252 = vmax.f32 %v2236, %v2238
    %v2253 = vmax.f32 %v2237, %v2239
    %v2254 = vmax.f32 %v2240, %v2242
    %v2255 = vmax.f32 %v2241, %v2243
    %2256 = vst [vmem:[#allocation3] sm:$0xff] %v2244
    %2257 = vst [vmem:[#allocation3 + $0x8] sm:$0xff] %v2245
    %2258 = vst [vmem:[#allocation3 + $0x10] sm:$0xff] %v2246
    %2259 = vst [vmem:[#allocation3 + $0x18] sm:$0xff] %v2247
    %2260 = vst [vmem:[#allocation3 + $0x20] sm:$0xff] %v2248
    %2261 = vst [vmem:[#allocation3 + $0x28] sm:$0xff] %v2249
    %2262 = vst [vmem:[#allocation3 + $0x30] sm:$0xff] %v2250
    %2263 = vst [vmem:[#allocation3 + $0x38] sm:$0xff] %v2251
    %2264 = vst [vmem:[#allocation3 + $0x40] sm:$0xff] %v2252
    %2265 = vst [vmem:[#allocation3 + $0x48] sm:$0xff] %v2253
    %2266 = vst [vmem:[#allocation3 + $0x50] sm:$0xff] %v2254
    %2267 = vst [vmem:[#allocation3 + $0x58] sm:$0xff] %v2255
    %v2268 = vld [vmem:[#allocation3] ss:$2 sm:$0xff]
    %s2269 = scalar_lea.vmem [#allocation3], 16
    %v2270 = vld [vmem:[%s2269] ss:$2 sm:$0xff]
    %s2271 = scalar_lea.vmem [#allocation3], 32
    %v2272 = vld [vmem:[%s2271] ss:$2 sm:$0xff]
    %s2273 = scalar_lea.vmem [#allocation3], 48
    %v2274 = vld [vmem:[%s2273] ss:$2 sm:$0xff]
    %s2275 = scalar_lea.vmem [#allocation3], 64
    %v2276 = vld [vmem:[%s2275] ss:$2 sm:$0xff]
    %s2277 = scalar_lea.vmem [#allocation3], 80
    %v2278 = vld [vmem:[%s2277] ss:$2 sm:$0xff]
    %s2279 = scalar_lea.vmem [#allocation3], 1
    %v2280 = vld [vmem:[%s2279] ss:$2 sm:$0xff]
    %s2281 = scalar_lea.vmem [#allocation3], 17
    %v2282 = vld [vmem:[%s2281] ss:$2 sm:$0xff]
    %s2283 = scalar_lea.vmem [#allocation3], 33
    %v2284 = vld [vmem:[%s2283] ss:$2 sm:$0xff]
    %s2285 = scalar_lea.vmem [#allocation3], 49
    %v2286 = vld [vmem:[%s2285] ss:$2 sm:$0xff]
    %s2287 = scalar_lea.vmem [#allocation3], 65
    %v2288 = vld [vmem:[%s2287] ss:$2 sm:$0xff]
    %s2289 = scalar_lea.vmem [#allocation3], 81
    %v2290 = vld [vmem:[%s2289] ss:$2 sm:$0xff]
    %v2291 = vmax.f32 %v2268, %v2280
    %v2292 = vmax.f32 %v2270, %v2282
    %v2293 = vmax.f32 %v2272, %v2284
    %v2294 = vmax.f32 %v2274, %v2286
    %v2295 = vmax.f32 %v2276, %v2288
    %v2296 = vmax.f32 %v2278, %v2290
    %v2297 = vmax.f32 %v2291, 0.0
    %v2298 = vmax.f32 %v2292, 0.0
    %v2299 = vmax.f32 %v2293, 0.0
    %v2300 = vmax.f32 %v2294, 0.0
    %v2301 = vmax.f32 %v2295, 0.0
    %v2302 = vmax.f32 %v2296, 0.0
    %s2303 = smul.u32 %s119, 48
    %s2304 = scalar_lea.vmem [#allocation4], %s2303
    %2305 = vst [vmem:[%s2304] sm:$0xff] %v2297
    %2306 = vst [vmem:[%s2304 + $0x8] sm:$0xff] %v2298
    %2307 = vst [vmem:[%s2304 + $0x10] sm:$0xff] %v2299
    %2308 = vst [vmem:[%s2304 + $0x18] sm:$0xff] %v2300
    %2309 = vst [vmem:[%s2304 + $0x20] sm:$0xff] %v2301
    %2310 = vst [vmem:[%s2304 + $0x28] sm:$0xff] %v2302
  $region42: #{net_forward.1} parent=0 // loop_footer
    %s123 = sadd.s32 1, %s119
  $region43: #{net_forward.1} parent=0 // loop_footer_branch
    %118 = sbr.rel target = $region39
  $region44: #{net_forward.1} parent=0 // loop_exit
    _
  %v2311 = vld [vmem:[#allocation4] ss:$48 sm:$0x3]
  %v2312 = vld [vmem:[#allocation4] ss:$48 sm:$0xc]
  %v2313 = vor.u32 %v2311, %v2312
  %v2314 = vld [vmem:[#allocation4] ss:$48 sm:$0x30]
  %v2315 = vor.u32 %v2313, %v2314
  %v2316 = vld [vmem:[#allocation4] ss:$48 sm:$0xc0]
  %v2317 = vor.u32 %v2315, %v2316
  %s2318 = scalar_lea.vmem [#allocation4], 384
  %v2319 = vld [vmem:[%s2318] ss:$48 sm:$0x3]
  %v2320 = vld [vmem:[%s2318] ss:$48 sm:$0xc]
  %v2321 = vor.u32 %v2319, %v2320
  %v2322 = vld [vmem:[%s2318] ss:$48 sm:$0x30]
  %v2323 = vor.u32 %v2321, %v2322
  %v2324 = vld [vmem:[%s2318] ss:$48 sm:$0xc0]
  %v2325 = vor.u32 %v2323, %v2324
  %s2326 = scalar_lea.vmem [#allocation4], 768
  %v2327 = vld [vmem:[%s2326] ss:$48 sm:$0x3]
  %v2328 = vld [vmem:[%s2326] ss:$48 sm:$0xc]
  %v2329 = vor.u32 %v2327, %v2328
  %v2330 = vld [vmem:[%s2326] ss:$48 sm:$0x30]
  %v2331 = vor.u32 %v2329, %v2330
  %v2332 = vld [vmem:[%s2326] ss:$48 sm:$0xc0]
  %v2333 = vor.u32 %v2331, %v2332
  %s2334 = scalar_lea.vmem [#allocation4], 1152
  %v2335 = vld [vmem:[%s2334] ss:$48 sm:$0x3]
  %v2336 = vld [vmem:[%s2334] ss:$48 sm:$0xc]
  %v2337 = vor.u32 %v2335, %v2336
  %v2338 = vld [vmem:[%s2334] ss:$48 sm:$0x30]
  %v2339 = vor.u32 %v2337, %v2338
  %v2340 = vld [vmem:[%s2334] ss:$48 sm:$0xc0]
  %v2341 = vor.u32 %v2339, %v2340
  %v2342 = vpack.c.bf16 %v2325, %v2317
  %v2343 = vpack.c.bf16 %v2341, %v2333
  %v2344 = vld [vmem:[%s5] sm:$0xf]
  %v2345 = vld [vmem:[%s5 + $0x4] sm:$0xf]
  %v2346 = vld [vmem:[%s5 + $0x8] sm:$0xf]
  %v2347 = vld [vmem:[%s5 + $0xc] sm:$0xf]
  %v2348 = vld [vmem:[%s5 + $0x10] sm:$0xf]
  %v2349 = vld [vmem:[%s5 + $0x14] sm:$0xf]
  %v2350 = vld [vmem:[%s5 + $0x18] sm:$0xf]
  %v2351 = vld [vmem:[%s5 + $0x1c] sm:$0xf]
  %v2352 = vld [vmem:[%s5 + $0x20] sm:$0xf]
  %v2353 = vld [vmem:[%s5 + $0x24] sm:$0xf]
  %v2354 = vld [vmem:[%s5 + $0x28] sm:$0xf]
  %v2355 = vld [vmem:[%s5 + $0x2c] sm:$0xf]
  %v2356 = vld [vmem:[%s5 + $0x30] sm:$0xf]
  %v2357 = vld [vmem:[%s5 + $0x34] sm:$0xf]
  %v2358 = vld [vmem:[%s5 + $0x38] sm:$0xf]
  %v2359 = vld [vmem:[%s5 + $0x3c] sm:$0xf]
  %s2360 = scalar_lea.vmem [#allocation4], 1
  %v2361 = vld [vmem:[%s2360] ss:$48 sm:$0x3]
  %v2362 = vld [vmem:[%s2360] ss:$48 sm:$0xc]
  %v2363 = vor.u32 %v2361, %v2362
  %v2364 = vld [vmem:[%s2360] ss:$48 sm:$0x30]
  %v2365 = vor.u32 %v2363, %v2364
  %v2366 = vld [vmem:[%s2360] ss:$48 sm:$0xc0]
  %v2367 = vor.u32 %v2365, %v2366
  %s2368 = scalar_lea.vmem [#allocation4], 385
  %v2369 = vld [vmem:[%s2368] ss:$48 sm:$0x3]
  %v2370 = vld [vmem:[%s2368] ss:$48 sm:$0xc]
  %v2371 = vor.u32 %v2369, %v2370
  %v2372 = vld [vmem:[%s2368] ss:$48 sm:$0x30]
  %v2373 = vor.u32 %v2371, %v2372
  %v2374 = vld [vmem:[%s2368] ss:$48 sm:$0xc0]
  %v2375 = vor.u32 %v2373, %v2374
  %s2376 = scalar_lea.vmem [#allocation4], 769
  %v2377 = vld [vmem:[%s2376] ss:$48 sm:$0x3]
  %v2378 = vld [vmem:[%s2376] ss:$48 sm:$0xc]
  %v2379 = vor.u32 %v2377, %v2378
  %v2380 = vld [vmem:[%s2376] ss:$48 sm:$0x30]
  %v2381 = vor.u32 %v2379, %v2380
  %v2382 = vld [vmem:[%s2376] ss:$48 sm:$0xc0]
  %v2383 = vor.u32 %v2381, %v2382
  %s2384 = scalar_lea.vmem [#allocation4], 1153
  %v2385 = vld [vmem:[%s2384] ss:$48 sm:$0x3]
  %v2386 = vld [vmem:[%s2384] ss:$48 sm:$0xc]
  %v2387 = vor.u32 %v2385, %v2386
  %v2388 = vld [vmem:[%s2384] ss:$48 sm:$0x30]
  %v2389 = vor.u32 %v2387, %v2388
  %v2390 = vld [vmem:[%s2384] ss:$48 sm:$0xc0]
  %v2391 = vor.u32 %v2389, %v2390
  %v2392 = vpack.c.bf16 %v2375, %v2367
  %v2393 = vpack.c.bf16 %v2391, %v2383
  %v2394 = vld [vmem:[%s5 + $0x40] sm:$0xf]
  %v2395 = vld [vmem:[%s5 + $0x44] sm:$0xf]
  %v2396 = vld [vmem:[%s5 + $0x48] sm:$0xf]
  %v2397 = vld [vmem:[%s5 + $0x4c] sm:$0xf]
  %v2398 = vld [vmem:[%s5 + $0x50] sm:$0xf]
  %v2399 = vld [vmem:[%s5 + $0x54] sm:$0xf]
  %v2400 = vld [vmem:[%s5 + $0x58] sm:$0xf]
  %v2401 = vld [vmem:[%s5 + $0x5c] sm:$0xf]
  %v2402 = vld [vmem:[%s5 + $0x60] sm:$0xf]
  %v2403 = vld [vmem:[%s5 + $0x64] sm:$0xf]
  %v2404 = vld [vmem:[%s5 + $0x68] sm:$0xf]
  %v2405 = vld [vmem:[%s5 + $0x6c] sm:$0xf]
  %v2406 = vld [vmem:[%s5 + $0x70] sm:$0xf]
  %v2407 = vld [vmem:[%s5 + $0x74] sm:$0xf]
  %v2408 = vld [vmem:[%s5 + $0x78] sm:$0xf]
  %v2409 = vld [vmem:[%s5 + $0x7c] sm:$0xf]
  %v2426 = vunpack.c.l.b16 %v2394
  %v2427 = vunpack.c.l.b16 %v2395
  %v2428 = vunpack.c.l.b16 %v2396
  %v2429 = vunpack.c.l.b16 %v2397
  %v2430 = vunpack.c.l.b16 %v2398
  %v2431 = vunpack.c.l.b16 %v2399
  %v2432 = vunpack.c.l.b16 %v2400
  %v2433 = vunpack.c.l.b16 %v2401
  %v2434 = vunpack.c.l.b16 %v2402
  %v2435 = vunpack.c.l.b16 %v2403
  %v2436 = vunpack.c.l.b16 %v2404
  %v2437 = vunpack.c.l.b16 %v2405
  %v2438 = vunpack.c.l.b16 %v2406
  %v2439 = vunpack.c.l.b16 %v2407
  %v2440 = vunpack.c.l.b16 %v2408
  %v2441 = vunpack.c.l.b16 %v2409
  %v2442 = vpack.c.b16 %v2427, %v2426
  %v2443 = vpack.c.b16 %v2429, %v2428
  %v2444 = vpack.c.b16 %v2431, %v2430
  %v2445 = vpack.c.b16 %v2433, %v2432
  %v2446 = vpack.c.b16 %v2435, %v2434
  %v2447 = vpack.c.b16 %v2437, %v2436
  %v2448 = vpack.c.b16 %v2439, %v2438
  %v2449 = vpack.c.b16 %v2441, %v2440
  %2458 = vmatprep.subr.bf16.mxu0 0
  %2459 = vmatpush1.bf16.msra.mxu0 %v2442
  %2460 = vmatprep.subr.bf16.mxu0 0
  %2461 = vmatpush1.bf16.msra.mxu0 %v2443
  %2462 = vmatprep.subr.bf16.mxu0 0
  %2463 = vmatpush1.bf16.msra.mxu0 %v2444
  %2464 = vmatprep.subr.bf16.mxu0 0
  %2465 = vmatpush1.bf16.msra.mxu0 %v2445
  %2466 = vmatprep.subr.bf16.mxu0 0
  %2467 = vmatpush1.bf16.msra.mxu0 %v2446
  %2468 = vmatprep.subr.bf16.mxu0 0
  %2469 = vmatpush1.bf16.msra.mxu0 %v2447
  %2470 = vmatprep.subr.bf16.mxu0 0
  %2471 = vmatpush1.bf16.msra.mxu0 %v2448
  %2472 = vmatprep.subr.bf16.mxu0 0
  %2473 = vmatpush1.bf16.msra.mxu0 %v2449
  %2474 = vmatprep.subr.bf16.mxu0 0
  %2475 = vmatpush1.bf16.msra.mxu0 0
  %2476 = vmatprep.subr.bf16.mxu0 0
  %2477 = vmatpush1.bf16.msra.mxu0 0
  %2478 = vmatprep.subr.bf16.mxu0 0
  %2479 = vmatpush1.bf16.msra.mxu0 0
  %2480 = vmatprep.subr.bf16.mxu0 0
  %2481 = vmatpush1.bf16.msra.mxu0 0
  %2482 = vmatprep.subr.bf16.mxu0 0
  %2483 = vmatpush1.bf16.msra.mxu0 0
  %2484 = vmatprep.subr.bf16.mxu0 0
  %2485 = vmatpush1.bf16.msra.mxu0 0
  %2486 = vmatprep.subr.bf16.mxu0 0
  %2487 = vmatpush1.bf16.msra.mxu0 0
  %2488 = vmatprep.subr.bf16.mxu0 0
  %2489 = vmatpush1.bf16.msra.mxu0 0
  %2490 = vmatprep.mubr.bf16.mxu0 0
  %2491 = vmatmul.mubr.bf16.gmra.mrb[0].mxu0 %v2392
  %v2492 = vpop.f32.mrb[0].mxu0
  %v2493 = vadd.f32 0.0, %v2492
  %v2494 = vpop.f32.mrb[0].mxu0
  %v2495 = vpop.f32.mrb[0].mxu0
  %v2496 = vadd.f32 0.0, %v2495
  %v2497 = vpop.f32.mrb[0].mxu0
  %2498 = vmatprep.mubr.bf16.mxu0 0
  %2499 = vmatmul.mubr.bf16.gmra.mrb[0].mxu0 %v2393
  %v2500 = vpop.f32.mrb[0].mxu0
  %v2501 = vadd.f32 0.0, %v2500
  %v2502 = vpop.f32.mrb[0].mxu0
  %v2503 = vpop.f32.mrb[0].mxu0
  %v2504 = vadd.f32 0.0, %v2503
  %v2505 = vpop.f32.mrb[0].mxu0
  %2506 = vdwg.mxu0
  %v2523 = vunpack.c.l.b16 %v2344
  %v2524 = vunpack.c.l.b16 %v2345
  %v2525 = vunpack.c.l.b16 %v2346
  %v2526 = vunpack.c.l.b16 %v2347
  %v2527 = vunpack.c.l.b16 %v2348
  %v2528 = vunpack.c.l.b16 %v2349
  %v2529 = vunpack.c.l.b16 %v2350
  %v2530 = vunpack.c.l.b16 %v2351
  %v2531 = vunpack.c.l.b16 %v2352
  %v2532 = vunpack.c.l.b16 %v2353
  %v2533 = vunpack.c.l.b16 %v2354
  %v2534 = vunpack.c.l.b16 %v2355
  %v2535 = vunpack.c.l.b16 %v2356
  %v2536 = vunpack.c.l.b16 %v2357
  %v2537 = vunpack.c.l.b16 %v2358
  %v2538 = vunpack.c.l.b16 %v2359
  %v2539 = vpack.c.b16 %v2524, %v2523
  %v2540 = vpack.c.b16 %v2526, %v2525
  %v2541 = vpack.c.b16 %v2528, %v2527
  %v2542 = vpack.c.b16 %v2530, %v2529
  %v2543 = vpack.c.b16 %v2532, %v2531
  %v2544 = vpack.c.b16 %v2534, %v2533
  %v2545 = vpack.c.b16 %v2536, %v2535
  %v2546 = vpack.c.b16 %v2538, %v2537
  %2555 = vmatprep.subr.bf16.mxu0 0
  %2556 = vmatpush1.bf16.msra.mxu0 %v2539
  %2557 = vmatprep.subr.bf16.mxu0 0
  %2558 = vmatpush1.bf16.msra.mxu0 %v2540
  %2559 = vmatprep.subr.bf16.mxu0 0
  %2560 = vmatpush1.bf16.msra.mxu0 %v2541
  %2561 = vmatprep.subr.bf16.mxu0 0
  %2562 = vmatpush1.bf16.msra.mxu0 %v2542
  %2563 = vmatprep.subr.bf16.mxu0 0
  %2564 = vmatpush1.bf16.msra.mxu0 %v2543
  %2565 = vmatprep.subr.bf16.mxu0 0
  %2566 = vmatpush1.bf16.msra.mxu0 %v2544
  %2567 = vmatprep.subr.bf16.mxu0 0
  %2568 = vmatpush1.bf16.msra.mxu0 %v2545
  %2569 = vmatprep.subr.bf16.mxu0 0
  %2570 = vmatpush1.bf16.msra.mxu0 %v2546
  %2571 = vmatprep.subr.bf16.mxu0 0
  %2572 = vmatpush1.bf16.msra.mxu0 0
  %2573 = vmatprep.subr.bf16.mxu0 0
  %2574 = vmatpush1.bf16.msra.mxu0 0
  %2575 = vmatprep.subr.bf16.mxu0 0
  %2576 = vmatpush1.bf16.msra.mxu0 0
  %2577 = vmatprep.subr.bf16.mxu0 0
  %2578 = vmatpush1.bf16.msra.mxu0 0
  %2579 = vmatprep.subr.bf16.mxu0 0
  %2580 = vmatpush1.bf16.msra.mxu0 0
  %2581 = vmatprep.subr.bf16.mxu0 0
  %2582 = vmatpush1.bf16.msra.mxu0 0
  %2583 = vmatprep.subr.bf16.mxu0 0
  %2584 = vmatpush1.bf16.msra.mxu0 0
  %2585 = vmatprep.subr.bf16.mxu0 0
  %2586 = vmatpush1.bf16.msra.mxu0 0
  %2587 = vmatprep.mubr.bf16.mxu0 0
  %2588 = vmatmul.mubr.bf16.gmra.mrb[0].mxu0 %v2342
  %v2589 = vpop.f32.mrb[0].mxu0
  %v2590 = vadd.f32 %v2493, %v2589
  %v2591 = vpop.f32.mrb[0].mxu0
  %v2592 = vpop.f32.mrb[0].mxu0
  %v2593 = vadd.f32 %v2496, %v2592
  %v2594 = vpop.f32.mrb[0].mxu0
  %2595 = vmatprep.mubr.bf16.mxu0 0
  %2596 = vmatmul.mubr.bf16.gmra.mrb[0].mxu0 %v2343
  %v2597 = vpop.f32.mrb[0].mxu0
  %v2598 = vadd.f32 %v2501, %v2597
  %v2599 = vpop.f32.mrb[0].mxu0
  %v2600 = vpop.f32.mrb[0].mxu0
  %v2601 = vadd.f32 %v2504, %v2600
  %v2602 = vpop.f32.mrb[0].mxu0
  %2603 = vdwg.mxu0
  %s2604 = scalar_lea.vmem [#allocation4], 2
  %v2605 = vld [vmem:[%s2604] ss:$48 sm:$0x3]
  %v2606 = vld [vmem:[%s2604] ss:$48 sm:$0xc]
  %v2607 = vor.u32 %v2605, %v2606
  %v2608 = vld [vmem:[%s2604] ss:$48 sm:$0x30]
  %v2609 = vor.u32 %v2607, %v2608
  %v2610 = vld [vmem:[%s2604] ss:$48 sm:$0xc0]
  %v2611 = vor.u32 %v2609, %v2610
  %s2612 = scalar_lea.vmem [#allocation4], 386
  %v2613 = vld [vmem:[%s2612] ss:$48 sm:$0x3]
  %v2614 = vld [vmem:[%s2612] ss:$48 sm:$0xc]
  %v2615 = vor.u32 %v2613, %v2614
  %v2616 = vld [vmem:[%s2612] ss:$48 sm:$0x30]
  %v2617 = vor.u32 %v2615, %v2616
  %v2618 = vld [vmem:[%s2612] ss:$48 sm:$0xc0]
  %v2619 = vor.u32 %v2617, %v2618
  %s2620 = scalar_lea.vmem [#allocation4], 770
  %v2621 = vld [vmem:[%s2620] ss:$48 sm:$0x3]
  %v2622 = vld [vmem:[%s2620] ss:$48 sm:$0xc]
  %v2623 = vor.u32 %v2621, %v2622
  %v2624 = vld [vmem:[%s2620] ss:$48 sm:$0x30]
  %v2625 = vor.u32 %v2623, %v2624
  %v2626 = vld [vmem:[%s2620] ss:$48 sm:$0xc0]
  %v2627 = vor.u32 %v2625, %v2626
  %s2628 = scalar_lea.vmem [#allocation4], 1154
  %v2629 = vld [vmem:[%s2628] ss:$48 sm:$0x3]
  %v2630 = vld [vmem:[%s2628] ss:$48 sm:$0xc]
  %v2631 = vor.u32 %v2629, %v2630
  %v2632 = vld [vmem:[%s2628] ss:$48 sm:$0x30]
  %v2633 = vor.u32 %v2631, %v2632
  %v2634 = vld [vmem:[%s2628] ss:$48 sm:$0xc0]
  %v2635 = vor.u32 %v2633, %v2634
  %v2636 = vpack.c.bf16 %v2619, %v2611
  %v2637 = vpack.c.bf16 %v2635, %v2627
  %v2638 = vld [vmem:[%s5 + $0x80] sm:$0xf]
  %v2639 = vld [vmem:[%s5 + $0x84] sm:$0xf]
  %v2640 = vld [vmem:[%s5 + $0x88] sm:$0xf]
  %v2641 = vld [vmem:[%s5 + $0x8c] sm:$0xf]
  %v2642 = vld [vmem:[%s5 + $0x90] sm:$0xf]
  %v2643 = vld [vmem:[%s5 + $0x94] sm:$0xf]
  %v2644 = vld [vmem:[%s5 + $0x98] sm:$0xf]
  %v2645 = vld [vmem:[%s5 + $0x9c] sm:$0xf]
  %v2646 = vld [vmem:[%s5 + $0xa0] sm:$0xf]
  %v2647 = vld [vmem:[%s5 + $0xa4] sm:$0xf]
  %v2648 = vld [vmem:[%s5 + $0xa8] sm:$0xf]
  %v2649 = vld [vmem:[%s5 + $0xac] sm:$0xf]
  %v2650 = vld [vmem:[%s5 + $0xb0] sm:$0xf]
  %v2651 = vld [vmem:[%s5 + $0xb4] sm:$0xf]
  %v2652 = vld [vmem:[%s5 + $0xb8] sm:$0xf]
  %v2653 = vld [vmem:[%s5 + $0xbc] sm:$0xf]
  %v2670 = vunpack.c.l.b16 %v2638
  %v2671 = vunpack.c.l.b16 %v2639
  %v2672 = vunpack.c.l.b16 %v2640
  %v2673 = vunpack.c.l.b16 %v2641
  %v2674 = vunpack.c.l.b16 %v2642
  %v2675 = vunpack.c.l.b16 %v2643
  %v2676 = vunpack.c.l.b16 %v2644
  %v2677 = vunpack.c.l.b16 %v2645
  %v2678 = vunpack.c.l.b16 %v2646
  %v2679 = vunpack.c.l.b16 %v2647
  %v2680 = vunpack.c.l.b16 %v2648
  %v2681 = vunpack.c.l.b16 %v2649
  %v2682 = vunpack.c.l.b16 %v2650
  %v2683 = vunpack.c.l.b16 %v2651
  %v2684 = vunpack.c.l.b16 %v2652
  %v2685 = vunpack.c.l.b16 %v2653
  %v2686 = vpack.c.b16 %v2671, %v2670
  %v2687 = vpack.c.b16 %v2673, %v2672
  %v2688 = vpack.c.b16 %v2675, %v2674
  %v2689 = vpack.c.b16 %v2677, %v2676
  %v2690 = vpack.c.b16 %v2679, %v2678
  %v2691 = vpack.c.b16 %v2681, %v2680
  %v2692 = vpack.c.b16 %v2683, %v2682
  %v2693 = vpack.c.b16 %v2685, %v2684
  %2702 = vmatprep.subr.bf16.mxu0 0
  %2703 = vmatpush1.bf16.msra.mxu0 %v2686
  %2704 = vmatprep.subr.bf16.mxu0 0
  %2705 = vmatpush1.bf16.msra.mxu0 %v2687
  %2706 = vmatprep.subr.bf16.mxu0 0
  %2707 = vmatpush1.bf16.msra.mxu0 %v2688
  %2708 = vmatprep.subr.bf16.mxu0 0
  %2709 = vmatpush1.bf16.msra.mxu0 %v2689
  %2710 = vmatprep.subr.bf16.mxu0 0
  %2711 = vmatpush1.bf16.msra.mxu0 %v2690
  %2712 = vmatprep.subr.bf16.mxu0 0
  %2713 = vmatpush1.bf16.msra.mxu0 %v2691
  %2714 = vmatprep.subr.bf16.mxu0 0
  %2715 = vmatpush1.bf16.msra.mxu0 %v2692
  %2716 = vmatprep.subr.bf16.mxu0 0
  %2717 = vmatpush1.bf16.msra.mxu0 %v2693
  %2718 = vmatprep.subr.bf16.mxu0 0
  %2719 = vmatpush1.bf16.msra.mxu0 0
  %2720 = vmatprep.subr.bf16.mxu0 0
  %2721 = vmatpush1.bf16.msra.mxu0 0
  %2722 = vmatprep.subr.bf16.mxu0 0
  %2723 = vmatpush1.bf16.msra.mxu0 0
  %2724 = vmatprep.subr.bf16.mxu0 0
  %2725 = vmatpush1.bf16.msra.mxu0 0
  %2726 = vmatprep.subr.bf16.mxu0 0
  %2727 = vmatpush1.bf16.msra.mxu0 0
  %2728 = vmatprep.subr.bf16.mxu0 0
  %2729 = vmatpush1.bf16.msra.mxu0 0
  %2730 = vmatprep.subr.bf16.mxu0 0
  %2731 = vmatpush1.bf16.msra.mxu0 0
  %2732 = vmatprep.subr.bf16.mxu0 0
  %2733 = vmatpush1.bf16.msra.mxu0 0
  %2734 = vmatprep.mubr.bf16.mxu0 0
  %2735 = vmatmul.mubr.bf16.gmra.mrb[0].mxu0 %v2636
  %v2736 = vpop.f32.mrb[0].mxu0
  %v2737 = vadd.f32 0.0, %v2736
  %v2738 = vpop.f32.mrb[0].mxu0
  %v2739 = vpop.f32.mrb[0].mxu0
  %v2740 = vadd.f32 0.0, %v2739
  %v2741 = vpop.f32.mrb[0].mxu0
  %2742 = vmatprep.mubr.bf16.mxu0 0
  %2743 = vmatmul.mubr.bf16.gmra.mrb[0].mxu0 %v2637
  %v2744 = vpop.f32.mrb[0].mxu0
  %v2745 = vadd.f32 0.0, %v2744
  %v2746 = vpop.f32.mrb[0].mxu0
  %v2747 = vpop.f32.mrb[0].mxu0
  %v2748 = vadd.f32 0.0, %v2747
  %v2749 = vpop.f32.mrb[0].mxu0
  %2750 = vdwg.mxu0
  %v2751 = vadd.f32 %v2590, %v2737
  %v2752 = vadd.f32 %v2593, %v2740
  %v2753 = vadd.f32 %v2598, %v2745
  %v2754 = vadd.f32 %v2601, %v2748
  %s2755 = scalar_lea.vmem [#allocation4], 3
  %v2756 = vld [vmem:[%s2755] ss:$48 sm:$0x3]
  %v2757 = vld [vmem:[%s2755] ss:$48 sm:$0xc]
  %v2758 = vor.u32 %v2756, %v2757
  %v2759 = vld [vmem:[%s2755] ss:$48 sm:$0x30]
  %v2760 = vor.u32 %v2758, %v2759
  %v2761 = vld [vmem:[%s2755] ss:$48 sm:$0xc0]
  %v2762 = vor.u32 %v2760, %v2761
  %s2763 = scalar_lea.vmem [#allocation4], 387
  %v2764 = vld [vmem:[%s2763] ss:$48 sm:$0x3]
  %v2765 = vld [vmem:[%s2763] ss:$48 sm:$0xc]
  %v2766 = vor.u32 %v2764, %v2765
  %v2767 = vld [vmem:[%s2763] ss:$48 sm:$0x30]
  %v2768 = vor.u32 %v2766, %v2767
  %v2769 = vld [vmem:[%s2763] ss:$48 sm:$0xc0]
  %v2770 = vor.u32 %v2768, %v2769
  %s2771 = scalar_lea.vmem [#allocation4], 771
  %v2772 = vld [vmem:[%s2771] ss:$48 sm:$0x3]
  %v2773 = vld [vmem:[%s2771] ss:$48 sm:$0xc]
  %v2774 = vor.u32 %v2772, %v2773
  %v2775 = vld [vmem:[%s2771] ss:$48 sm:$0x30]
  %v2776 = vor.u32 %v2774, %v2775
  %v2777 = vld [vmem:[%s2771] ss:$48 sm:$0xc0]
  %v2778 = vor.u32 %v2776, %v2777
  %s2779 = scalar_lea.vmem [#allocation4], 1155
  %v2780 = vld [vmem:[%s2779] ss:$48 sm:$0x3]
  %v2781 = vld [vmem:[%s2779] ss:$48 sm:$0xc]
  %v2782 = vor.u32 %v2780, %v2781
  %v2783 = vld [vmem:[%s2779] ss:$48 sm:$0x30]
  %v2784 = vor.u32 %v2782, %v2783
  %v2785 = vld [vmem:[%s2779] ss:$48 sm:$0xc0]
  %v2786 = vor.u32 %v2784, %v2785
  %v2787 = vpack.c.bf16 %v2770, %v2762
  %v2788 = vpack.c.bf16 %v2786, %v2778
  %v2789 = vld [vmem:[%s5 + $0xc0] sm:$0xf]
  %v2790 = vld [vmem:[%s5 + $0xc4] sm:$0xf]
  %v2791 = vld [vmem:[%s5 + $0xc8] sm:$0xf]
  %v2792 = vld [vmem:[%s5 + $0xcc] sm:$0xf]
  %v2793 = vld [vmem:[%s5 + $0xd0] sm:$0xf]
  %v2794 = vld [vmem:[%s5 + $0xd4] sm:$0xf]
  %v2795 = vld [vmem:[%s5 + $0xd8] sm:$0xf]
  %v2796 = vld [vmem:[%s5 + $0xdc] sm:$0xf]
  %v2797 = vld [vmem:[%s5 + $0xe0] sm:$0xf]
  %v2798 = vld [vmem:[%s5 + $0xe4] sm:$0xf]
  %v2799 = vld [vmem:[%s5 + $0xe8] sm:$0xf]
  %v2800 = vld [vmem:[%s5 + $0xec] sm:$0xf]
  %v2801 = vld [vmem:[%s5 + $0xf0] sm:$0xf]
  %v2802 = vld [vmem:[%s5 + $0xf4] sm:$0xf]
  %v2803 = vld [vmem:[%s5 + $0xf8] sm:$0xf]
  %v2804 = vld [vmem:[%s5 + $0xfc] sm:$0xf]
  %v2821 = vunpack.c.l.b16 %v2789
  %v2822 = vunpack.c.l.b16 %v2790
  %v2823 = vunpack.c.l.b16 %v2791
  %v2824 = vunpack.c.l.b16 %v2792
  %v2825 = vunpack.c.l.b16 %v2793
  %v2826 = vunpack.c.l.b16 %v2794
  %v2827 = vunpack.c.l.b16 %v2795
  %v2828 = vunpack.c.l.b16 %v2796
  %v2829 = vunpack.c.l.b16 %v2797
  %v2830 = vunpack.c.l.b16 %v2798
  %v2831 = vunpack.c.l.b16 %v2799
  %v2832 = vunpack.c.l.b16 %v2800
  %v2833 = vunpack.c.l.b16 %v2801
  %v2834 = vunpack.c.l.b16 %v2802
  %v2835 = vunpack.c.l.b16 %v2803
  %v2836 = vunpack.c.l.b16 %v2804
  %v2837 = vpack.c.b16 %v2822, %v2821
  %v2838 = vpack.c.b16 %v2824, %v2823
  %v2839 = vpack.c.b16 %v2826, %v2825
  %v2840 = vpack.c.b16 %v2828, %v2827
  %v2841 = vpack.c.b16 %v2830, %v2829
  %v2842 = vpack.c.b16 %v2832, %v2831
  %v2843 = vpack.c.b16 %v2834, %v2833
  %v2844 = vpack.c.b16 %v2836, %v2835
  %2853 = vmatprep.subr.bf16.mxu0 0
  %2854 = vmatpush1.bf16.msra.mxu0 %v2837
  %2855 = vmatprep.subr.bf16.mxu0 0
  %2856 = vmatpush1.bf16.msra.mxu0 %v2838
  %2857 = vmatprep.subr.bf16.mxu0 0
  %2858 = vmatpush1.bf16.msra.mxu0 %v2839
  %2859 = vmatprep.subr.bf16.mxu0 0
  %2860 = vmatpush1.bf16.msra.mxu0 %v2840
  %2861 = vmatprep.subr.bf16.mxu0 0
  %2862 = vmatpush1.bf16.msra.mxu0 %v2841
  %2863 = vmatprep.subr.bf16.mxu0 0
  %2864 = vmatpush1.bf16.msra.mxu0 %v2842
  %2865 = vmatprep.subr.bf16.mxu0 0
  %2866 = vmatpush1.bf16.msra.mxu0 %v2843
  %2867 = vmatprep.subr.bf16.mxu0 0
  %2868 = vmatpush1.bf16.msra.mxu0 %v2844
  %2869 = vmatprep.subr.bf16.mxu0 0
  %2870 = vmatpush1.bf16.msra.mxu0 0
  %2871 = vmatprep.subr.bf16.mxu0 0
  %2872 = vmatpush1.bf16.msra.mxu0 0
  %2873 = vmatprep.subr.bf16.mxu0 0
  %2874 = vmatpush1.bf16.msra.mxu0 0
  %2875 = vmatprep.subr.bf16.mxu0 0
  %2876 = vmatpush1.bf16.msra.mxu0 0
  %2877 = vmatprep.subr.bf16.mxu0 0
  %2878 = vmatpush1.bf16.msra.mxu0 0
  %2879 = vmatprep.subr.bf16.mxu0 0
  %2880 = vmatpush1.bf16.msra.mxu0 0
  %2881 = vmatprep.subr.bf16.mxu0 0
  %2882 = vmatpush1.bf16.msra.mxu0 0
  %2883 = vmatprep.subr.bf16.mxu0 0
  %2884 = vmatpush1.bf16.msra.mxu0 0
  %2885 = vmatprep.mubr.bf16.mxu0 0
  %2886 = vmatmul.mubr.bf16.gmra.mrb[0].mxu0 %v2787
  %v2887 = vpop.f32.mrb[0].mxu0
  %v2888 = vadd.f32 0.0, %v2887
  %v2889 = vpop.f32.mrb[0].mxu0
  %v2890 = vpop.f32.mrb[0].mxu0
  %v2891 = vadd.f32 0.0, %v2890
  %v2892 = vpop.f32.mrb[0].mxu0
  %2893 = vmatprep.mubr.bf16.mxu0 0
  %2894 = vmatmul.mubr.bf16.gmra.mrb[0].mxu0 %v2788
  %v2895 = vpop.f32.mrb[0].mxu0
  %v2896 = vadd.f32 0.0, %v2895
  %v2897 = vpop.f32.mrb[0].mxu0
  %v2898 = vpop.f32.mrb[0].mxu0
  %v2899 = vadd.f32 0.0, %v2898
  %v2900 = vpop.f32.mrb[0].mxu0
  %2901 = vdwg.mxu0
  %v2902 = vadd.f32 %v2751, %v2888
  %v2903 = vadd.f32 %v2752, %v2891
  %v2904 = vadd.f32 %v2753, %v2896
  %v2905 = vadd.f32 %v2754, %v2899
  %s2906 = scalar_lea.vmem [#allocation4], 8
  %v2907 = vld [vmem:[%s2906] ss:$48 sm:$0x3]
  %v2908 = vld [vmem:[%s2906] ss:$48 sm:$0xc]
  %v2909 = vor.u32 %v2907, %v2908
  %v2910 = vld [vmem:[%s2906] ss:$48 sm:$0x30]
  %v2911 = vor.u32 %v2909, %v2910
  %v2912 = vld [vmem:[%s2906] ss:$48 sm:$0xc0]
  %v2913 = vor.u32 %v2911, %v2912
  %s2914 = scalar_lea.vmem [#allocation4], 392
  %v2915 = vld [vmem:[%s2914] ss:$48 sm:$0x3]
  %v2916 = vld [vmem:[%s2914] ss:$48 sm:$0xc]
  %v2917 = vor.u32 %v2915, %v2916
  %v2918 = vld [vmem:[%s2914] ss:$48 sm:$0x30]
  %v2919 = vor.u32 %v2917, %v2918
  %v2920 = vld [vmem:[%s2914] ss:$48 sm:$0xc0]
  %v2921 = vor.u32 %v2919, %v2920
  %s2922 = scalar_lea.vmem [#allocation4], 776
  %v2923 = vld [vmem:[%s2922] ss:$48 sm:$0x3]
  %v2924 = vld [vmem:[%s2922] ss:$48 sm:$0xc]
  %v2925 = vor.u32 %v2923, %v2924
  %v2926 = vld [vmem:[%s2922] ss:$48 sm:$0x30]
  %v2927 = vor.u32 %v2925, %v2926
  %v2928 = vld [vmem:[%s2922] ss:$48 sm:$0xc0]
  %v2929 = vor.u32 %v2927, %v2928
  %s2930 = scalar_lea.vmem [#allocation4], 1160
  %v2931 = vld [vmem:[%s2930] ss:$48 sm:$0x3]
  %v2932 = vld [vmem:[%s2930] ss:$48 sm:$0xc]
  %v2933 = vor.u32 %v2931, %v2932
  %v2934 = vld [vmem:[%s2930] ss:$48 sm:$0x30]
  %v2935 = vor.u32 %v2933, %v2934
  %v2936 = vld [vmem:[%s2930] ss:$48 sm:$0xc0]
  %v2937 = vor.u32 %v2935, %v2936
  %v2938 = vpack.c.bf16 %v2921, %v2913
  %v2939 = vpack.c.bf16 %v2937, %v2929
  %v2940 = vld [vmem:[%s5 + $0x100] sm:$0xf]
  %v2941 = vld [vmem:[%s5 + $0x104] sm:$0xf]
  %v2942 = vld [vmem:[%s5 + $0x108] sm:$0xf]
  %v2943 = vld [vmem:[%s5 + $0x10c] sm:$0xf]
  %v2944 = vld [vmem:[%s5 + $0x110] sm:$0xf]
  %v2945 = vld [vmem:[%s5 + $0x114] sm:$0xf]
  %v2946 = vld [vmem:[%s5 + $0x118] sm:$0xf]
  %v2947 = vld [vmem:[%s5 + $0x11c] sm:$0xf]
  %v2948 = vld [vmem:[%s5 + $0x120] sm:$0xf]
  %v2949 = vld [vmem:[%s5 + $0x124] sm:$0xf]
  %v2950 = vld [vmem:[%s5 + $0x128] sm:$0xf]
  %v2951 = vld [vmem:[%s5 + $0x12c] sm:$0xf]
  %v2952 = vld [vmem:[%s5 + $0x130] sm:$0xf]
  %v2953 = vld [vmem:[%s5 + $0x134] sm:$0xf]
  %v2954 = vld [vmem:[%s5 + $0x138] sm:$0xf]
  %v2955 = vld [vmem:[%s5 + $0x13c] sm:$0xf]
  %v2972 = vunpack.c.l.b16 %v2940
  %v2973 = vunpack.c.l.b16 %v2941
  %v2974 = vunpack.c.l.b16 %v2942
  %v2975 = vunpack.c.l.b16 %v2943
  %v2976 = vunpack.c.l.b16 %v2944
  %v2977 = vunpack.c.l.b16 %v2945
  %v2978 = vunpack.c.l.b16 %v2946
  %v2979 = vunpack.c.l.b16 %v2947
  %v2980 = vunpack.c.l.b16 %v2948
  %v2981 = vunpack.c.l.b16 %v2949
  %v2982 = vunpack.c.l.b16 %v2950
  %v2983 = vunpack.c.l.b16 %v2951
  %v2984 = vunpack.c.l.b16 %v2952
  %v2985 = vunpack.c.l.b16 %v2953
  %v2986 = vunpack.c.l.b16 %v2954
  %v2987 = vunpack.c.l.b16 %v2955
  %v2988 = vpack.c.b16 %v2973, %v2972
  %v2989 = vpack.c.b16 %v2975, %v2974
  %v2990 = vpack.c.b16 %v2977, %v2976
  %v2991 = vpack.c.b16 %v2979, %v2978
  %v2992 = vpack.c.b16 %v2981, %v2980
  %v2993 = vpack.c.b16 %v2983, %v2982
  %v2994 = vpack.c.b16 %v2985, %v2984
  %v2995 = vpack.c.b16 %v2987, %v2986
  %3004 = vmatprep.subr.bf16.mxu0 0
  %3005 = vmatpush1.bf16.msra.mxu0 %v2988
  %3006 = vmatprep.subr.bf16.mxu0 0
  %3007 = vmatpush1.bf16.msra.mxu0 %v2989
  %3008 = vmatprep.subr.bf16.mxu0 0
  %3009 = vmatpush1.bf16.msra.mxu0 %v2990
  %3010 = vmatprep.subr.bf16.mxu0 0
  %3011 = vmatpush1.bf16.msra.mxu0 %v2991
  %3012 = vmatprep.subr.bf16.mxu0 0
  %3013 = vmatpush1.bf16.msra.mxu0 %v2992
  %3014 = vmatprep.subr.bf16.mxu0 0
  %3015 = vmatpush1.bf16.msra.mxu0 %v2993
  %3016 = vmatprep.subr.bf16.mxu0 0
  %3017 = vmatpush1.bf16.msra.mxu0 %v2994
  %3018 = vmatprep.subr.bf16.mxu0 0
  %3019 = vmatpush1.bf16.msra.mxu0 %v2995
  %3020 = vmatprep.subr.bf16.mxu0 0
  %3021 = vmatpush1.bf16.msra.mxu0 0
  %3022 = vmatprep.subr.bf16.mxu0 0
  %3023 = vmatpush1.bf16.msra.mxu0 0
  %3024 = vmatprep.subr.bf16.mxu0 0
  %3025 = vmatpush1.bf16.msra.mxu0 0
  %3026 = vmatprep.subr.bf16.mxu0 0
  %3027 = vmatpush1.bf16.msra.mxu0 0
  %3028 = vmatprep.subr.bf16.mxu0 0
  %3029 = vmatpush1.bf16.msra.mxu0 0
  %3030 = vmatprep.subr.bf16.mxu0 0
  %3031 = vmatpush1.bf16.msra.mxu0 0
  %3032 = vmatprep.subr.bf16.mxu0 0
  %3033 = vmatpush1.bf16.msra.mxu0 0
  %3034 = vmatprep.subr.bf16.mxu0 0
  %3035 = vmatpush1.bf16.msra.mxu0 0
  %3036 = vmatprep.mubr.bf16.mxu0 0
  %3037 = vmatmul.mubr.bf16.gmra.mrb[0].mxu0 %v2938
  %v3038 = vpop.f32.mrb[0].mxu0
  %v3039 = vadd.f32 0.0, %v3038
  %v3040 = vpop.f32.mrb[0].mxu0
  %v3041 = vpop.f32.mrb[0].mxu0
  %v3042 = vadd.f32 0.0, %v3041
  %v3043 = vpop.f32.mrb[0].mxu0
  %3044 = vmatprep.mubr.bf16.mxu0 0
  %3045 = vmatmul.mubr.bf16.gmra.mrb[0].mxu0 %v2939
  %v3046 = vpop.f32.mrb[0].mxu0
  %v3047 = vadd.f32 0.0, %v3046
  %v3048 = vpop.f32.mrb[0].mxu0
  %v3049 = vpop.f32.mrb[0].mxu0
  %v3050 = vadd.f32 0.0, %v3049
  %v3051 = vpop.f32.mrb[0].mxu0
  %3052 = vdwg.mxu0
  %v3053 = vadd.f32 %v2902, %v3039
  %v3054 = vadd.f32 %v2903, %v3042
  %v3055 = vadd.f32 %v2904, %v3047
  %v3056 = vadd.f32 %v2905, %v3050
  %s3057 = scalar_lea.vmem [#allocation4], 9
  %v3058 = vld [vmem:[%s3057] ss:$48 sm:$0x3]
  %v3059 = vld [vmem:[%s3057] ss:$48 sm:$0xc]
  %v3060 = vor.u32 %v3058, %v3059
  %v3061 = vld [vmem:[%s3057] ss:$48 sm:$0x30]
  %v3062 = vor.u32 %v3060, %v3061
  %v3063 = vld [vmem:[%s3057] ss:$48 sm:$0xc0]
  %v3064 = vor.u32 %v3062, %v3063
  %s3065 = scalar_lea.vmem [#allocation4], 393
  %v3066 = vld [vmem:[%s3065] ss:$48 sm:$0x3]
  %v3067 = vld [vmem:[%s3065] ss:$48 sm:$0xc]
  %v3068 = vor.u32 %v3066, %v3067
  %v3069 = vld [vmem:[%s3065] ss:$48 sm:$0x30]
  %v3070 = vor.u32 %v3068, %v3069
  %v3071 = vld [vmem:[%s3065] ss:$48 sm:$0xc0]
  %v3072 = vor.u32 %v3070, %v3071
  %s3073 = scalar_lea.vmem [#allocation4], 777
  %v3074 = vld [vmem:[%s3073] ss:$48 sm:$0x3]
  %v3075 = vld [vmem:[%s3073] ss:$48 sm:$0xc]
  %v3076 = vor.u32 %v3074, %v3075
  %v3077 = vld [vmem:[%s3073] ss:$48 sm:$0x30]
  %v3078 = vor.u32 %v3076, %v3077
  %v3079 = vld [vmem:[%s3073] ss:$48 sm:$0xc0]
  %v3080 = vor.u32 %v3078, %v3079
  %s3081 = scalar_lea.vmem [#allocation4], 1161
  %v3082 = vld [vmem:[%s3081] ss:$48 sm:$0x3]
  %v3083 = vld [vmem:[%s3081] ss:$48 sm:$0xc]
  %v3084 = vor.u32 %v3082, %v3083
  %v3085 = vld [vmem:[%s3081] ss:$48 sm:$0x30]
  %v3086 = vor.u32 %v3084, %v3085
  %v3087 = vld [vmem:[%s3081] ss:$48 sm:$0xc0]
  %v3088 = vor.u32 %v3086, %v3087
  %v3089 = vpack.c.bf16 %v3072, %v3064
  %v3090 = vpack.c.bf16 %v3088, %v3080
  %v3091 = vld [vmem:[%s5 + $0x140] sm:$0xf]
  %v3092 = vld [vmem:[%s5 + $0x144] sm:$0xf]
  %v3093 = vld [vmem:[%s5 + $0x148] sm:$0xf]
  %v3094 = vld [vmem:[%s5 + $0x14c] sm:$0xf]
  %v3095 = vld [vmem:[%s5 + $0x150] sm:$0xf]
  %v3096 = vld [vmem:[%s5 + $0x154] sm:$0xf]
  %v3097 = vld [vmem:[%s5 + $0x158] sm:$0xf]
  %v3098 = vld [vmem:[%s5 + $0x15c] sm:$0xf]
  %v3099 = vld [vmem:[%s5 + $0x160] sm:$0xf]
  %v3100 = vld [vmem:[%s5 + $0x164] sm:$0xf]
  %v3101 = vld [vmem:[%s5 + $0x168] sm:$0xf]
  %v3102 = vld [vmem:[%s5 + $0x16c] sm:$0xf]
  %v3103 = vld [vmem:[%s5 + $0x170] sm:$0xf]
  %v3104 = vld [vmem:[%s5 + $0x174] sm:$0xf]
  %v3105 = vld [vmem:[%s5 + $0x178] sm:$0xf]
  %v3106 = vld [vmem:[%s5 + $0x17c] sm:$0xf]
  %v3123 = vunpack.c.l.b16 %v3091
  %v3124 = vunpack.c.l.b16 %v3092
  %v3125 = vunpack.c.l.b16 %v3093
  %v3126 = vunpack.c.l.b16 %v3094
  %v3127 = vunpack.c.l.b16 %v3095
  %v3128 = vunpack.c.l.b16 %v3096
  %v3129 = vunpack.c.l.b16 %v3097
  %v3130 = vunpack.c.l.b16 %v3098
  %v3131 = vunpack.c.l.b16 %v3099
  %v3132 = vunpack.c.l.b16 %v3100
  %v3133 = vunpack.c.l.b16 %v3101
  %v3134 = vunpack.c.l.b16 %v3102
  %v3135 = vunpack.c.l.b16 %v3103
  %v3136 = vunpack.c.l.b16 %v3104
  %v3137 = vunpack.c.l.b16 %v3105
  %v3138 = vunpack.c.l.b16 %v3106
  %v3139 = vpack.c.b16 %v3124, %v3123
  %v3140 = vpack.c.b16 %v3126, %v3125
  %v3141 = vpack.c.b16 %v3128, %v3127
  %v3142 = vpack.c.b16 %v3130, %v3129
  %v3143 = vpack.c.b16 %v3132, %v3131
  %v3144 = vpack.c.b16 %v3134, %v3133
  %v3145 = vpack.c.b16 %v3136, %v3135
  %v3146 = vpack.c.b16 %v3138, %v3137
  %3155 = vmatprep.subr.bf16.mxu0 0
  %3156 = vmatpush1.bf16.msra.mxu0 %v3139
  %3157 = vmatprep.subr.bf16.mxu0 0
  %3158 = vmatpush1.bf16.msra.mxu0 %v3140
  %3159 = vmatprep.subr.bf16.mxu0 0
  %3160 = vmatpush1.bf16.msra.mxu0 %v3141
  %3161 = vmatprep.subr.bf16.mxu0 0
  %3162 = vmatpush1.bf16.msra.mxu0 %v3142
  %3163 = vmatprep.subr.bf16.mxu0 0
  %3164 = vmatpush1.bf16.msra.mxu0 %v3143
  %3165 = vmatprep.subr.bf16.mxu0 0
  %3166 = vmatpush1.bf16.msra.mxu0 %v3144
  %3167 = vmatprep.subr.bf16.mxu0 0
  %3168 = vmatpush1.bf16.msra.mxu0 %v3145
  %3169 = vmatprep.subr.bf16.mxu0 0
  %3170 = vmatpush1.bf16.msra.mxu0 %v3146
  %3171 = vmatprep.subr.bf16.mxu0 0
  %3172 = vmatpush1.bf16.msra.mxu0 0
  %3173 = vmatprep.subr.bf16.mxu0 0
  %3174 = vmatpush1.bf16.msra.mxu0 0
  %3175 = vmatprep.subr.bf16.mxu0 0
  %3176 = vmatpush1.bf16.msra.mxu0 0
  %3177 = vmatprep.subr.bf16.mxu0 0
  %3178 = vmatpush1.bf16.msra.mxu0 0
  %3179 = vmatprep.subr.bf16.mxu0 0
  %3180 = vmatpush1.bf16.msra.mxu0 0
  %3181 = vmatprep.subr.bf16.mxu0 0
  %3182 = vmatpush1.bf16.msra.mxu0 0
  %3183 = vmatprep.subr.bf16.mxu0 0
  %3184 = vmatpush1.bf16.msra.mxu0 0
  %3185 = vmatprep.subr.bf16.mxu0 0
  %3186 = vmatpush1.bf16.msra.mxu0 0
  %3187 = vmatprep.mubr.bf16.mxu0 0
  %3188 = vmatmul.mubr.bf16.gmra.mrb[0].mxu0 %v3089
  %v3189 = vpop.f32.mrb[0].mxu0
  %v3190 = vadd.f32 0.0, %v3189
  %v3191 = vpop.f32.mrb[0].mxu0
  %v3192 = vpop.f32.mrb[0].mxu0
  %v3193 = vadd.f32 0.0, %v3192
  %v3194 = vpop.f32.mrb[0].mxu0
  %3195 = vmatprep.mubr.bf16.mxu0 0
  %3196 = vmatmul.mubr.bf16.gmra.mrb[0].mxu0 %v3090
  %v3197 = vpop.f32.mrb[0].mxu0
  %v3198 = vadd.f32 0.0, %v3197
  %v3199 = vpop.f32.mrb[0].mxu0
  %v3200 = vpop.f32.mrb[0].mxu0
  %v3201 = vadd.f32 0.0, %v3200
  %v3202 = vpop.f32.mrb[0].mxu0
  %3203 = vdwg.mxu0
  %v3204 = vadd.f32 %v3053, %v3190
  %v3205 = vadd.f32 %v3054, %v3193
  %v3206 = vadd.f32 %v3055, %v3198
  %v3207 = vadd.f32 %v3056, %v3201
  %s3208 = scalar_lea.vmem [#allocation4], 10
  %v3209 = vld [vmem:[%s3208] ss:$48 sm:$0x3]
  %v3210 = vld [vmem:[%s3208] ss:$48 sm:$0xc]
  %v3211 = vor.u32 %v3209, %v3210
  %v3212 = vld [vmem:[%s3208] ss:$48 sm:$0x30]
  %v3213 = vor.u32 %v3211, %v3212
  %v3214 = vld [vmem:[%s3208] ss:$48 sm:$0xc0]
  %v3215 = vor.u32 %v3213, %v3214
  %s3216 = scalar_lea.vmem [#allocation4], 394
  %v3217 = vld [vmem:[%s3216] ss:$48 sm:$0x3]
  %v3218 = vld [vmem:[%s3216] ss:$48 sm:$0xc]
  %v3219 = vor.u32 %v3217, %v3218
  %v3220 = vld [vmem:[%s3216] ss:$48 sm:$0x30]
  %v3221 = vor.u32 %v3219, %v3220
  %v3222 = vld [vmem:[%s3216] ss:$48 sm:$0xc0]
  %v3223 = vor.u32 %v3221, %v3222
  %s3224 = scalar_lea.vmem [#allocation4], 778
  %v3225 = vld [vmem:[%s3224] ss:$48 sm:$0x3]
  %v3226 = vld [vmem:[%s3224] ss:$48 sm:$0xc]
  %v3227 = vor.u32 %v3225, %v3226
  %v3228 = vld [vmem:[%s3224] ss:$48 sm:$0x30]
  %v3229 = vor.u32 %v3227, %v3228
  %v3230 = vld [vmem:[%s3224] ss:$48 sm:$0xc0]
  %v3231 = vor.u32 %v3229, %v3230
  %s3232 = scalar_lea.vmem [#allocation4], 1162
  %v3233 = vld [vmem:[%s3232] ss:$48 sm:$0x3]
  %v3234 = vld [vmem:[%s3232] ss:$48 sm:$0xc]
  %v3235 = vor.u32 %v3233, %v3234
  %v3236 = vld [vmem:[%s3232] ss:$48 sm:$0x30]
  %v3237 = vor.u32 %v3235, %v3236
  %v3238 = vld [vmem:[%s3232] ss:$48 sm:$0xc0]
  %v3239 = vor.u32 %v3237, %v3238
  %v3240 = vpack.c.bf16 %v3223, %v3215
  %v3241 = vpack.c.bf16 %v3239, %v3231
  %v3242 = vld [vmem:[%s5 + $0x180] sm:$0xf]
  %v3243 = vld [vmem:[%s5 + $0x184] sm:$0xf]
  %v3244 = vld [vmem:[%s5 + $0x188] sm:$0xf]
  %v3245 = vld [vmem:[%s5 + $0x18c] sm:$0xf]
  %v3246 = vld [vmem:[%s5 + $0x190] sm:$0xf]
  %v3247 = vld [vmem:[%s5 + $0x194] sm:$0xf]
  %v3248 = vld [vmem:[%s5 + $0x198] sm:$0xf]
  %v3249 = vld [vmem:[%s5 + $0x19c] sm:$0xf]
  %v3250 = vld [vmem:[%s5 + $0x1a0] sm:$0xf]
  %v3251 = vld [vmem:[%s5 + $0x1a4] sm:$0xf]
  %v3252 = vld [vmem:[%s5 + $0x1a8] sm:$0xf]
  %v3253 = vld [vmem:[%s5 + $0x1ac] sm:$0xf]
  %v3254 = vld [vmem:[%s5 + $0x1b0] sm:$0xf]
  %v3255 = vld [vmem:[%s5 + $0x1b4] sm:$0xf]
  %v3256 = vld [vmem:[%s5 + $0x1b8] sm:$0xf]
  %v3257 = vld [vmem:[%s5 + $0x1bc] sm:$0xf]
  %v3274 = vunpack.c.l.b16 %v3242
  %v3275 = vunpack.c.l.b16 %v3243
  %v3276 = vunpack.c.l.b16 %v3244
  %v3277 = vunpack.c.l.b16 %v3245
  %v3278 = vunpack.c.l.b16 %v3246
  %v3279 = vunpack.c.l.b16 %v3247
  %v3280 = vunpack.c.l.b16 %v3248
  %v3281 = vunpack.c.l.b16 %v3249
  %v3282 = vunpack.c.l.b16 %v3250
  %v3283 = vunpack.c.l.b16 %v3251
  %v3284 = vunpack.c.l.b16 %v3252
  %v3285 = vunpack.c.l.b16 %v3253
  %v3286 = vunpack.c.l.b16 %v3254
  %v3287 = vunpack.c.l.b16 %v3255
  %v3288 = vunpack.c.l.b16 %v3256
  %v3289 = vunpack.c.l.b16 %v3257
  %v3290 = vpack.c.b16 %v3275, %v3274
  %v3291 = vpack.c.b16 %v3277, %v3276
  %v3292 = vpack.c.b16 %v3279, %v3278
  %v3293 = vpack.c.b16 %v3281, %v3280
  %v3294 = vpack.c.b16 %v3283, %v3282
  %v3295 = vpack.c.b16 %v3285, %v3284
  %v3296 = vpack.c.b16 %v3287, %v3286
  %v3297 = vpack.c.b16 %v3289, %v3288
  %3306 = vmatprep.subr.bf16.mxu0 0
  %3307 = vmatpush1.bf16.msra.mxu0 %v3290
  %3308 = vmatprep.subr.bf16.mxu0 0
  %3309 = vmatpush1.bf16.msra.mxu0 %v3291
  %3310 = vmatprep.subr.bf16.mxu0 0
  %3311 = vmatpush1.bf16.msra.mxu0 %v3292
  %3312 = vmatprep.subr.bf16.mxu0 0
  %3313 = vmatpush1.bf16.msra.mxu0 %v3293
  %3314 = vmatprep.subr.bf16.mxu0 0
  %3315 = vmatpush1.bf16.msra.mxu0 %v3294
  %3316 = vmatprep.subr.bf16.mxu0 0
  %3317 = vmatpush1.bf16.msra.mxu0 %v3295
  %3318 = vmatprep.subr.bf16.mxu0 0
  %3319 = vmatpush1.bf16.msra.mxu0 %v3296
  %3320 = vmatprep.subr.bf16.mxu0 0
  %3321 = vmatpush1.bf16.msra.mxu0 %v3297
  %3322 = vmatprep.subr.bf16.mxu0 0
  %3323 = vmatpush1.bf16.msra.mxu0 0
  %3324 = vmatprep.subr.bf16.mxu0 0
  %3325 = vmatpush1.bf16.msra.mxu0 0
  %3326 = vmatprep.subr.bf16.mxu0 0
  %3327 = vmatpush1.bf16.msra.mxu0 0
  %3328 = vmatprep.subr.bf16.mxu0 0
  %3329 = vmatpush1.bf16.msra.mxu0 0
  %3330 = vmatprep.subr.bf16.mxu0 0
  %3331 = vmatpush1.bf16.msra.mxu0 0
  %3332 = vmatprep.subr.bf16.mxu0 0
  %3333 = vmatpush1.bf16.msra.mxu0 0
  %3334 = vmatprep.subr.bf16.mxu0 0
  %3335 = vmatpush1.bf16.msra.mxu0 0
  %3336 = vmatprep.subr.bf16.mxu0 0
  %3337 = vmatpush1.bf16.msra.mxu0 0
  %3338 = vmatprep.mubr.bf16.mxu0 0
  %3339 = vmatmul.mubr.bf16.gmra.mrb[0].mxu0 %v3240
  %v3340 = vpop.f32.mrb[0].mxu0
  %v3341 = vadd.f32 0.0, %v3340
  %v3342 = vpop.f32.mrb[0].mxu0
  %v3343 = vpop.f32.mrb[0].mxu0
  %v3344 = vadd.f32 0.0, %v3343
  %v3345 = vpop.f32.mrb[0].mxu0
  %3346 = vmatprep.mubr.bf16.mxu0 0
  %3347 = vmatmul.mubr.bf16.gmra.mrb[0].mxu0 %v3241
  %v3348 = vpop.f32.mrb[0].mxu0
  %v3349 = vadd.f32 0.0, %v3348
  %v3350 = vpop.f32.mrb[0].mxu0
  %v3351 = vpop.f32.mrb[0].mxu0
  %v3352 = vadd.f32 0.0, %v3351
  %v3353 = vpop.f32.mrb[0].mxu0
  %3354 = vdwg.mxu0
  %v3355 = vadd.f32 %v3204, %v3341
  %v3356 = vadd.f32 %v3205, %v3344
  %v3357 = vadd.f32 %v3206, %v3349
  %v3358 = vadd.f32 %v3207, %v3352
  %s3359 = scalar_lea.vmem [#allocation4], 11
  %v3360 = vld [vmem:[%s3359] ss:$48 sm:$0x3]
  %v3361 = vld [vmem:[%s3359] ss:$48 sm:$0xc]
  %v3362 = vor.u32 %v3360, %v3361
  %v3363 = vld [vmem:[%s3359] ss:$48 sm:$0x30]
  %v3364 = vor.u32 %v3362, %v3363
  %v3365 = vld [vmem:[%s3359] ss:$48 sm:$0xc0]
  %v3366 = vor.u32 %v3364, %v3365
  %s3367 = scalar_lea.vmem [#allocation4], 395
  %v3368 = vld [vmem:[%s3367] ss:$48 sm:$0x3]
  %v3369 = vld [vmem:[%s3367] ss:$48 sm:$0xc]
  %v3370 = vor.u32 %v3368, %v3369
  %v3371 = vld [vmem:[%s3367] ss:$48 sm:$0x30]
  %v3372 = vor.u32 %v3370, %v3371
  %v3373 = vld [vmem:[%s3367] ss:$48 sm:$0xc0]
  %v3374 = vor.u32 %v3372, %v3373
  %s3375 = scalar_lea.vmem [#allocation4], 779
  %v3376 = vld [vmem:[%s3375] ss:$48 sm:$0x3]
  %v3377 = vld [vmem:[%s3375] ss:$48 sm:$0xc]
  %v3378 = vor.u32 %v3376, %v3377
  %v3379 = vld [vmem:[%s3375] ss:$48 sm:$0x30]
  %v3380 = vor.u32 %v3378, %v3379
  %v3381 = vld [vmem:[%s3375] ss:$48 sm:$0xc0]
  %v3382 = vor.u32 %v3380, %v3381
  %s3383 = scalar_lea.vmem [#allocation4], 1163
  %v3384 = vld [vmem:[%s3383] ss:$48 sm:$0x3]
  %v3385 = vld [vmem:[%s3383] ss:$48 sm:$0xc]
  %v3386 = vor.u32 %v3384, %v3385
  %v3387 = vld [vmem:[%s3383] ss:$48 sm:$0x30]
  %v3388 = vor.u32 %v3386, %v3387
  %v3389 = vld [vmem:[%s3383] ss:$48 sm:$0xc0]
  %v3390 = vor.u32 %v3388, %v3389
  %v3391 = vpack.c.bf16 %v3374, %v3366
  %v3392 = vpack.c.bf16 %v3390, %v3382
  %v3393 = vld [vmem:[%s5 + $0x1c0] sm:$0xf]
  %v3394 = vld [vmem:[%s5 + $0x1c4] sm:$0xf]
  %v3395 = vld [vmem:[%s5 + $0x1c8] sm:$0xf]
  %v3396 = vld [vmem:[%s5 + $0x1cc] sm:$0xf]
  %v3397 = vld [vmem:[%s5 + $0x1d0] sm:$0xf]
  %v3398 = vld [vmem:[%s5 + $0x1d4] sm:$0xf]
  %v3399 = vld [vmem:[%s5 + $0x1d8] sm:$0xf]
  %v3400 = vld [vmem:[%s5 + $0x1dc] sm:$0xf]
  %v3401 = vld [vmem:[%s5 + $0x1e0] sm:$0xf]
  %v3402 = vld [vmem:[%s5 + $0x1e4] sm:$0xf]
  %v3403 = vld [vmem:[%s5 + $0x1e8] sm:$0xf]
  %v3404 = vld [vmem:[%s5 + $0x1ec] sm:$0xf]
  %v3405 = vld [vmem:[%s5 + $0x1f0] sm:$0xf]
  %v3406 = vld [vmem:[%s5 + $0x1f4] sm:$0xf]
  %v3407 = vld [vmem:[%s5 + $0x1f8] sm:$0xf]
  %v3408 = vld [vmem:[%s5 + $0x1fc] sm:$0xf]
  %v3425 = vunpack.c.l.b16 %v3393
  %v3426 = vunpack.c.l.b16 %v3394
  %v3427 = vunpack.c.l.b16 %v3395
  %v3428 = vunpack.c.l.b16 %v3396
  %v3429 = vunpack.c.l.b16 %v3397
  %v3430 = vunpack.c.l.b16 %v3398
  %v3431 = vunpack.c.l.b16 %v3399
  %v3432 = vunpack.c.l.b16 %v3400
  %v3433 = vunpack.c.l.b16 %v3401
  %v3434 = vunpack.c.l.b16 %v3402
  %v3435 = vunpack.c.l.b16 %v3403
  %v3436 = vunpack.c.l.b16 %v3404
  %v3437 = vunpack.c.l.b16 %v3405
  %v3438 = vunpack.c.l.b16 %v3406
  %v3439 = vunpack.c.l.b16 %v3407
  %v3440 = vunpack.c.l.b16 %v3408
  %v3441 = vpack.c.b16 %v3426, %v3425
  %v3442 = vpack.c.b16 %v3428, %v3427
  %v3443 = vpack.c.b16 %v3430, %v3429
  %v3444 = vpack.c.b16 %v3432, %v3431
  %v3445 = vpack.c.b16 %v3434, %v3433
  %v3446 = vpack.c.b16 %v3436, %v3435
  %v3447 = vpack.c.b16 %v3438, %v3437
  %v3448 = vpack.c.b16 %v3440, %v3439
  %3457 = vmatprep.subr.bf16.mxu0 0
  %3458 = vmatpush1.bf16.msra.mxu0 %v3441
  %3459 = vmatprep.subr.bf16.mxu0 0
  %3460 = vmatpush1.bf16.msra.mxu0 %v3442
  %3461 = vmatprep.subr.bf16.mxu0 0
  %3462 = vmatpush1.bf16.msra.mxu0 %v3443
  %3463 = vmatprep.subr.bf16.mxu0 0
  %3464 = vmatpush1.bf16.msra.mxu0 %v3444
  %3465 = vmatprep.subr.bf16.mxu0 0
  %3466 = vmatpush1.bf16.msra.mxu0 %v3445
  %3467 = vmatprep.subr.bf16.mxu0 0
  %3468 = vmatpush1.bf16.msra.mxu0 %v3446
  %3469 = vmatprep.subr.bf16.mxu0 0
  %3470 = vmatpush1.bf16.msra.mxu0 %v3447
  %3471 = vmatprep.subr.bf16.mxu0 0
  %3472 = vmatpush1.bf16.msra.mxu0 %v3448
  %3473 = vmatprep.subr.bf16.mxu0 0
  %3474 = vmatpush1.bf16.msra.mxu0 0
  %3475 = vmatprep.subr.bf16.mxu0 0
  %3476 = vmatpush1.bf16.msra.mxu0 0
  %3477 = vmatprep.subr.bf16.mxu0 0
  %3478 = vmatpush1.bf16.msra.mxu0 0
  %3479 = vmatprep.subr.bf16.mxu0 0
  %3480 = vmatpush1.bf16.msra.mxu0 0
  %3481 = vmatprep.subr.bf16.mxu0 0
  %3482 = vmatpush1.bf16.msra.mxu0 0
  %3483 = vmatprep.subr.bf16.mxu0 0
  %3484 = vmatpush1.bf16.msra.mxu0 0
  %3485 = vmatprep.subr.bf16.mxu0 0
  %3486 = vmatpush1.bf16.msra.mxu0 0
  %3487 = vmatprep.subr.bf16.mxu0 0
  %3488 = vmatpush1.bf16.msra.mxu0 0
  %3489 = vmatprep.mubr.bf16.mxu0 0
  %3490 = vmatmul.mubr.bf16.gmra.mrb[0].mxu0 %v3391
  %v3491 = vpop.f32.mrb[0].mxu0
  %v3492 = vadd.f32 0.0, %v3491
  %v3493 = vpop.f32.mrb[0].mxu0
  %v3494 = vpop.f32.mrb[0].mxu0
  %v3495 = vadd.f32 0.0, %v3494
  %v3496 = vpop.f32.mrb[0].mxu0
  %3497 = vmatprep.mubr.bf16.mxu0 0
  %3498 = vmatmul.mubr.bf16.gmra.mrb[0].mxu0 %v3392
  %v3499 = vpop.f32.mrb[0].mxu0
  %v3500 = vadd.f32 0.0, %v3499
  %v3501 = vpop.f32.mrb[0].mxu0
  %v3502 = vpop.f32.mrb[0].mxu0
  %v3503 = vadd.f32 0.0, %v3502
  %v3504 = vpop.f32.mrb[0].mxu0
  %3505 = vdwg.mxu0
  %v3506 = vadd.f32 %v3355, %v3492
  %v3507 = vadd.f32 %v3356, %v3495
  %v3508 = vadd.f32 %v3357, %v3500
  %v3509 = vadd.f32 %v3358, %v3503
  %s3510 = scalar_lea.vmem [#allocation4], 16
  %v3511 = vld [vmem:[%s3510] ss:$48 sm:$0x3]
  %v3512 = vld [vmem:[%s3510] ss:$48 sm:$0xc]
  %v3513 = vor.u32 %v3511, %v3512
  %v3514 = vld [vmem:[%s3510] ss:$48 sm:$0x30]
  %v3515 = vor.u32 %v3513, %v3514
  %v3516 = vld [vmem:[%s3510] ss:$48 sm:$0xc0]
  %v3517 = vor.u32 %v3515, %v3516
  %s3518 = scalar_lea.vmem [#allocation4], 400
  %v3519 = vld [vmem:[%s3518] ss:$48 sm:$0x3]
  %v3520 = vld [vmem:[%s3518] ss:$48 sm:$0xc]
  %v3521 = vor.u32 %v3519, %v3520
  %v3522 = vld [vmem:[%s3518] ss:$48 sm:$0x30]
  %v3523 = vor.u32 %v3521, %v3522
  %v3524 = vld [vmem:[%s3518] ss:$48 sm:$0xc0]
  %v3525 = vor.u32 %v3523, %v3524
  %s3526 = scalar_lea.vmem [#allocation4], 784
  %v3527 = vld [vmem:[%s3526] ss:$48 sm:$0x3]
  %v3528 = vld [vmem:[%s3526] ss:$48 sm:$0xc]
  %v3529 = vor.u32 %v3527, %v3528
  %v3530 = vld [vmem:[%s3526] ss:$48 sm:$0x30]
  %v3531 = vor.u32 %v3529, %v3530
  %v3532 = vld [vmem:[%s3526] ss:$48 sm:$0xc0]
  %v3533 = vor.u32 %v3531, %v3532
  %s3534 = scalar_lea.vmem [#allocation4], 1168
  %v3535 = vld [vmem:[%s3534] ss:$48 sm:$0x3]
  %v3536 = vld [vmem:[%s3534] ss:$48 sm:$0xc]
  %v3537 = vor.u32 %v3535, %v3536
  %v3538 = vld [vmem:[%s3534] ss:$48 sm:$0x30]
  %v3539 = vor.u32 %v3537, %v3538
  %v3540 = vld [vmem:[%s3534] ss:$48 sm:$0xc0]
  %v3541 = vor.u32 %v3539, %v3540
  %v3542 = vpack.c.bf16 %v3525, %v3517
  %v3543 = vpack.c.bf16 %v3541, %v3533
  %v3544 = vld [vmem:[%s5 + $0x200] sm:$0xf]
  %v3545 = vld [vmem:[%s5 + $0x204] sm:$0xf]
  %v3546 = vld [vmem:[%s5 + $0x208] sm:$0xf]
  %v3547 = vld [vmem:[%s5 + $0x20c] sm:$0xf]
  %v3548 = vld [vmem:[%s5 + $0x210] sm:$0xf]
  %v3549 = vld [vmem:[%s5 + $0x214] sm:$0xf]
  %v3550 = vld [vmem:[%s5 + $0x218] sm:$0xf]
  %v3551 = vld [vmem:[%s5 + $0x21c] sm:$0xf]
  %v3552 = vld [vmem:[%s5 + $0x220] sm:$0xf]
  %v3553 = vld [vmem:[%s5 + $0x224] sm:$0xf]
  %v3554 = vld [vmem:[%s5 + $0x228] sm:$0xf]
  %v3555 = vld [vmem:[%s5 + $0x22c] sm:$0xf]
  %v3556 = vld [vmem:[%s5 + $0x230] sm:$0xf]
  %v3557 = vld [vmem:[%s5 + $0x234] sm:$0xf]
  %v3558 = vld [vmem:[%s5 + $0x238] sm:$0xf]
  %v3559 = vld [vmem:[%s5 + $0x23c] sm:$0xf]
  %v3576 = vunpack.c.l.b16 %v3544
  %v3577 = vunpack.c.l.b16 %v3545
  %v3578 = vunpack.c.l.b16 %v3546
  %v3579 = vunpack.c.l.b16 %v3547
  %v3580 = vunpack.c.l.b16 %v3548
  %v3581 = vunpack.c.l.b16 %v3549
  %v3582 = vunpack.c.l.b16 %v3550
  %v3583 = vunpack.c.l.b16 %v3551
  %v3584 = vunpack.c.l.b16 %v3552
  %v3585 = vunpack.c.l.b16 %v3553
  %v3586 = vunpack.c.l.b16 %v3554
  %v3587 = vunpack.c.l.b16 %v3555
  %v3588 = vunpack.c.l.b16 %v3556
  %v3589 = vunpack.c.l.b16 %v3557
  %v3590 = vunpack.c.l.b16 %v3558
  %v3591 = vunpack.c.l.b16 %v3559
  %v3592 = vpack.c.b16 %v3577, %v3576
  %v3593 = vpack.c.b16 %v3579, %v3578
  %v3594 = vpack.c.b16 %v3581, %v3580
  %v3595 = vpack.c.b16 %v3583, %v3582
  %v3596 = vpack.c.b16 %v3585, %v3584
  %v3597 = vpack.c.b16 %v3587, %v3586
  %v3598 = vpack.c.b16 %v3589, %v3588
  %v3599 = vpack.c.b16 %v3591, %v3590
  %3608 = vmatprep.subr.bf16.mxu0 0
  %3609 = vmatpush1.bf16.msra.mxu0 %v3592
  %3610 = vmatprep.subr.bf16.mxu0 0
  %3611 = vmatpush1.bf16.msra.mxu0 %v3593
  %3612 = vmatprep.subr.bf16.mxu0 0
  %3613 = vmatpush1.bf16.msra.mxu0 %v3594
  %3614 = vmatprep.subr.bf16.mxu0 0
  %3615 = vmatpush1.bf16.msra.mxu0 %v3595
  %3616 = vmatprep.subr.bf16.mxu0 0
  %3617 = vmatpush1.bf16.msra.mxu0 %v3596
  %3618 = vmatprep.subr.bf16.mxu0 0
  %3619 = vmatpush1.bf16.msra.mxu0 %v3597
  %3620 = vmatprep.subr.bf16.mxu0 0
  %3621 = vmatpush1.bf16.msra.mxu0 %v3598
  %3622 = vmatprep.subr.bf16.mxu0 0
  %3623 = vmatpush1.bf16.msra.mxu0 %v3599
  %3624 = vmatprep.subr.bf16.mxu0 0
  %3625 = vmatpush1.bf16.msra.mxu0 0
  %3626 = vmatprep.subr.bf16.mxu0 0
  %3627 = vmatpush1.bf16.msra.mxu0 0
  %3628 = vmatprep.subr.bf16.mxu0 0
  %3629 = vmatpush1.bf16.msra.mxu0 0
  %3630 = vmatprep.subr.bf16.mxu0 0
  %3631 = vmatpush1.bf16.msra.mxu0 0
  %3632 = vmatprep.subr.bf16.mxu0 0
  %3633 = vmatpush1.bf16.msra.mxu0 0
  %3634 = vmatprep.subr.bf16.mxu0 0
  %3635 = vmatpush1.bf16.msra.mxu0 0
  %3636 = vmatprep.subr.bf16.mxu0 0
  %3637 = vmatpush1.bf16.msra.mxu0 0
  %3638 = vmatprep.subr.bf16.mxu0 0
  %3639 = vmatpush1.bf16.msra.mxu0 0
  %3640 = vmatprep.mubr.bf16.mxu0 0
  %3641 = vmatmul.mubr.bf16.gmra.mrb[0].mxu0 %v3542
  %v3642 = vpop.f32.mrb[0].mxu0
  %v3643 = vadd.f32 0.0, %v3642
  %v3644 = vpop.f32.mrb[0].mxu0
  %v3645 = vpop.f32.mrb[0].mxu0
  %v3646 = vadd.f32 0.0, %v3645
  %v3647 = vpop.f32.mrb[0].mxu0
  %3648 = vmatprep.mubr.bf16.mxu0 0
  %3649 = vmatmul.mubr.bf16.gmra.mrb[0].mxu0 %v3543
  %v3650 = vpop.f32.mrb[0].mxu0
  %v3651 = vadd.f32 0.0, %v3650
  %v3652 = vpop.f32.mrb[0].mxu0
  %v3653 = vpop.f32.mrb[0].mxu0
  %v3654 = vadd.f32 0.0, %v3653
  %v3655 = vpop.f32.mrb[0].mxu0
  %3656 = vdwg.mxu0
  %v3657 = vadd.f32 %v3506, %v3643
  %v3658 = vadd.f32 %v3507, %v3646
  %v3659 = vadd.f32 %v3508, %v3651
  %v3660 = vadd.f32 %v3509, %v3654
  %s3661 = scalar_lea.vmem [#allocation4], 17
  %v3662 = vld [vmem:[%s3661] ss:$48 sm:$0x3]
  %v3663 = vld [vmem:[%s3661] ss:$48 sm:$0xc]
  %v3664 = vor.u32 %v3662, %v3663
  %v3665 = vld [vmem:[%s3661] ss:$48 sm:$0x30]
  %v3666 = vor.u32 %v3664, %v3665
  %v3667 = vld [vmem:[%s3661] ss:$48 sm:$0xc0]
  %v3668 = vor.u32 %v3666, %v3667
  %s3669 = scalar_lea.vmem [#allocation4], 401
  %v3670 = vld [vmem:[%s3669] ss:$48 sm:$0x3]
  %v3671 = vld [vmem:[%s3669] ss:$48 sm:$0xc]
  %v3672 = vor.u32 %v3670, %v3671
  %v3673 = vld [vmem:[%s3669] ss:$48 sm:$0x30]
  %v3674 = vor.u32 %v3672, %v3673
  %v3675 = vld [vmem:[%s3669] ss:$48 sm:$0xc0]
  %v3676 = vor.u32 %v3674, %v3675
  %s3677 = scalar_lea.vmem [#allocation4], 785
  %v3678 = vld [vmem:[%s3677] ss:$48 sm:$0x3]
  %v3679 = vld [vmem:[%s3677] ss:$48 sm:$0xc]
  %v3680 = vor.u32 %v3678, %v3679
  %v3681 = vld [vmem:[%s3677] ss:$48 sm:$0x30]
  %v3682 = vor.u32 %v3680, %v3681
  %v3683 = vld [vmem:[%s3677] ss:$48 sm:$0xc0]
  %v3684 = vor.u32 %v3682, %v3683
  %s3685 = scalar_lea.vmem [#allocation4], 1169
  %v3686 = vld [vmem:[%s3685] ss:$48 sm:$0x3]
  %v3687 = vld [vmem:[%s3685] ss:$48 sm:$0xc]
  %v3688 = vor.u32 %v3686, %v3687
  %v3689 = vld [vmem:[%s3685] ss:$48 sm:$0x30]
  %v3690 = vor.u32 %v3688, %v3689
  %v3691 = vld [vmem:[%s3685] ss:$48 sm:$0xc0]
  %v3692 = vor.u32 %v3690, %v3691
  %v3693 = vpack.c.bf16 %v3676, %v3668
  %v3694 = vpack.c.bf16 %v3692, %v3684
  %v3695 = vld [vmem:[%s5 + $0x240] sm:$0xf]
  %v3696 = vld [vmem:[%s5 + $0x244] sm:$0xf]
  %v3697 = vld [vmem:[%s5 + $0x248] sm:$0xf]
  %v3698 = vld [vmem:[%s5 + $0x24c] sm:$0xf]
  %v3699 = vld [vmem:[%s5 + $0x250] sm:$0xf]
  %v3700 = vld [vmem:[%s5 + $0x254] sm:$0xf]
  %v3701 = vld [vmem:[%s5 + $0x258] sm:$0xf]
  %v3702 = vld [vmem:[%s5 + $0x25c] sm:$0xf]
  %v3703 = vld [vmem:[%s5 + $0x260] sm:$0xf]
  %v3704 = vld [vmem:[%s5 + $0x264] sm:$0xf]
  %v3705 = vld [vmem:[%s5 + $0x268] sm:$0xf]
  %v3706 = vld [vmem:[%s5 + $0x26c] sm:$0xf]
  %v3707 = vld [vmem:[%s5 + $0x270] sm:$0xf]
  %v3708 = vld [vmem:[%s5 + $0x274] sm:$0xf]
  %v3709 = vld [vmem:[%s5 + $0x278] sm:$0xf]
  %v3710 = vld [vmem:[%s5 + $0x27c] sm:$0xf]
  %v3727 = vunpack.c.l.b16 %v3695
  %v3728 = vunpack.c.l.b16 %v3696
  %v3729 = vunpack.c.l.b16 %v3697
  %v3730 = vunpack.c.l.b16 %v3698
  %v3731 = vunpack.c.l.b16 %v3699
  %v3732 = vunpack.c.l.b16 %v3700
  %v3733 = vunpack.c.l.b16 %v3701
  %v3734 = vunpack.c.l.b16 %v3702
  %v3735 = vunpack.c.l.b16 %v3703
  %v3736 = vunpack.c.l.b16 %v3704
  %v3737 = vunpack.c.l.b16 %v3705
  %v3738 = vunpack.c.l.b16 %v3706
  %v3739 = vunpack.c.l.b16 %v3707
  %v3740 = vunpack.c.l.b16 %v3708
  %v3741 = vunpack.c.l.b16 %v3709
  %v3742 = vunpack.c.l.b16 %v3710
  %v3743 = vpack.c.b16 %v3728, %v3727
  %v3744 = vpack.c.b16 %v3730, %v3729
  %v3745 = vpack.c.b16 %v3732, %v3731
  %v3746 = vpack.c.b16 %v3734, %v3733
  %v3747 = vpack.c.b16 %v3736, %v3735
  %v3748 = vpack.c.b16 %v3738, %v3737
  %v3749 = vpack.c.b16 %v3740, %v3739
  %v3750 = vpack.c.b16 %v3742, %v3741
  %3759 = vmatprep.subr.bf16.mxu0 0
  %3760 = vmatpush1.bf16.msra.mxu0 %v3743
  %3761 = vmatprep.subr.bf16.mxu0 0
  %3762 = vmatpush1.bf16.msra.mxu0 %v3744
  %3763 = vmatprep.subr.bf16.mxu0 0
  %3764 = vmatpush1.bf16.msra.mxu0 %v3745
  %3765 = vmatprep.subr.bf16.mxu0 0
  %3766 = vmatpush1.bf16.msra.mxu0 %v3746
  %3767 = vmatprep.subr.bf16.mxu0 0
  %3768 = vmatpush1.bf16.msra.mxu0 %v3747
  %3769 = vmatprep.subr.bf16.mxu0 0
  %3770 = vmatpush1.bf16.msra.mxu0 %v3748
  %3771 = vmatprep.subr.bf16.mxu0 0
  %3772 = vmatpush1.bf16.msra.mxu0 %v3749
  %3773 = vmatprep.subr.bf16.mxu0 0
  %3774 = vmatpush1.bf16.msra.mxu0 %v3750
  %3775 = vmatprep.subr.bf16.mxu0 0
  %3776 = vmatpush1.bf16.msra.mxu0 0
  %3777 = vmatprep.subr.bf16.mxu0 0
  %3778 = vmatpush1.bf16.msra.mxu0 0
  %3779 = vmatprep.subr.bf16.mxu0 0
  %3780 = vmatpush1.bf16.msra.mxu0 0
  %3781 = vmatprep.subr.bf16.mxu0 0
  %3782 = vmatpush1.bf16.msra.mxu0 0
  %3783 = vmatprep.subr.bf16.mxu0 0
  %3784 = vmatpush1.bf16.msra.mxu0 0
  %3785 = vmatprep.subr.bf16.mxu0 0
  %3786 = vmatpush1.bf16.msra.mxu0 0
  %3787 = vmatprep.subr.bf16.mxu0 0
  %3788 = vmatpush1.bf16.msra.mxu0 0
  %3789 = vmatprep.subr.bf16.mxu0 0
  %3790 = vmatpush1.bf16.msra.mxu0 0
  %3791 = vmatprep.mubr.bf16.mxu0 0
  %3792 = vmatmul.mubr.bf16.gmra.mrb[0].mxu0 %v3693
  %v3793 = vpop.f32.mrb[0].mxu0
  %v3794 = vadd.f32 0.0, %v3793
  %v3795 = vpop.f32.mrb[0].mxu0
  %v3796 = vpop.f32.mrb[0].mxu0
  %v3797 = vadd.f32 0.0, %v3796
  %v3798 = vpop.f32.mrb[0].mxu0
  %3799 = vmatprep.mubr.bf16.mxu0 0
  %3800 = vmatmul.mubr.bf16.gmra.mrb[0].mxu0 %v3694
  %v3801 = vpop.f32.mrb[0].mxu0
  %v3802 = vadd.f32 0.0, %v3801
  %v3803 = vpop.f32.mrb[0].mxu0
  %v3804 = vpop.f32.mrb[0].mxu0
  %v3805 = vadd.f32 0.0, %v3804
  %v3806 = vpop.f32.mrb[0].mxu0
  %3807 = vdwg.mxu0
  %v3808 = vadd.f32 %v3657, %v3794
  %v3809 = vadd.f32 %v3658, %v3797
  %v3810 = vadd.f32 %v3659, %v3802
  %v3811 = vadd.f32 %v3660, %v3805
  %s3812 = scalar_lea.vmem [#allocation4], 18
  %v3813 = vld [vmem:[%s3812] ss:$48 sm:$0x3]
  %v3814 = vld [vmem:[%s3812] ss:$48 sm:$0xc]
  %v3815 = vor.u32 %v3813, %v3814
  %v3816 = vld [vmem:[%s3812] ss:$48 sm:$0x30]
  %v3817 = vor.u32 %v3815, %v3816
  %v3818 = vld [vmem:[%s3812] ss:$48 sm:$0xc0]
  %v3819 = vor.u32 %v3817, %v3818
  %s3820 = scalar_lea.vmem [#allocation4], 402
  %v3821 = vld [vmem:[%s3820] ss:$48 sm:$0x3]
  %v3822 = vld [vmem:[%s3820] ss:$48 sm:$0xc]
  %v3823 = vor.u32 %v3821, %v3822
  %v3824 = vld [vmem:[%s3820] ss:$48 sm:$0x30]
  %v3825 = vor.u32 %v3823, %v3824
  %v3826 = vld [vmem:[%s3820] ss:$48 sm:$0xc0]
  %v3827 = vor.u32 %v3825, %v3826
  %s3828 = scalar_lea.vmem [#allocation4], 786
  %v3829 = vld [vmem:[%s3828] ss:$48 sm:$0x3]
  %v3830 = vld [vmem:[%s3828] ss:$48 sm:$0xc]
  %v3831 = vor.u32 %v3829, %v3830
  %v3832 = vld [vmem:[%s3828] ss:$48 sm:$0x30]
  %v3833 = vor.u32 %v3831, %v3832
  %v3834 = vld [vmem:[%s3828] ss:$48 sm:$0xc0]
  %v3835 = vor.u32 %v3833, %v3834
  %s3836 = scalar_lea.vmem [#allocation4], 1170
  %v3837 = vld [vmem:[%s3836] ss:$48 sm:$0x3]
  %v3838 = vld [vmem:[%s3836] ss:$48 sm:$0xc]
  %v3839 = vor.u32 %v3837, %v3838
  %v3840 = vld [vmem:[%s3836] ss:$48 sm:$0x30]
  %v3841 = vor.u32 %v3839, %v3840
  %v3842 = vld [vmem:[%s3836] ss:$48 sm:$0xc0]
  %v3843 = vor.u32 %v3841, %v3842
  %v3844 = vpack.c.bf16 %v3827, %v3819
  %v3845 = vpack.c.bf16 %v3843, %v3835
  %v3846 = vld [vmem:[%s5 + $0x280] sm:$0xf]
  %v3847 = vld [vmem:[%s5 + $0x284] sm:$0xf]
  %v3848 = vld [vmem:[%s5 + $0x288] sm:$0xf]
  %v3849 = vld [vmem:[%s5 + $0x28c] sm:$0xf]
  %v3850 = vld [vmem:[%s5 + $0x290] sm:$0xf]
  %v3851 = vld [vmem:[%s5 + $0x294] sm:$0xf]
  %v3852 = vld [vmem:[%s5 + $0x298] sm:$0xf]
  %v3853 = vld [vmem:[%s5 + $0x29c] sm:$0xf]
  %v3854 = vld [vmem:[%s5 + $0x2a0] sm:$0xf]
  %v3855 = vld [vmem:[%s5 + $0x2a4] sm:$0xf]
  %v3856 = vld [vmem:[%s5 + $0x2a8] sm:$0xf]
  %v3857 = vld [vmem:[%s5 + $0x2ac] sm:$0xf]
  %v3858 = vld [vmem:[%s5 + $0x2b0] sm:$0xf]
  %v3859 = vld [vmem:[%s5 + $0x2b4] sm:$0xf]
  %v3860 = vld [vmem:[%s5 + $0x2b8] sm:$0xf]
  %v3861 = vld [vmem:[%s5 + $0x2bc] sm:$0xf]
  %v3878 = vunpack.c.l.b16 %v3846
  %v3879 = vunpack.c.l.b16 %v3847
  %v3880 = vunpack.c.l.b16 %v3848
  %v3881 = vunpack.c.l.b16 %v3849
  %v3882 = vunpack.c.l.b16 %v3850
  %v3883 = vunpack.c.l.b16 %v3851
  %v3884 = vunpack.c.l.b16 %v3852
  %v3885 = vunpack.c.l.b16 %v3853
  %v3886 = vunpack.c.l.b16 %v3854
  %v3887 = vunpack.c.l.b16 %v3855
  %v3888 = vunpack.c.l.b16 %v3856
  %v3889 = vunpack.c.l.b16 %v3857
  %v3890 = vunpack.c.l.b16 %v3858
  %v3891 = vunpack.c.l.b16 %v3859
  %v3892 = vunpack.c.l.b16 %v3860
  %v3893 = vunpack.c.l.b16 %v3861
  %v3894 = vpack.c.b16 %v3879, %v3878
  %v3895 = vpack.c.b16 %v3881, %v3880
  %v3896 = vpack.c.b16 %v3883, %v3882
  %v3897 = vpack.c.b16 %v3885, %v3884
  %v3898 = vpack.c.b16 %v3887, %v3886
  %v3899 = vpack.c.b16 %v3889, %v3888
  %v3900 = vpack.c.b16 %v3891, %v3890
  %v3901 = vpack.c.b16 %v3893, %v3892
  %3910 = vmatprep.subr.bf16.mxu0 0
  %3911 = vmatpush1.bf16.msra.mxu0 %v3894
  %3912 = vmatprep.subr.bf16.mxu0 0
  %3913 = vmatpush1.bf16.msra.mxu0 %v3895
  %3914 = vmatprep.subr.bf16.mxu0 0
  %3915 = vmatpush1.bf16.msra.mxu0 %v3896
  %3916 = vmatprep.subr.bf16.mxu0 0
  %3917 = vmatpush1.bf16.msra.mxu0 %v3897
  %3918 = vmatprep.subr.bf16.mxu0 0
  %3919 = vmatpush1.bf16.msra.mxu0 %v3898
  %3920 = vmatprep.subr.bf16.mxu0 0
  %3921 = vmatpush1.bf16.msra.mxu0 %v3899
  %3922 = vmatprep.subr.bf16.mxu0 0
  %3923 = vmatpush1.bf16.msra.mxu0 %v3900
  %3924 = vmatprep.subr.bf16.mxu0 0
  %3925 = vmatpush1.bf16.msra.mxu0 %v3901
  %3926 = vmatprep.subr.bf16.mxu0 0
  %3927 = vmatpush1.bf16.msra.mxu0 0
  %3928 = vmatprep.subr.bf16.mxu0 0
  %3929 = vmatpush1.bf16.msra.mxu0 0
  %3930 = vmatprep.subr.bf16.mxu0 0
  %3931 = vmatpush1.bf16.msra.mxu0 0
  %3932 = vmatprep.subr.bf16.mxu0 0
  %3933 = vmatpush1.bf16.msra.mxu0 0
  %3934 = vmatprep.subr.bf16.mxu0 0
  %3935 = vmatpush1.bf16.msra.mxu0 0
  %3936 = vmatprep.subr.bf16.mxu0 0
  %3937 = vmatpush1.bf16.msra.mxu0 0
  %3938 = vmatprep.subr.bf16.mxu0 0
  %3939 = vmatpush1.bf16.msra.mxu0 0
  %3940 = vmatprep.subr.bf16.mxu0 0
  %3941 = vmatpush1.bf16.msra.mxu0 0
  %3942 = vmatprep.mubr.bf16.mxu0 0
  %3943 = vmatmul.mubr.bf16.gmra.mrb[0].mxu0 %v3844
  %v3944 = vpop.f32.mrb[0].mxu0
  %v3945 = vadd.f32 0.0, %v3944
  %v3946 = vpop.f32.mrb[0].mxu0
  %v3947 = vpop.f32.mrb[0].mxu0
  %v3948 = vadd.f32 0.0, %v3947
  %v3949 = vpop.f32.mrb[0].mxu0
  %3950 = vmatprep.mubr.bf16.mxu0 0
  %3951 = vmatmul.mubr.bf16.gmra.mrb[0].mxu0 %v3845
  %v3952 = vpop.f32.mrb[0].mxu0
  %v3953 = vadd.f32 0.0, %v3952
  %v3954 = vpop.f32.mrb[0].mxu0
  %v3955 = vpop.f32.mrb[0].mxu0
  %v3956 = vadd.f32 0.0, %v3955
  %v3957 = vpop.f32.mrb[0].mxu0
  %3958 = vdwg.mxu0
  %v3959 = vadd.f32 %v3808, %v3945
  %v3960 = vadd.f32 %v3809, %v3948
  %v3961 = vadd.f32 %v3810, %v3953
  %v3962 = vadd.f32 %v3811, %v3956
  %s3963 = scalar_lea.vmem [#allocation4], 19
  %v3964 = vld [vmem:[%s3963] ss:$48 sm:$0x3]
  %v3965 = vld [vmem:[%s3963] ss:$48 sm:$0xc]
  %v3966 = vor.u32 %v3964, %v3965
  %v3967 = vld [vmem:[%s3963] ss:$48 sm:$0x30]
  %v3968 = vor.u32 %v3966, %v3967
  %v3969 = vld [vmem:[%s3963] ss:$48 sm:$0xc0]
  %v3970 = vor.u32 %v3968, %v3969
  %s3971 = scalar_lea.vmem [#allocation4], 403
  %v3972 = vld [vmem:[%s3971] ss:$48 sm:$0x3]
  %v3973 = vld [vmem:[%s3971] ss:$48 sm:$0xc]
  %v3974 = vor.u32 %v3972, %v3973
  %v3975 = vld [vmem:[%s3971] ss:$48 sm:$0x30]
  %v3976 = vor.u32 %v3974, %v3975
  %v3977 = vld [vmem:[%s3971] ss:$48 sm:$0xc0]
  %v3978 = vor.u32 %v3976, %v3977
  %s3979 = scalar_lea.vmem [#allocation4], 787
  %v3980 = vld [vmem:[%s3979] ss:$48 sm:$0x3]
  %v3981 = vld [vmem:[%s3979] ss:$48 sm:$0xc]
  %v3982 = vor.u32 %v3980, %v3981
  %v3983 = vld [vmem:[%s3979] ss:$48 sm:$0x30]
  %v3984 = vor.u32 %v3982, %v3983
  %v3985 = vld [vmem:[%s3979] ss:$48 sm:$0xc0]
  %v3986 = vor.u32 %v3984, %v3985
  %s3987 = scalar_lea.vmem [#allocation4], 1171
  %v3988 = vld [vmem:[%s3987] ss:$48 sm:$0x3]
  %v3989 = vld [vmem:[%s3987] ss:$48 sm:$0xc]
  %v3990 = vor.u32 %v3988, %v3989
  %v3991 = vld [vmem:[%s3987] ss:$48 sm:$0x30]
  %v3992 = vor.u32 %v3990, %v3991
  %v3993 = vld [vmem:[%s3987] ss:$48 sm:$0xc0]
  %v3994 = vor.u32 %v3992, %v3993
  %v3995 = vpack.c.bf16 %v3978, %v3970
  %v3996 = vpack.c.bf16 %v3994, %v3986
  %v3997 = vld [vmem:[%s5 + $0x2c0] sm:$0xf]
  %v3998 = vld [vmem:[%s5 + $0x2c4] sm:$0xf]
  %v3999 = vld [vmem:[%s5 + $0x2c8] sm:$0xf]
  %v4000 = vld [vmem:[%s5 + $0x2cc] sm:$0xf]
  %v4001 = vld [vmem:[%s5 + $0x2d0] sm:$0xf]
  %v4002 = vld [vmem:[%s5 + $0x2d4] sm:$0xf]
  %v4003 = vld [vmem:[%s5 + $0x2d8] sm:$0xf]
  %v4004 = vld [vmem:[%s5 + $0x2dc] sm:$0xf]
  %v4005 = vld [vmem:[%s5 + $0x2e0] sm:$0xf]
  %v4006 = vld [vmem:[%s5 + $0x2e4] sm:$0xf]
  %v4007 = vld [vmem:[%s5 + $0x2e8] sm:$0xf]
  %v4008 = vld [vmem:[%s5 + $0x2ec] sm:$0xf]
  %v4009 = vld [vmem:[%s5 + $0x2f0] sm:$0xf]
  %v4010 = vld [vmem:[%s5 + $0x2f4] sm:$0xf]
  %v4011 = vld [vmem:[%s5 + $0x2f8] sm:$0xf]
  %v4012 = vld [vmem:[%s5 + $0x2fc] sm:$0xf]
  %v4029 = vunpack.c.l.b16 %v3997
  %v4030 = vunpack.c.l.b16 %v3998
  %v4031 = vunpack.c.l.b16 %v3999
  %v4032 = vunpack.c.l.b16 %v4000
  %v4033 = vunpack.c.l.b16 %v4001
  %v4034 = vunpack.c.l.b16 %v4002
  %v4035 = vunpack.c.l.b16 %v4003
  %v4036 = vunpack.c.l.b16 %v4004
  %v4037 = vunpack.c.l.b16 %v4005
  %v4038 = vunpack.c.l.b16 %v4006
  %v4039 = vunpack.c.l.b16 %v4007
  %v4040 = vunpack.c.l.b16 %v4008
  %v4041 = vunpack.c.l.b16 %v4009
  %v4042 = vunpack.c.l.b16 %v4010
  %v4043 = vunpack.c.l.b16 %v4011
  %v4044 = vunpack.c.l.b16 %v4012
  %v4045 = vpack.c.b16 %v4030, %v4029
  %v4046 = vpack.c.b16 %v4032, %v4031
  %v4047 = vpack.c.b16 %v4034, %v4033
  %v4048 = vpack.c.b16 %v4036, %v4035
  %v4049 = vpack.c.b16 %v4038, %v4037
  %v4050 = vpack.c.b16 %v4040, %v4039
  %v4051 = vpack.c.b16 %v4042, %v4041
  %v4052 = vpack.c.b16 %v4044, %v4043
  %4061 = vmatprep.subr.bf16.mxu0 0
  %4062 = vmatpush1.bf16.msra.mxu0 %v4045
  %4063 = vmatprep.subr.bf16.mxu0 0
  %4064 = vmatpush1.bf16.msra.mxu0 %v4046
  %4065 = vmatprep.subr.bf16.mxu0 0
  %4066 = vmatpush1.bf16.msra.mxu0 %v4047
  %4067 = vmatprep.subr.bf16.mxu0 0
  %4068 = vmatpush1.bf16.msra.mxu0 %v4048
  %4069 = vmatprep.subr.bf16.mxu0 0
  %4070 = vmatpush1.bf16.msra.mxu0 %v4049
  %4071 = vmatprep.subr.bf16.mxu0 0
  %4072 = vmatpush1.bf16.msra.mxu0 %v4050
  %4073 = vmatprep.subr.bf16.mxu0 0
  %4074 = vmatpush1.bf16.msra.mxu0 %v4051
  %4075 = vmatprep.subr.bf16.mxu0 0
  %4076 = vmatpush1.bf16.msra.mxu0 %v4052
  %4077 = vmatprep.subr.bf16.mxu0 0
  %4078 = vmatpush1.bf16.msra.mxu0 0
  %4079 = vmatprep.subr.bf16.mxu0 0
  %4080 = vmatpush1.bf16.msra.mxu0 0
  %4081 = vmatprep.subr.bf16.mxu0 0
  %4082 = vmatpush1.bf16.msra.mxu0 0
  %4083 = vmatprep.subr.bf16.mxu0 0
  %4084 = vmatpush1.bf16.msra.mxu0 0
  %4085 = vmatprep.subr.bf16.mxu0 0
  %4086 = vmatpush1.bf16.msra.mxu0 0
  %4087 = vmatprep.subr.bf16.mxu0 0
  %4088 = vmatpush1.bf16.msra.mxu0 0
  %4089 = vmatprep.subr.bf16.mxu0 0
  %4090 = vmatpush1.bf16.msra.mxu0 0
  %4091 = vmatprep.subr.bf16.mxu0 0
  %4092 = vmatpush1.bf16.msra.mxu0 0
  %4093 = vmatprep.mubr.bf16.mxu0 0
  %4094 = vmatmul.mubr.bf16.gmra.mrb[0].mxu0 %v3995
  %v4095 = vpop.f32.mrb[0].mxu0
  %v4096 = vadd.f32 0.0, %v4095
  %v4097 = vpop.f32.mrb[0].mxu0
  %v4098 = vpop.f32.mrb[0].mxu0
  %v4099 = vadd.f32 0.0, %v4098
  %v4100 = vpop.f32.mrb[0].mxu0
  %4101 = vmatprep.mubr.bf16.mxu0 0
  %4102 = vmatmul.mubr.bf16.gmra.mrb[0].mxu0 %v3996
  %v4103 = vpop.f32.mrb[0].mxu0
  %v4104 = vadd.f32 0.0, %v4103
  %v4105 = vpop.f32.mrb[0].mxu0
  %v4106 = vpop.f32.mrb[0].mxu0
  %v4107 = vadd.f32 0.0, %v4106
  %v4108 = vpop.f32.mrb[0].mxu0
  %4109 = vdwg.mxu0
  %v4110 = vadd.f32 %v3959, %v4096
  %v4111 = vadd.f32 %v3960, %v4099
  %v4112 = vadd.f32 %v3961, %v4104
  %v4113 = vadd.f32 %v3962, %v4107
  %s4114 = scalar_lea.vmem [#allocation4], 24
  %v4115 = vld [vmem:[%s4114] ss:$48 sm:$0x3]
  %v4116 = vld [vmem:[%s4114] ss:$48 sm:$0xc]
  %v4117 = vor.u32 %v4115, %v4116
  %v4118 = vld [vmem:[%s4114] ss:$48 sm:$0x30]
  %v4119 = vor.u32 %v4117, %v4118
  %v4120 = vld [vmem:[%s4114] ss:$48 sm:$0xc0]
  %v4121 = vor.u32 %v4119, %v4120
  %s4122 = scalar_lea.vmem [#allocation4], 408
  %v4123 = vld [vmem:[%s4122] ss:$48 sm:$0x3]
  %v4124 = vld [vmem:[%s4122] ss:$48 sm:$0xc]
  %v4125 = vor.u32 %v4123, %v4124
  %v4126 = vld [vmem:[%s4122] ss:$48 sm:$0x30]
  %v4127 = vor.u32 %v4125, %v4126
  %v4128 = vld [vmem:[%s4122] ss:$48 sm:$0xc0]
  %v4129 = vor.u32 %v4127, %v4128
  %s4130 = scalar_lea.vmem [#allocation4], 792
  %v4131 = vld [vmem:[%s4130] ss:$48 sm:$0x3]
  %v4132 = vld [vmem:[%s4130] ss:$48 sm:$0xc]
  %v4133 = vor.u32 %v4131, %v4132
  %v4134 = vld [vmem:[%s4130] ss:$48 sm:$0x30]
  %v4135 = vor.u32 %v4133, %v4134
  %v4136 = vld [vmem:[%s4130] ss:$48 sm:$0xc0]
  %v4137 = vor.u32 %v4135, %v4136
  %s4138 = scalar_lea.vmem [#allocation4], 1176
  %v4139 = vld [vmem:[%s4138] ss:$48 sm:$0x3]
  %v4140 = vld [vmem:[%s4138] ss:$48 sm:$0xc]
  %v4141 = vor.u32 %v4139, %v4140
  %v4142 = vld [vmem:[%s4138] ss:$48 sm:$0x30]
  %v4143 = vor.u32 %v4141, %v4142
  %v4144 = vld [vmem:[%s4138] ss:$48 sm:$0xc0]
  %v4145 = vor.u32 %v4143, %v4144
  %v4146 = vpack.c.bf16 %v4129, %v4121
  %v4147 = vpack.c.bf16 %v4145, %v4137
  %v4148 = vld [vmem:[%s5 + $0x300] sm:$0xf]
  %v4149 = vld [vmem:[%s5 + $0x304] sm:$0xf]
  %v4150 = vld [vmem:[%s5 + $0x308] sm:$0xf]
  %v4151 = vld [vmem:[%s5 + $0x30c] sm:$0xf]
  %v4152 = vld [vmem:[%s5 + $0x310] sm:$0xf]
  %v4153 = vld [vmem:[%s5 + $0x314] sm:$0xf]
  %v4154 = vld [vmem:[%s5 + $0x318] sm:$0xf]
  %v4155 = vld [vmem:[%s5 + $0x31c] sm:$0xf]
  %v4156 = vld [vmem:[%s5 + $0x320] sm:$0xf]
  %v4157 = vld [vmem:[%s5 + $0x324] sm:$0xf]
  %v4158 = vld [vmem:[%s5 + $0x328] sm:$0xf]
  %v4159 = vld [vmem:[%s5 + $0x32c] sm:$0xf]
  %v4160 = vld [vmem:[%s5 + $0x330] sm:$0xf]
  %v4161 = vld [vmem:[%s5 + $0x334] sm:$0xf]
  %v4162 = vld [vmem:[%s5 + $0x338] sm:$0xf]
  %v4163 = vld [vmem:[%s5 + $0x33c] sm:$0xf]
  %v4180 = vunpack.c.l.b16 %v4148
  %v4181 = vunpack.c.l.b16 %v4149
  %v4182 = vunpack.c.l.b16 %v4150
  %v4183 = vunpack.c.l.b16 %v4151
  %v4184 = vunpack.c.l.b16 %v4152
  %v4185 = vunpack.c.l.b16 %v4153
  %v4186 = vunpack.c.l.b16 %v4154
  %v4187 = vunpack.c.l.b16 %v4155
  %v4188 = vunpack.c.l.b16 %v4156
  %v4189 = vunpack.c.l.b16 %v4157
  %v4190 = vunpack.c.l.b16 %v4158
  %v4191 = vunpack.c.l.b16 %v4159
  %v4192 = vunpack.c.l.b16 %v4160
  %v4193 = vunpack.c.l.b16 %v4161
  %v4194 = vunpack.c.l.b16 %v4162
  %v4195 = vunpack.c.l.b16 %v4163
  %v4196 = vpack.c.b16 %v4181, %v4180
  %v4197 = vpack.c.b16 %v4183, %v4182
  %v4198 = vpack.c.b16 %v4185, %v4184
  %v4199 = vpack.c.b16 %v4187, %v4186
  %v4200 = vpack.c.b16 %v4189, %v4188
  %v4201 = vpack.c.b16 %v4191, %v4190
  %v4202 = vpack.c.b16 %v4193, %v4192
  %v4203 = vpack.c.b16 %v4195, %v4194
  %4212 = vmatprep.subr.bf16.mxu0 0
  %4213 = vmatpush1.bf16.msra.mxu0 %v4196
  %4214 = vmatprep.subr.bf16.mxu0 0
  %4215 = vmatpush1.bf16.msra.mxu0 %v4197
  %4216 = vmatprep.subr.bf16.mxu0 0
  %4217 = vmatpush1.bf16.msra.mxu0 %v4198
  %4218 = vmatprep.subr.bf16.mxu0 0
  %4219 = vmatpush1.bf16.msra.mxu0 %v4199
  %4220 = vmatprep.subr.bf16.mxu0 0
  %4221 = vmatpush1.bf16.msra.mxu0 %v4200
  %4222 = vmatprep.subr.bf16.mxu0 0
  %4223 = vmatpush1.bf16.msra.mxu0 %v4201
  %4224 = vmatprep.subr.bf16.mxu0 0
  %4225 = vmatpush1.bf16.msra.mxu0 %v4202
  %4226 = vmatprep.subr.bf16.mxu0 0
  %4227 = vmatpush1.bf16.msra.mxu0 %v4203
  %4228 = vmatprep.subr.bf16.mxu0 0
  %4229 = vmatpush1.bf16.msra.mxu0 0
  %4230 = vmatprep.subr.bf16.mxu0 0
  %4231 = vmatpush1.bf16.msra.mxu0 0
  %4232 = vmatprep.subr.bf16.mxu0 0
  %4233 = vmatpush1.bf16.msra.mxu0 0
  %4234 = vmatprep.subr.bf16.mxu0 0
  %4235 = vmatpush1.bf16.msra.mxu0 0
  %4236 = vmatprep.subr.bf16.mxu0 0
  %4237 = vmatpush1.bf16.msra.mxu0 0
  %4238 = vmatprep.subr.bf16.mxu0 0
  %4239 = vmatpush1.bf16.msra.mxu0 0
  %4240 = vmatprep.subr.bf16.mxu0 0
  %4241 = vmatpush1.bf16.msra.mxu0 0
  %4242 = vmatprep.subr.bf16.mxu0 0
  %4243 = vmatpush1.bf16.msra.mxu0 0
  %4244 = vmatprep.mubr.bf16.mxu0 0
  %4245 = vmatmul.mubr.bf16.gmra.mrb[0].mxu0 %v4146
  %v4246 = vpop.f32.mrb[0].mxu0
  %v4247 = vadd.f32 0.0, %v4246
  %v4248 = vpop.f32.mrb[0].mxu0
  %v4249 = vpop.f32.mrb[0].mxu0
  %v4250 = vadd.f32 0.0, %v4249
  %v4251 = vpop.f32.mrb[0].mxu0
  %4252 = vmatprep.mubr.bf16.mxu0 0
  %4253 = vmatmul.mubr.bf16.gmra.mrb[0].mxu0 %v4147
  %v4254 = vpop.f32.mrb[0].mxu0
  %v4255 = vadd.f32 0.0, %v4254
  %v4256 = vpop.f32.mrb[0].mxu0
  %v4257 = vpop.f32.mrb[0].mxu0
  %v4258 = vadd.f32 0.0, %v4257
  %v4259 = vpop.f32.mrb[0].mxu0
  %4260 = vdwg.mxu0
  %v4261 = vadd.f32 %v4110, %v4247
  %v4262 = vadd.f32 %v4111, %v4250
  %v4263 = vadd.f32 %v4112, %v4255
  %v4264 = vadd.f32 %v4113, %v4258
  %s4265 = scalar_lea.vmem [#allocation4], 25
  %v4266 = vld [vmem:[%s4265] ss:$48 sm:$0x3]
  %v4267 = vld [vmem:[%s4265] ss:$48 sm:$0xc]
  %v4268 = vor.u32 %v4266, %v4267
  %v4269 = vld [vmem:[%s4265] ss:$48 sm:$0x30]
  %v4270 = vor.u32 %v4268, %v4269
  %v4271 = vld [vmem:[%s4265] ss:$48 sm:$0xc0]
  %v4272 = vor.u32 %v4270, %v4271
  %s4273 = scalar_lea.vmem [#allocation4], 409
  %v4274 = vld [vmem:[%s4273] ss:$48 sm:$0x3]
  %v4275 = vld [vmem:[%s4273] ss:$48 sm:$0xc]
  %v4276 = vor.u32 %v4274, %v4275
  %v4277 = vld [vmem:[%s4273] ss:$48 sm:$0x30]
  %v4278 = vor.u32 %v4276, %v4277
  %v4279 = vld [vmem:[%s4273] ss:$48 sm:$0xc0]
  %v4280 = vor.u32 %v4278, %v4279
  %s4281 = scalar_lea.vmem [#allocation4], 793
  %v4282 = vld [vmem:[%s4281] ss:$48 sm:$0x3]
  %v4283 = vld [vmem:[%s4281] ss:$48 sm:$0xc]
  %v4284 = vor.u32 %v4282, %v4283
  %v4285 = vld [vmem:[%s4281] ss:$48 sm:$0x30]
  %v4286 = vor.u32 %v4284, %v4285
  %v4287 = vld [vmem:[%s4281] ss:$48 sm:$0xc0]
  %v4288 = vor.u32 %v4286, %v4287
  %s4289 = scalar_lea.vmem [#allocation4], 1177
  %v4290 = vld [vmem:[%s4289] ss:$48 sm:$0x3]
  %v4291 = vld [vmem:[%s4289] ss:$48 sm:$0xc]
  %v4292 = vor.u32 %v4290, %v4291
  %v4293 = vld [vmem:[%s4289] ss:$48 sm:$0x30]
  %v4294 = vor.u32 %v4292, %v4293
  %v4295 = vld [vmem:[%s4289] ss:$48 sm:$0xc0]
  %v4296 = vor.u32 %v4294, %v4295
  %v4297 = vpack.c.bf16 %v4280, %v4272
  %v4298 = vpack.c.bf16 %v4296, %v4288
  %v4299 = vld [vmem:[%s5 + $0x340] sm:$0xf]
  %v4300 = vld [vmem:[%s5 + $0x344] sm:$0xf]
  %v4301 = vld [vmem:[%s5 + $0x348] sm:$0xf]
  %v4302 = vld [vmem:[%s5 + $0x34c] sm:$0xf]
  %v4303 = vld [vmem:[%s5 + $0x350] sm:$0xf]
  %v4304 = vld [vmem:[%s5 + $0x354] sm:$0xf]
  %v4305 = vld [vmem:[%s5 + $0x358] sm:$0xf]
  %v4306 = vld [vmem:[%s5 + $0x35c] sm:$0xf]
  %v4307 = vld [vmem:[%s5 + $0x360] sm:$0xf]
  %v4308 = vld [vmem:[%s5 + $0x364] sm:$0xf]
  %v4309 = vld [vmem:[%s5 + $0x368] sm:$0xf]
  %v4310 = vld [vmem:[%s5 + $0x36c] sm:$0xf]
  %v4311 = vld [vmem:[%s5 + $0x370] sm:$0xf]
  %v4312 = vld [vmem:[%s5 + $0x374] sm:$0xf]
  %v4313 = vld [vmem:[%s5 + $0x378] sm:$0xf]
  %v4314 = vld [vmem:[%s5 + $0x37c] sm:$0xf]
  %v4331 = vunpack.c.l.b16 %v4299
  %v4332 = vunpack.c.l.b16 %v4300
  %v4333 = vunpack.c.l.b16 %v4301
  %v4334 = vunpack.c.l.b16 %v4302
  %v4335 = vunpack.c.l.b16 %v4303
  %v4336 = vunpack.c.l.b16 %v4304
  %v4337 = vunpack.c.l.b16 %v4305
  %v4338 = vunpack.c.l.b16 %v4306
  %v4339 = vunpack.c.l.b16 %v4307
  %v4340 = vunpack.c.l.b16 %v4308
  %v4341 = vunpack.c.l.b16 %v4309
  %v4342 = vunpack.c.l.b16 %v4310
  %v4343 = vunpack.c.l.b16 %v4311
  %v4344 = vunpack.c.l.b16 %v4312
  %v4345 = vunpack.c.l.b16 %v4313
  %v4346 = vunpack.c.l.b16 %v4314
  %v4347 = vpack.c.b16 %v4332, %v4331
  %v4348 = vpack.c.b16 %v4334, %v4333
  %v4349 = vpack.c.b16 %v4336, %v4335
  %v4350 = vpack.c.b16 %v4338, %v4337
  %v4351 = vpack.c.b16 %v4340, %v4339
  %v4352 = vpack.c.b16 %v4342, %v4341
  %v4353 = vpack.c.b16 %v4344, %v4343
  %v4354 = vpack.c.b16 %v4346, %v4345
  %4363 = vmatprep.subr.bf16.mxu0 0
  %4364 = vmatpush1.bf16.msra.mxu0 %v4347
  %4365 = vmatprep.subr.bf16.mxu0 0
  %4366 = vmatpush1.bf16.msra.mxu0 %v4348
  %4367 = vmatprep.subr.bf16.mxu0 0
  %4368 = vmatpush1.bf16.msra.mxu0 %v4349
  %4369 = vmatprep.subr.bf16.mxu0 0
  %4370 = vmatpush1.bf16.msra.mxu0 %v4350
  %4371 = vmatprep.subr.bf16.mxu0 0
  %4372 = vmatpush1.bf16.msra.mxu0 %v4351
  %4373 = vmatprep.subr.bf16.mxu0 0
  %4374 = vmatpush1.bf16.msra.mxu0 %v4352
  %4375 = vmatprep.subr.bf16.mxu0 0
  %4376 = vmatpush1.bf16.msra.mxu0 %v4353
  %4377 = vmatprep.subr.bf16.mxu0 0
  %4378 = vmatpush1.bf16.msra.mxu0 %v4354
  %4379 = vmatprep.subr.bf16.mxu0 0
  %4380 = vmatpush1.bf16.msra.mxu0 0
  %4381 = vmatprep.subr.bf16.mxu0 0
  %4382 = vmatpush1.bf16.msra.mxu0 0
  %4383 = vmatprep.subr.bf16.mxu0 0
  %4384 = vmatpush1.bf16.msra.mxu0 0
  %4385 = vmatprep.subr.bf16.mxu0 0
  %4386 = vmatpush1.bf16.msra.mxu0 0
  %4387 = vmatprep.subr.bf16.mxu0 0
  %4388 = vmatpush1.bf16.msra.mxu0 0
  %4389 = vmatprep.subr.bf16.mxu0 0
  %4390 = vmatpush1.bf16.msra.mxu0 0
  %4391 = vmatprep.subr.bf16.mxu0 0
  %4392 = vmatpush1.bf16.msra.mxu0 0
  %4393 = vmatprep.subr.bf16.mxu0 0
  %4394 = vmatpush1.bf16.msra.mxu0 0
  %4395 = vmatprep.mubr.bf16.mxu0 0
  %4396 = vmatmul.mubr.bf16.gmra.mrb[0].mxu0 %v4297
  %v4397 = vpop.f32.mrb[0].mxu0
  %v4398 = vadd.f32 0.0, %v4397
  %v4399 = vpop.f32.mrb[0].mxu0
  %v4400 = vpop.f32.mrb[0].mxu0
  %v4401 = vadd.f32 0.0, %v4400
  %v4402 = vpop.f32.mrb[0].mxu0
  %4403 = vmatprep.mubr.bf16.mxu0 0
  %4404 = vmatmul.mubr.bf16.gmra.mrb[0].mxu0 %v4298
  %v4405 = vpop.f32.mrb[0].mxu0
  %v4406 = vadd.f32 0.0, %v4405
  %v4407 = vpop.f32.mrb[0].mxu0
  %v4408 = vpop.f32.mrb[0].mxu0
  %v4409 = vadd.f32 0.0, %v4408
  %v4410 = vpop.f32.mrb[0].mxu0
  %4411 = vdwg.mxu0
  %v4412 = vadd.f32 %v4261, %v4398
  %v4413 = vadd.f32 %v4262, %v4401
  %v4414 = vadd.f32 %v4263, %v4406
  %v4415 = vadd.f32 %v4264, %v4409
  %s4416 = scalar_lea.vmem [#allocation4], 26
  %v4417 = vld [vmem:[%s4416] ss:$48 sm:$0x3]
  %v4418 = vld [vmem:[%s4416] ss:$48 sm:$0xc]
  %v4419 = vor.u32 %v4417, %v4418
  %v4420 = vld [vmem:[%s4416] ss:$48 sm:$0x30]
  %v4421 = vor.u32 %v4419, %v4420
  %v4422 = vld [vmem:[%s4416] ss:$48 sm:$0xc0]
  %v4423 = vor.u32 %v4421, %v4422
  %s4424 = scalar_lea.vmem [#allocation4], 410
  %v4425 = vld [vmem:[%s4424] ss:$48 sm:$0x3]
  %v4426 = vld [vmem:[%s4424] ss:$48 sm:$0xc]
  %v4427 = vor.u32 %v4425, %v4426
  %v4428 = vld [vmem:[%s4424] ss:$48 sm:$0x30]
  %v4429 = vor.u32 %v4427, %v4428
  %v4430 = vld [vmem:[%s4424] ss:$48 sm:$0xc0]
  %v4431 = vor.u32 %v4429, %v4430
  %s4432 = scalar_lea.vmem [#allocation4], 794
  %v4433 = vld [vmem:[%s4432] ss:$48 sm:$0x3]
  %v4434 = vld [vmem:[%s4432] ss:$48 sm:$0xc]
  %v4435 = vor.u32 %v4433, %v4434
  %v4436 = vld [vmem:[%s4432] ss:$48 sm:$0x30]
  %v4437 = vor.u32 %v4435, %v4436
  %v4438 = vld [vmem:[%s4432] ss:$48 sm:$0xc0]
  %v4439 = vor.u32 %v4437, %v4438
  %s4440 = scalar_lea.vmem [#allocation4], 1178
  %v4441 = vld [vmem:[%s4440] ss:$48 sm:$0x3]
  %v4442 = vld [vmem:[%s4440] ss:$48 sm:$0xc]
  %v4443 = vor.u32 %v4441, %v4442
  %v4444 = vld [vmem:[%s4440] ss:$48 sm:$0x30]
  %v4445 = vor.u32 %v4443, %v4444
  %v4446 = vld [vmem:[%s4440] ss:$48 sm:$0xc0]
  %v4447 = vor.u32 %v4445, %v4446
  %v4448 = vpack.c.bf16 %v4431, %v4423
  %v4449 = vpack.c.bf16 %v4447, %v4439
  %v4450 = vld [vmem:[%s5 + $0x380] sm:$0xf]
  %v4451 = vld [vmem:[%s5 + $0x384] sm:$0xf]
  %v4452 = vld [vmem:[%s5 + $0x388] sm:$0xf]
  %v4453 = vld [vmem:[%s5 + $0x38c] sm:$0xf]
  %v4454 = vld [vmem:[%s5 + $0x390] sm:$0xf]
  %v4455 = vld [vmem:[%s5 + $0x394] sm:$0xf]
  %v4456 = vld [vmem:[%s5 + $0x398] sm:$0xf]
  %v4457 = vld [vmem:[%s5 + $0x39c] sm:$0xf]
  %v4458 = vld [vmem:[%s5 + $0x3a0] sm:$0xf]
  %v4459 = vld [vmem:[%s5 + $0x3a4] sm:$0xf]
  %v4460 = vld [vmem:[%s5 + $0x3a8] sm:$0xf]
  %v4461 = vld [vmem:[%s5 + $0x3ac] sm:$0xf]
  %v4462 = vld [vmem:[%s5 + $0x3b0] sm:$0xf]
  %v4463 = vld [vmem:[%s5 + $0x3b4] sm:$0xf]
  %v4464 = vld [vmem:[%s5 + $0x3b8] sm:$0xf]
  %v4465 = vld [vmem:[%s5 + $0x3bc] sm:$0xf]
  %v4482 = vunpack.c.l.b16 %v4450
  %v4483 = vunpack.c.l.b16 %v4451
  %v4484 = vunpack.c.l.b16 %v4452
  %v4485 = vunpack.c.l.b16 %v4453
  %v4486 = vunpack.c.l.b16 %v4454
  %v4487 = vunpack.c.l.b16 %v4455
  %v4488 = vunpack.c.l.b16 %v4456
  %v4489 = vunpack.c.l.b16 %v4457
  %v4490 = vunpack.c.l.b16 %v4458
  %v4491 = vunpack.c.l.b16 %v4459
  %v4492 = vunpack.c.l.b16 %v4460
  %v4493 = vunpack.c.l.b16 %v4461
  %v4494 = vunpack.c.l.b16 %v4462
  %v4495 = vunpack.c.l.b16 %v4463
  %v4496 = vunpack.c.l.b16 %v4464
  %v4497 = vunpack.c.l.b16 %v4465
  %v4498 = vpack.c.b16 %v4483, %v4482
  %v4499 = vpack.c.b16 %v4485, %v4484
  %v4500 = vpack.c.b16 %v4487, %v4486
  %v4501 = vpack.c.b16 %v4489, %v4488
  %v4502 = vpack.c.b16 %v4491, %v4490
  %v4503 = vpack.c.b16 %v4493, %v4492
  %v4504 = vpack.c.b16 %v4495, %v4494
  %v4505 = vpack.c.b16 %v4497, %v4496
  %4514 = vmatprep.subr.bf16.mxu0 0
  %4515 = vmatpush1.bf16.msra.mxu0 %v4498
  %4516 = vmatprep.subr.bf16.mxu0 0
  %4517 = vmatpush1.bf16.msra.mxu0 %v4499
  %4518 = vmatprep.subr.bf16.mxu0 0
  %4519 = vmatpush1.bf16.msra.mxu0 %v4500
  %4520 = vmatprep.subr.bf16.mxu0 0
  %4521 = vmatpush1.bf16.msra.mxu0 %v4501
  %4522 = vmatprep.subr.bf16.mxu0 0
  %4523 = vmatpush1.bf16.msra.mxu0 %v4502
  %4524 = vmatprep.subr.bf16.mxu0 0
  %4525 = vmatpush1.bf16.msra.mxu0 %v4503
  %4526 = vmatprep.subr.bf16.mxu0 0
  %4527 = vmatpush1.bf16.msra.mxu0 %v4504
  %4528 = vmatprep.subr.bf16.mxu0 0
  %4529 = vmatpush1.bf16.msra.mxu0 %v4505
  %4530 = vmatprep.subr.bf16.mxu0 0
  %4531 = vmatpush1.bf16.msra.mxu0 0
  %4532 = vmatprep.subr.bf16.mxu0 0
  %4533 = vmatpush1.bf16.msra.mxu0 0
  %4534 = vmatprep.subr.bf16.mxu0 0
  %4535 = vmatpush1.bf16.msra.mxu0 0
  %4536 = vmatprep.subr.bf16.mxu0 0
  %4537 = vmatpush1.bf16.msra.mxu0 0
  %4538 = vmatprep.subr.bf16.mxu0 0
  %4539 = vmatpush1.bf16.msra.mxu0 0
  %4540 = vmatprep.subr.bf16.mxu0 0
  %4541 = vmatpush1.bf16.msra.mxu0 0
  %4542 = vmatprep.subr.bf16.mxu0 0
  %4543 = vmatpush1.bf16.msra.mxu0 0
  %4544 = vmatprep.subr.bf16.mxu0 0
  %4545 = vmatpush1.bf16.msra.mxu0 0
  %4546 = vmatprep.mubr.bf16.mxu0 0
  %4547 = vmatmul.mubr.bf16.gmra.mrb[0].mxu0 %v4448
  %v4548 = vpop.f32.mrb[0].mxu0
  %v4549 = vadd.f32 0.0, %v4548
  %v4550 = vpop.f32.mrb[0].mxu0
  %v4551 = vpop.f32.mrb[0].mxu0
  %v4552 = vadd.f32 0.0, %v4551
  %v4553 = vpop.f32.mrb[0].mxu0
  %4554 = vmatprep.mubr.bf16.mxu0 0
  %4555 = vmatmul.mubr.bf16.gmra.mrb[0].mxu0 %v4449
  %v4556 = vpop.f32.mrb[0].mxu0
  %v4557 = vadd.f32 0.0, %v4556
  %v4558 = vpop.f32.mrb[0].mxu0
  %v4559 = vpop.f32.mrb[0].mxu0
  %v4560 = vadd.f32 0.0, %v4559
  %v4561 = vpop.f32.mrb[0].mxu0
  %4562 = vdwg.mxu0
  %v4563 = vadd.f32 %v4412, %v4549
  %v4564 = vadd.f32 %v4413, %v4552
  %v4565 = vadd.f32 %v4414, %v4557
  %v4566 = vadd.f32 %v4415, %v4560
  %s4567 = scalar_lea.vmem [#allocation4], 27
  %v4568 = vld [vmem:[%s4567] ss:$48 sm:$0x3]
  %v4569 = vld [vmem:[%s4567] ss:$48 sm:$0xc]
  %v4570 = vor.u32 %v4568, %v4569
  %v4571 = vld [vmem:[%s4567] ss:$48 sm:$0x30]
  %v4572 = vor.u32 %v4570, %v4571
  %v4573 = vld [vmem:[%s4567] ss:$48 sm:$0xc0]
  %v4574 = vor.u32 %v4572, %v4573
  %s4575 = scalar_lea.vmem [#allocation4], 411
  %v4576 = vld [vmem:[%s4575] ss:$48 sm:$0x3]
  %v4577 = vld [vmem:[%s4575] ss:$48 sm:$0xc]
  %v4578 = vor.u32 %v4576, %v4577
  %v4579 = vld [vmem:[%s4575] ss:$48 sm:$0x30]
  %v4580 = vor.u32 %v4578, %v4579
  %v4581 = vld [vmem:[%s4575] ss:$48 sm:$0xc0]
  %v4582 = vor.u32 %v4580, %v4581
  %s4583 = scalar_lea.vmem [#allocation4], 795
  %v4584 = vld [vmem:[%s4583] ss:$48 sm:$0x3]
  %v4585 = vld [vmem:[%s4583] ss:$48 sm:$0xc]
  %v4586 = vor.u32 %v4584, %v4585
  %v4587 = vld [vmem:[%s4583] ss:$48 sm:$0x30]
  %v4588 = vor.u32 %v4586, %v4587
  %v4589 = vld [vmem:[%s4583] ss:$48 sm:$0xc0]
  %v4590 = vor.u32 %v4588, %v4589
  %s4591 = scalar_lea.vmem [#allocation4], 1179
  %v4592 = vld [vmem:[%s4591] ss:$48 sm:$0x3]
  %v4593 = vld [vmem:[%s4591] ss:$48 sm:$0xc]
  %v4594 = vor.u32 %v4592, %v4593
  %v4595 = vld [vmem:[%s4591] ss:$48 sm:$0x30]
  %v4596 = vor.u32 %v4594, %v4595
  %v4597 = vld [vmem:[%s4591] ss:$48 sm:$0xc0]
  %v4598 = vor.u32 %v4596, %v4597
  %v4599 = vpack.c.bf16 %v4582, %v4574
  %v4600 = vpack.c.bf16 %v4598, %v4590
  %v4601 = vld [vmem:[%s5 + $0x3c0] sm:$0xf]
  %v4602 = vld [vmem:[%s5 + $0x3c4] sm:$0xf]
  %v4603 = vld [vmem:[%s5 + $0x3c8] sm:$0xf]
  %v4604 = vld [vmem:[%s5 + $0x3cc] sm:$0xf]
  %v4605 = vld [vmem:[%s5 + $0x3d0] sm:$0xf]
  %v4606 = vld [vmem:[%s5 + $0x3d4] sm:$0xf]
  %v4607 = vld [vmem:[%s5 + $0x3d8] sm:$0xf]
  %v4608 = vld [vmem:[%s5 + $0x3dc] sm:$0xf]
  %v4609 = vld [vmem:[%s5 + $0x3e0] sm:$0xf]
  %v4610 = vld [vmem:[%s5 + $0x3e4] sm:$0xf]
  %v4611 = vld [vmem:[%s5 + $0x3e8] sm:$0xf]
  %v4612 = vld [vmem:[%s5 + $0x3ec] sm:$0xf]
  %v4613 = vld [vmem:[%s5 + $0x3f0] sm:$0xf]
  %v4614 = vld [vmem:[%s5 + $0x3f4] sm:$0xf]
  %v4615 = vld [vmem:[%s5 + $0x3f8] sm:$0xf]
  %v4616 = vld [vmem:[%s5 + $0x3fc] sm:$0xf]
  %v4633 = vunpack.c.l.b16 %v4601
  %v4634 = vunpack.c.l.b16 %v4602
  %v4635 = vunpack.c.l.b16 %v4603
  %v4636 = vunpack.c.l.b16 %v4604
  %v4637 = vunpack.c.l.b16 %v4605
  %v4638 = vunpack.c.l.b16 %v4606
  %v4639 = vunpack.c.l.b16 %v4607
  %v4640 = vunpack.c.l.b16 %v4608
  %v4641 = vunpack.c.l.b16 %v4609
  %v4642 = vunpack.c.l.b16 %v4610
  %v4643 = vunpack.c.l.b16 %v4611
  %v4644 = vunpack.c.l.b16 %v4612
  %v4645 = vunpack.c.l.b16 %v4613
  %v4646 = vunpack.c.l.b16 %v4614
  %v4647 = vunpack.c.l.b16 %v4615
  %v4648 = vunpack.c.l.b16 %v4616
  %v4649 = vpack.c.b16 %v4634, %v4633
  %v4650 = vpack.c.b16 %v4636, %v4635
  %v4651 = vpack.c.b16 %v4638, %v4637
  %v4652 = vpack.c.b16 %v4640, %v4639
  %v4653 = vpack.c.b16 %v4642, %v4641
  %v4654 = vpack.c.b16 %v4644, %v4643
  %v4655 = vpack.c.b16 %v4646, %v4645
  %v4656 = vpack.c.b16 %v4648, %v4647
  %4665 = vmatprep.subr.bf16.mxu0 0
  %4666 = vmatpush1.bf16.msra.mxu0 %v4649
  %4667 = vmatprep.subr.bf16.mxu0 0
  %4668 = vmatpush1.bf16.msra.mxu0 %v4650
  %4669 = vmatprep.subr.bf16.mxu0 0
  %4670 = vmatpush1.bf16.msra.mxu0 %v4651
  %4671 = vmatprep.subr.bf16.mxu0 0
  %4672 = vmatpush1.bf16.msra.mxu0 %v4652
  %4673 = vmatprep.subr.bf16.mxu0 0
  %4674 = vmatpush1.bf16.msra.mxu0 %v4653
  %4675 = vmatprep.subr.bf16.mxu0 0
  %4676 = vmatpush1.bf16.msra.mxu0 %v4654
  %4677 = vmatprep.subr.bf16.mxu0 0
  %4678 = vmatpush1.bf16.msra.mxu0 %v4655
  %4679 = vmatprep.subr.bf16.mxu0 0
  %4680 = vmatpush1.bf16.msra.mxu0 %v4656
  %4681 = vmatprep.subr.bf16.mxu0 0
  %4682 = vmatpush1.bf16.msra.mxu0 0
  %4683 = vmatprep.subr.bf16.mxu0 0
  %4684 = vmatpush1.bf16.msra.mxu0 0
  %4685 = vmatprep.subr.bf16.mxu0 0
  %4686 = vmatpush1.bf16.msra.mxu0 0
  %4687 = vmatprep.subr.bf16.mxu0 0
  %4688 = vmatpush1.bf16.msra.mxu0 0
  %4689 = vmatprep.subr.bf16.mxu0 0
  %4690 = vmatpush1.bf16.msra.mxu0 0
  %4691 = vmatprep.subr.bf16.mxu0 0
  %4692 = vmatpush1.bf16.msra.mxu0 0
  %4693 = vmatprep.subr.bf16.mxu0 0
  %4694 = vmatpush1.bf16.msra.mxu0 0
  %4695 = vmatprep.subr.bf16.mxu0 0
  %4696 = vmatpush1.bf16.msra.mxu0 0
  %4697 = vmatprep.mubr.bf16.mxu0 0
  %4698 = vmatmul.mubr.bf16.gmra.mrb[0].mxu0 %v4599
  %v4699 = vpop.f32.mrb[0].mxu0
  %v4700 = vadd.f32 0.0, %v4699
  %v4701 = vpop.f32.mrb[0].mxu0
  %v4702 = vpop.f32.mrb[0].mxu0
  %v4703 = vadd.f32 0.0, %v4702
  %v4704 = vpop.f32.mrb[0].mxu0
  %4705 = vmatprep.mubr.bf16.mxu0 0
  %4706 = vmatmul.mubr.bf16.gmra.mrb[0].mxu0 %v4600
  %v4707 = vpop.f32.mrb[0].mxu0
  %v4708 = vadd.f32 0.0, %v4707
  %v4709 = vpop.f32.mrb[0].mxu0
  %v4710 = vpop.f32.mrb[0].mxu0
  %v4711 = vadd.f32 0.0, %v4710
  %v4712 = vpop.f32.mrb[0].mxu0
  %4713 = vdwg.mxu0
  %v4714 = vadd.f32 %v4563, %v4700
  %v4715 = vadd.f32 %v4564, %v4703
  %v4716 = vadd.f32 %v4565, %v4708
  %v4717 = vadd.f32 %v4566, %v4711
  %v4718 = vld [vmem:[%s6] sm:$0x1]
  %v4720 = vlaneseq
  %v4721 = vshrl.u32 %v4720, 7
  %v4722 = vsub.s32 0, %v4721
  %v4723 = vrot.slane %v4718, %v4722
  %v4725 = vadd.f32 %v4714, %v4723
  %v4726 = vadd.f32 %v4715, %v4723
  %v4727 = vadd.f32 %v4716, %v4723
  %v4728 = vadd.f32 %v4717, %v4723
  %v4729 = vmax.f32 %v4725, 0.0
  %v4730 = vmax.f32 %v4726, 0.0
  %v4731 = vmax.f32 %v4727, 0.0
  %v4732 = vmax.f32 %v4728, 0.0
  %v4733 = vpack.c.bf16 %v4730, %v4729
  %v4734 = vpack.c.bf16 %v4732, %v4731
  %v4735 = vld [vmem:[%s7] sm:$0xf]
  %v4736 = vld [vmem:[%s7 + $0x4] sm:$0xf]
  %v4737 = vld [vmem:[%s7 + $0x8] sm:$0xf]
  %v4738 = vld [vmem:[%s7 + $0xc] sm:$0xf]
  %v4739 = vld [vmem:[%s7 + $0x10] sm:$0xf]
  %v4740 = vld [vmem:[%s7 + $0x14] sm:$0xf]
  %v4741 = vld [vmem:[%s7 + $0x18] sm:$0xf]
  %v4742 = vld [vmem:[%s7 + $0x1c] sm:$0xf]
  %v4743 = vld [vmem:[%s7 + $0x20] sm:$0xf]
  %v4744 = vld [vmem:[%s7 + $0x24] sm:$0xf]
  %v4745 = vld [vmem:[%s7 + $0x28] sm:$0xf]
  %v4746 = vld [vmem:[%s7 + $0x2c] sm:$0xf]
  %v4747 = vld [vmem:[%s7 + $0x30] sm:$0xf]
  %v4748 = vld [vmem:[%s7 + $0x34] sm:$0xf]
  %v4749 = vld [vmem:[%s7 + $0x38] sm:$0xf]
  %v4750 = vld [vmem:[%s7 + $0x3c] sm:$0xf]
  %v4751 = vld [vmem:[%s8] sm:$0x1]
  %v4753 = vlaneseq
  %v4754 = vshrl.u32 %v4753, 7
  %v4755 = vsub.s32 0, %v4754
  %v4756 = vrot.slane %v4751, %v4755
  %v4774 = vunpack.c.l.b16 %v4735
  %v4775 = vunpack.c.l.b16 %v4736
  %v4776 = vunpack.c.l.b16 %v4737
  %v4777 = vunpack.c.l.b16 %v4738
  %v4778 = vunpack.c.l.b16 %v4739
  %v4779 = vunpack.c.l.b16 %v4740
  %v4780 = vunpack.c.l.b16 %v4741
  %v4781 = vunpack.c.l.b16 %v4742
  %v4782 = vunpack.c.l.b16 %v4743
  %v4783 = vunpack.c.l.b16 %v4744
  %v4784 = vunpack.c.l.b16 %v4745
  %v4785 = vunpack.c.l.b16 %v4746
  %v4786 = vunpack.c.l.b16 %v4747
  %v4787 = vunpack.c.l.b16 %v4748
  %v4788 = vunpack.c.l.b16 %v4749
  %v4789 = vunpack.c.l.b16 %v4750
  %v4790 = vpack.c.b16 %v4775, %v4774
  %v4791 = vpack.c.b16 %v4777, %v4776
  %v4792 = vpack.c.b16 %v4779, %v4778
  %v4793 = vpack.c.b16 %v4781, %v4780
  %v4794 = vpack.c.b16 %v4783, %v4782
  %v4795 = vpack.c.b16 %v4785, %v4784
  %v4796 = vpack.c.b16 %v4787, %v4786
  %v4797 = vpack.c.b16 %v4789, %v4788
  %4806 = vmatprep.subr.bf16.mxu0 0
  %4807 = vmatpush1.bf16.msra.mxu0 %v4790
  %4808 = vmatprep.subr.bf16.mxu0 0
  %4809 = vmatpush1.bf16.msra.mxu0 %v4791
  %4810 = vmatprep.subr.bf16.mxu0 0
  %4811 = vmatpush1.bf16.msra.mxu0 %v4792
  %4812 = vmatprep.subr.bf16.mxu0 0
  %4813 = vmatpush1.bf16.msra.mxu0 %v4793
  %4814 = vmatprep.subr.bf16.mxu0 0
  %4815 = vmatpush1.bf16.msra.mxu0 %v4794
  %4816 = vmatprep.subr.bf16.mxu0 0
  %4817 = vmatpush1.bf16.msra.mxu0 %v4795
  %4818 = vmatprep.subr.bf16.mxu0 0
  %4819 = vmatpush1.bf16.msra.mxu0 %v4796
  %4820 = vmatprep.subr.bf16.mxu0 0
  %4821 = vmatpush1.bf16.msra.mxu0 %v4797
  %4822 = vmatprep.subr.bf16.mxu0 0
  %4823 = vmatpush1.bf16.msra.mxu0 0
  %4824 = vmatprep.subr.bf16.mxu0 0
  %4825 = vmatpush1.bf16.msra.mxu0 0
  %4826 = vmatprep.subr.bf16.mxu0 0
  %4827 = vmatpush1.bf16.msra.mxu0 0
  %4828 = vmatprep.subr.bf16.mxu0 0
  %4829 = vmatpush1.bf16.msra.mxu0 0
  %4830 = vmatprep.subr.bf16.mxu0 0
  %4831 = vmatpush1.bf16.msra.mxu0 0
  %4832 = vmatprep.subr.bf16.mxu0 0
  %4833 = vmatpush1.bf16.msra.mxu0 0
  %4834 = vmatprep.subr.bf16.mxu0 0
  %4835 = vmatpush1.bf16.msra.mxu0 0
  %4836 = vmatprep.subr.bf16.mxu0 0
  %4837 = vmatpush1.bf16.msra.mxu0 0
  %4838 = vmatprep.mubr.bf16.mxu0 0
  %4839 = vmatmul.mubr.bf16.gmra.mrb[0].mxu0 %v4733
  %v4840 = vpop.f32.mrb[0].mxu0
  %v4841 = vadd.f32 %v4756, %v4840
  %v4842 = vpop.f32.mrb[0].mxu0
  %v4843 = vpop.f32.mrb[0].mxu0
  %v4844 = vadd.f32 %v4756, %v4843
  %v4845 = vpop.f32.mrb[0].mxu0
  %4846 = vmatprep.mubr.bf16.mxu0 0
  %4847 = vmatmul.mubr.bf16.gmra.mrb[0].mxu0 %v4734
  %v4848 = vpop.f32.mrb[0].mxu0
  %v4849 = vadd.f32 %v4756, %v4848
  %v4850 = vpop.f32.mrb[0].mxu0
  %v4851 = vpop.f32.mrb[0].mxu0
  %v4852 = vadd.f32 %v4756, %v4851
  %v4853 = vpop.f32.mrb[0].mxu0
  %4854 = vdwg.mxu0
  %v4855 = vsel %vm54, 1, 0
  %vm4856 = vcmp.eq.s32.totalorder %v4855, 1
  %v4857 = vsel %vm4856, %v4841, -1e+30
  %v4858 = vsel %vm4856, %v4844, -1e+30
  %v4859 = vsel %vm4856, %v4849, -1e+30
  %v4860 = vsel %vm4856, %v4852, -1e+30
  %4861 = vmax.xlane.f32.xlu0 %v4857
  %v4862 = vpop.xlane.xlu0 %4861
  %4863 = vmax.xlane.f32.xlu0 %v4858
  %v4864 = vpop.xlane.xlu0 %4863
  %4865 = vmax.xlane.f32.xlu0 %v4859
  %v4866 = vpop.xlane.xlu0 %4865
  %4867 = vmax.xlane.f32.xlu0 %v4860
  %v4868 = vpop.xlane.xlu0 %4867
  %v4869 = vsub.f32 %v4857, %v4862
  %v4870 = vsub.f32 %v4858, %v4864
  %v4871 = vsub.f32 %v4859, %v4866
  %v4872 = vsub.f32 %v4860, %v4868
  %v4873 = vmul.f32 %v4869, 1.442695
  %v4874 = vpow.pop %v4873
  %v4875 = vmul.f32 %v4870, 1.442695
  %v4876 = vpow.pop %v4875
  %v4877 = vmul.f32 %v4871, 1.442695
  %v4878 = vpow.pop %v4877
  %v4879 = vmul.f32 %v4872, 1.442695
  %v4880 = vpow.pop %v4879
  %4881 = vadd.xlane.f32.xlu0 %v4874
  %v4882 = vpop.xlane.xlu0 %4881
  %4883 = vadd.xlane.f32.xlu0 %v4876
  %v4884 = vpop.xlane.xlu0 %4883
  %4885 = vadd.xlane.f32.xlu0 %v4878
  %v4886 = vpop.xlane.xlu0 %4885
  %4887 = vadd.xlane.f32.xlu0 %v4880
  %v4888 = vpop.xlane.xlu0 %4887
  %v4889 = vlog2.pop %v4882
  %v4890 = vmul.f32 %v4889, 0.6931472
  %v4891 = vlog2.pop %v4884
  %v4892 = vmul.f32 %v4891, 0.6931472
  %v4893 = vlog2.pop %v4886
  %v4894 = vmul.f32 %v4893, 0.6931472
  %v4895 = vlog2.pop %v4888
  %v4896 = vmul.f32 %v4895, 0.6931472
  %v4897 = vsub.f32 %v4869, %v4890
  %v4898 = vsub.f32 %v4870, %v4892
  %v4899 = vsub.f32 %v4871, %v4894
  %v4900 = vsub.f32 %v4872, %v4896
  %4901 = vst [vmem:[%s9] sm:$0xff] %v4897
  %4902 = vst [vmem:[%s9 + $0x8] sm:$0xff] %v4898
  %4903 = vst [vmem:[%s9 + $0x10] sm:$0xff] %v4899
  %4904 = vst [vmem:[%s9 + $0x18] sm:$0xff] %v4900
  // Predicated region
  $region45: #{net_forward.1} parent=0 // pred_check
    _
  $region46: #{net_forward.1} parent=0 // pred_check_branch
    %4906 = sbr.rel (0) target = $region48
  $region47: #{net_forward.1} parent=0 // pred_region
    _
  $region48: #{net_forward.1} parent=0 // pred_fallthru
    _
  // Predicated region
  $region49: #{net_forward.1} parent=0 // pred_check
    _
  $region50: #{net_forward.1} parent=0 // pred_check_branch
    %4908 = sbr.rel (0) target = $region52
  $region51: #{net_forward.1} parent=0 // pred_region
    _
  $region52: #{net_forward.1} parent=0 // pred_fallthru
    _

</llo_original>
